<compile_context>
chip_gen: v5e
topology: v5e:2x2
jax: 0.10.0
libtpu: 0.0.40
codegen_flags: <defaults>
</compile_context>

<pallas_src>
import numpy as np
import jax
import jax.numpy as jnp
from jax.experimental import pallas as pl
from jax.experimental.pallas import tpu as pltpu


def _leaky_relu(x):
    return jnp.where(x >= 0, x, 0.2 * x)


def _conv3(x_bf16, w_ref, b_ref):
    """Conv1d(k=3, pad=1) over rows of x_bf16 (T, Cin) -> (T, Cout) f32.

    out[t] = x[t-1] @ w[0] + x[t] @ w[1] + x[t+1] @ w[2] + b  (zero-padded ends)

    Each tap is one aligned MXU matmul on the full block; the row shift is a
    cyclic sublane roll with the wrapped-around row masked to zero.
    """
    T = x_bf16.shape[0]
    y0 = jnp.dot(x_bf16, w_ref[0], preferred_element_type=jnp.float32)
    y1 = jnp.dot(x_bf16, w_ref[1], preferred_element_type=jnp.float32)
    y2 = jnp.dot(x_bf16, w_ref[2], preferred_element_type=jnp.float32)
    row = jax.lax.broadcasted_iota(jnp.int32, y1.shape, 0)
    left = jnp.where(row == 0, 0.0, pltpu.roll(y0, shift=1, axis=0))
    right = jnp.where(row == T - 1, 0.0, pltpu.roll(y2, shift=T - 1, axis=0))
    return left + y1 + right + b_ref[...]


def _bwa_kernel(v_ref, f_ref,
                wc_ref, bc_ref, wb_ref, bb_ref,
                wa1_ref, ba1_ref, wa2_ref, ba2_ref, wa3_ref, ba3_ref,
                xatn_ref, ff_ref):
    """One grid step handles one batch element (whole sequence resident in VMEM)."""
    v = v_ref[0]                                            # (T, C) f32

    # --- channel branch: AdaptiveAvgPool1d(1) -> Conv1d(k=3, pad=1) on a
    #     length-1 sequence (only the middle tap sees non-zero input) -> LeakyReLU.
    cf = jnp.mean(v, axis=0, keepdims=True)                 # (1, C) f32
    ca = jnp.dot(cf.astype(jnp.bfloat16), wc_ref[...],
                 preferred_element_type=jnp.float32) + bc_ref[...]
    ca = _leaky_relu(ca)                                    # (1, E)

    # --- bit-wise branch: Conv1d(C -> E, k=3, pad=1) + LeakyReLU(0.2)
    bw = _leaky_relu(_conv3(f_ref[0], wb_ref, bb_ref))      # (T, E)

    # --- fusion: sigmoid(bit_wise_attn * channel_attn) * vfeat  (requires C == E)
    ff = jax.nn.sigmoid(bw * ca) * v                        # (T, E) f32
    ff_ref[0] = ff

    # --- attention head: conv(E->D1,k3) + LReLU, conv(D1->D1,k3) + LReLU,
    #     conv(D1->1,k1) + Sigmoid.  (conv1 feeds directly from ff in registers.)
    a1 = _leaky_relu(_conv3(ff.astype(jnp.bfloat16), wa1_ref, ba1_ref))   # (T, D1)
    a2 = _leaky_relu(_conv3(a1.astype(jnp.bfloat16), wa2_ref, ba2_ref))   # (T, D1)
    a3 = jnp.dot(a2.astype(jnp.bfloat16), wa3_ref[...],
                 preferred_element_type=jnp.float32) + ba3_ref[...]       # (T, 1)
    xatn_ref[0] = jax.nn.sigmoid(a3)


def _vmem_limit_bytes():
    # Raise the scoped-VMEM ceiling above the 16/32 MiB defaults while staying
    # well under physical capacity (64 MiB v7x, 128 MiB v5e/v6e).
    try:
        cap = pltpu.get_tpu_info().vmem_capacity_bytes
    except Exception:
        cap = 64 * 1024 * 1024
    return int(min(cap * 3 // 4, 100 * 1024 * 1024))


def bwa_fusion_dropout_feat_v2(vfeat, ffeat, params):
    """vfeat, ffeat: (B, n_feature, T) float32 (PyTorch NCT layout).

    Returns (x_atn: (B, 1, T), filter_feat: (B, embed_dim, T)).
    """
    B, C, T = vfeat.shape
    E = params["bw_w"].shape[0]
    D1 = params["a1_w"].shape[0]
    assert C == E, "filter_feat multiply requires n_feature == embed_dim"

    # channels-last activations; v stays f32 (mean + fusion multiply), f only
    # feeds matmuls so it travels as bf16.
    v = jnp.transpose(vfeat, (0, 2, 1)).astype(jnp.float32)      # (B, T, C)
    f = jnp.transpose(ffeat, (0, 2, 1)).astype(jnp.bfloat16)     # (B, T, C)

    # Torch Conv1d weights are (Cout, Cin, K); rearrange so x @ w[k] works.
    def w3(p):                                                   # -> (K, Cin, Cout) bf16
        return jnp.transpose(p, (2, 1, 0)).astype(jnp.bfloat16)

    wc = w3(params["ch_w"])[1]                                   # (C, E) middle tap only
    bc = params["ch_b"].reshape(1, E).astype(jnp.float32)
    wb = w3(params["bw_w"])                                      # (3, C, E)
    bb = params["bw_b"].reshape(1, E).astype(jnp.float32)
    wa1 = w3(params["a1_w"])                                     # (3, E, D1)
    ba1 = params["a1_b"].reshape(1, D1).astype(jnp.float32)
    wa2 = w3(params["a2_w"])                                     # (3, D1, D1)
    ba2 = params["a2_b"].reshape(1, D1).astype(jnp.float32)
    wa3 = w3(params["a3_w"])[0]                                  # (D1, 1)
    ba3 = params["a3_b"].reshape(1, 1).astype(jnp.float32)

    def full(shape):
        n = len(shape)
        return pl.BlockSpec(shape, lambda b, _n=n: (0,) * _n)

    xatn_bt1, ff_bte = pl.pallas_call(
        _bwa_kernel,
        out_shape=(jax.ShapeDtypeStruct((B, T, 1), jnp.float32),
                   jax.ShapeDtypeStruct((B, T, E), jnp.float32)),
        grid_spec=pltpu.PrefetchScalarGridSpec(
            num_scalar_prefetch=0,
            grid=(B,),
            in_specs=[
                pl.BlockSpec((1, T, C), lambda b: (b, 0, 0)),
                pl.BlockSpec((1, T, C), lambda b: (b, 0, 0)),
                full((C, E)), full((1, E)),
                full((3, C, E)), full((1, E)),
                full((3, E, D1)), full((1, D1)),
                full((3, D1, D1)), full((1, D1)),
                full((D1, 1)), full((1, 1)),
            ],
            out_specs=[
                pl.BlockSpec((1, T, 1), lambda b: (b, 0, 0)),
                pl.BlockSpec((1, T, E), lambda b: (b, 0, 0)),
            ],
        ),
        compiler_params=pltpu.CompilerParams(
            dimension_semantics=("parallel",),
            vmem_limit_bytes=_vmem_limit_bytes()),
    )(v, f, wc, bc, wb, bb, wa1, ba1, wa2, ba2, wa3, ba3)

    x_atn = jnp.transpose(xatn_bt1, (0, 2, 1))       # (B, 1, T)
    filter_feat = jnp.transpose(ff_bte, (0, 2, 1))   # (B, E, T)
    return x_atn, filter_feat


def init_params(key, n_feature, embed_dim, d_att):
    """Deterministic Conv1d-style init (uniform with fan_in bound), torch weight layout."""
    ks = jax.random.split(key, 5)

    def conv_init(k, cout, cin, ksize):
        fan_in = cin * ksize
        bound = 1.0 / np.sqrt(fan_in)
        kw, kb = jax.random.split(k)
        w = jax.random.uniform(kw, (cout, cin, ksize), jnp.float32, -bound, bound)
        b = jax.random.uniform(kb, (cout,), jnp.float32, -bound, bound)
        return w, b

    p = {}
    p["bw_w"], p["bw_b"] = conv_init(ks[0], embed_dim, n_feature, 3)   # bit_wise_attn conv
    p["ch_w"], p["ch_b"] = conv_init(ks[1], embed_dim, n_feature, 3)   # channel_conv
    p["a1_w"], p["a1_b"] = conv_init(ks[2], d_att, embed_dim, 3)       # attention conv1
    p["a2_w"], p["a2_b"] = conv_init(ks[3], d_att, d_att, 3)           # attention conv2
    p["a3_w"], p["a3_b"] = conv_init(ks[4], 1, d_att, 1)               # attention conv3
    return p


def reference_forward(vfeat, ffeat, p):
    """Pure-JAX reference mirroring the PyTorch forward (dropout = identity)."""
    hi = jax.lax.Precision.HIGHEST

    def conv1d(x, w, b):                      # x: (B,Cin,T), w: (Cout,Cin,K)
        K, T = w.shape[2], x.shape[2]
        pad = (K - 1) // 2
        xp = jnp.pad(x, ((0, 0), (0, 0), (pad, pad)))
        out = sum(jnp.einsum("bct,oc->bot", xp[:, :, k:k + T], w[:, :, k], precision=hi)
                  for k in range(K))
        return out + b[None, :, None]

    lrelu = lambda x: jnp.where(x >= 0, x, 0.2 * x)
    cf = jnp.mean(vfeat, axis=2, keepdims=True)
    ca = lrelu(conv1d(cf, p["ch_w"], p["ch_b"]))
    bw = lrelu(conv1d(ffeat, p["bw_w"], p["bw_b"]))
    ff = jax.nn.sigmoid(bw * ca) * vfeat
    a1 = lrelu(conv1d(ff, p["a1_w"], p["a1_b"]))
    a2 = lrelu(conv1d(a1, p["a2_w"], p["a2_b"]))
    a3 = conv1d(a2, p["a3_w"], p["a3_b"])
    return jax.nn.sigmoid(a3), ff


if __name__ == "__main__":
    # Small shapes: the fusion multiply requires n_feature == embed_dim (the real
    # model uses 1024/1024); scale the embed dim to 128, keep 512-wide attention.
    B, T = 2, 16
    n_feature = 128
    embed_dim = 128
    d_att = 512

    key = jax.random.PRNGKey(0)
    kp, kv, kf = jax.random.split(key, 3)
    params = init_params(kp, n_feature, embed_dim, d_att)
    vfeat = jax.random.normal(kv, (B, n_feature, T), jnp.float32)
    ffeat = jax.random.normal(kf, (B, n_feature, T), jnp.float32)

    x_atn, filter_feat = bwa_fusion_dropout_feat_v2(vfeat, ffeat, params)
    (x_atn, filter_feat) = jax.block_until_ready((x_atn, filter_feat))

    assert x_atn.shape == (B, 1, T)
    assert filter_feat.shape == (B, embed_dim, T)

    x_ref, ff_ref = reference_forward(vfeat, ffeat, params)
    np.testing.assert_allclose(np.asarray(x_atn), np.asarray(x_ref), rtol=2e-2, atol=2e-2)
    np.testing.assert_allclose(np.asarray(filter_feat), np.asarray(ff_ref), rtol=2e-2, atol=2e-2)

    print("KERNEL_OK")
</pallas_src>

<mosaic_0001>
module attributes {stable_mosaic.version = 11 : i64} {
  func.func @_bwa_kernel(%arg0: i32, %arg1: memref<1x16x128xf32, #tpu.memory_space<vmem>>, %arg2: memref<1x16x128xbf16, #tpu.memory_space<vmem>>, %arg3: memref<128x128xbf16, #tpu.memory_space<vmem>>, %arg4: memref<1x128xf32, #tpu.memory_space<vmem>>, %arg5: memref<3x128x128xbf16, #tpu.memory_space<vmem>>, %arg6: memref<1x128xf32, #tpu.memory_space<vmem>>, %arg7: memref<3x128x512xbf16, #tpu.memory_space<vmem>>, %arg8: memref<1x512xf32, #tpu.memory_space<vmem>>, %arg9: memref<3x512x512xbf16, #tpu.memory_space<vmem>>, %arg10: memref<1x512xf32, #tpu.memory_space<vmem>>, %arg11: memref<512x1xbf16, #tpu.memory_space<vmem>>, %arg12: memref<1x1xf32, #tpu.memory_space<vmem>>, %arg13: memref<1x16x1xf32, #tpu.memory_space<vmem>>, %arg14: memref<1x16x128xf32, #tpu.memory_space<vmem>>) attributes {dimension_semantics = [#tpu.dimension_semantics<parallel>], iteration_bounds = array<i64: 2>, scalar_prefetch = 0 : i64, scratch_operands = 0 : i64, tpu.core_type = #tpu.core_type<tc>, window_params = [{transform_indices = @transform_0, window_bounds = array<i64: 1, 16, 128>}, {transform_indices = @transform_1, window_bounds = array<i64: 1, 16, 128>}, {pipeline_mode = #tpu.pipeline_mode<synchronous>, transform_indices = @transform_2, window_bounds = array<i64: 128, 128>}, {pipeline_mode = #tpu.pipeline_mode<synchronous>, transform_indices = @transform_3, window_bounds = array<i64: 1, 128>}, {pipeline_mode = #tpu.pipeline_mode<synchronous>, transform_indices = @transform_4, window_bounds = array<i64: 3, 128, 128>}, {pipeline_mode = #tpu.pipeline_mode<synchronous>, transform_indices = @transform_5, window_bounds = array<i64: 1, 128>}, {pipeline_mode = #tpu.pipeline_mode<synchronous>, transform_indices = @transform_6, window_bounds = array<i64: 3, 128, 512>}, {pipeline_mode = #tpu.pipeline_mode<synchronous>, transform_indices = @transform_7, window_bounds = array<i64: 1, 512>}, {pipeline_mode = #tpu.pipeline_mode<synchronous>, transform_indices = @transform_8, window_bounds = array<i64: 3, 512, 512>}, {pipeline_mode = #tpu.pipeline_mode<synchronous>, transform_indices = @transform_9, window_bounds = array<i64: 1, 512>}, {pipeline_mode = #tpu.pipeline_mode<synchronous>, transform_indices = @transform_10, window_bounds = array<i64: 512, 1>}, {pipeline_mode = #tpu.pipeline_mode<synchronous>, transform_indices = @transform_11, window_bounds = array<i64: 1, 1>}, {transform_indices = @transform_12, window_bounds = array<i64: 1, 16, 1>}, {transform_indices = @transform_13, window_bounds = array<i64: 1, 16, 128>}]} {
    %c0 = arith.constant 0 : index
    %c0_0 = arith.constant 0 : index
    %c0_1 = arith.constant 0 : index
    %0 = vector.load %arg1[%c0, %c0_0, %c0_1] : memref<1x16x128xf32, #tpu.memory_space<vmem>>, vector<1x16x128xf32>
    %1 = vector.shape_cast %0 : vector<1x16x128xf32> to vector<16x128xf32>
    %cst = arith.constant dense<0.000000e+00> : vector<128xf32>
    %2 = vector.multi_reduction <add>, %1, %cst [0] : vector<16x128xf32> to vector<128xf32>
    %3 = vector.shape_cast %2 : vector<128xf32> to vector<1x128xf32>
    %cst_2 = arith.constant 1.600000e+01 : f32
    %4 = vector.broadcast %cst_2 : f32 to vector<1x128xf32>
    %5 = arith.divf %3, %4 : vector<1x128xf32>
    %6 = arith.truncf %5 : vector<1x128xf32> to vector<1x128xbf16>
    %c0_3 = arith.constant 0 : index
    %c0_4 = arith.constant 0 : index
    %7 = vector.load %arg3[%c0_3, %c0_4] : memref<128x128xbf16, #tpu.memory_space<vmem>>, vector<128x128xbf16>
    %cst_5 = arith.constant dense<0.000000e+00> : vector<1x128xf32>
    %8 = tpu.matmul %6, %7, %cst_5 {dimension_numbers = #tpu.dot_dimension_numbers<[1], [0], [0], [1], [0, 0, 1, 1], [], []>} : vector<1x128xbf16>, vector<128x128xbf16>, vector<1x128xf32> -> vector<1x128xf32>
    %c0_6 = arith.constant 0 : index
    %c0_7 = arith.constant 0 : index
    %9 = vector.load %arg4[%c0_6, %c0_7] : memref<1x128xf32, #tpu.memory_space<vmem>>, vector<1x128xf32>
    %10 = arith.addf %8, %9 : vector<1x128xf32>
    %cst_8 = arith.constant 0.000000e+00 : f32
    %11 = vector.broadcast %cst_8 : f32 to vector<1x128xf32>
    %12 = arith.cmpf oge, %10, %11 : vector<1x128xf32>
    %cst_9 = arith.constant 2.000000e-01 : f32
    %13 = vector.broadcast %cst_9 : f32 to vector<1x128xf32>
    %14 = arith.mulf %13, %10 : vector<1x128xf32>
    %15 = arith.select %12, %10, %14 : vector<1x128xi1>, vector<1x128xf32>
    %c0_10 = arith.constant 0 : index
    %c0_11 = arith.constant 0 : index
    %c0_12 = arith.constant 0 : index
    %16 = vector.load %arg2[%c0_10, %c0_11, %c0_12] : memref<1x16x128xbf16, #tpu.memory_space<vmem>>, vector<1x16x128xbf16>
    %17 = vector.shape_cast %16 : vector<1x16x128xbf16> to vector<16x128xbf16>
    %c0_13 = arith.constant 0 : index
    %c0_14 = arith.constant 0 : index
    %c0_15 = arith.constant 0 : index
    %18 = vector.load %arg5[%c0_13, %c0_14, %c0_15] : memref<3x128x128xbf16, #tpu.memory_space<vmem>>, vector<1x128x128xbf16>
    %19 = vector.shape_cast %18 : vector<1x128x128xbf16> to vector<128x128xbf16>
    %cst_16 = arith.constant dense<0.000000e+00> : vector<16x128xf32>
    %20 = tpu.matmul %17, %19, %cst_16 {dimension_numbers = #tpu.dot_dimension_numbers<[1], [0], [0], [1], [0, 0, 1, 1], [], []>} : vector<16x128xbf16>, vector<128x128xbf16>, vector<16x128xf32> -> vector<16x128xf32>
    %c1 = arith.constant 1 : index
    %c0_17 = arith.constant 0 : index
    %c0_18 = arith.constant 0 : index
    %21 = vector.load %arg5[%c1, %c0_17, %c0_18] : memref<3x128x128xbf16, #tpu.memory_space<vmem>>, vector<1x128x128xbf16>
    %22 = vector.shape_cast %21 : vector<1x128x128xbf16> to vector<128x128xbf16>
    %cst_19 = arith.constant dense<0.000000e+00> : vector<16x128xf32>
    %23 = tpu.matmul %17, %22, %cst_19 {dimension_numbers = #tpu.dot_dimension_numbers<[1], [0], [0], [1], [0, 0, 1, 1], [], []>} : vector<16x128xbf16>, vector<128x128xbf16>, vector<16x128xf32> -> vector<16x128xf32>
    %c2 = arith.constant 2 : index
    %c0_20 = arith.constant 0 : index
    %c0_21 = arith.constant 0 : index
    %24 = vector.load %arg5[%c2, %c0_20, %c0_21] : memref<3x128x128xbf16, #tpu.memory_space<vmem>>, vector<1x128x128xbf16>
    %25 = vector.shape_cast %24 : vector<1x128x128xbf16> to vector<128x128xbf16>
    %cst_22 = arith.constant dense<0.000000e+00> : vector<16x128xf32>
    %26 = tpu.matmul %17, %25, %cst_22 {dimension_numbers = #tpu.dot_dimension_numbers<[1], [0], [0], [1], [0, 0, 1, 1], [], []>} : vector<16x128xbf16>, vector<128x128xbf16>, vector<16x128xf32> -> vector<16x128xf32>
    %27 = tpu.iota {dimensions = array<i32: 0>} : vector<16x128xi32>
    %c0_i32 = arith.constant 0 : i32
    %28 = vector.broadcast %c0_i32 : i32 to vector<16x128xi32>
    %29 = arith.cmpi eq, %27, %28 : vector<16x128xi32>
    %c1_i32 = arith.constant 1 : i32
    %30 = tpu.dynamic_rotate %20 by %c1_i32 dim 0 : vector<16x128xf32>, i32 -> vector<16x128xf32>
    %cst_23 = arith.constant 0.000000e+00 : f32
    %31 = vector.broadcast %cst_23 : f32 to vector<16x128xf32>
    %32 = arith.select %29, %31, %30 : vector<16x128xi1>, vector<16x128xf32>
    %c15_i32 = arith.constant 15 : i32
    %33 = vector.broadcast %c15_i32 : i32 to vector<16x128xi32>
    %34 = arith.cmpi eq, %27, %33 : vector<16x128xi32>
    %c15_i32_24 = arith.constant 15 : i32
    %35 = tpu.dynamic_rotate %26 by %c15_i32_24 dim 0 : vector<16x128xf32>, i32 -> vector<16x128xf32>
    %cst_25 = arith.constant 0.000000e+00 : f32
    %36 = vector.broadcast %cst_25 : f32 to vector<16x128xf32>
    %37 = arith.select %34, %36, %35 : vector<16x128xi1>, vector<16x128xf32>
    %38 = arith.addf %32, %23 : vector<16x128xf32>
    %39 = arith.addf %38, %37 : vector<16x128xf32>
    %c0_26 = arith.constant 0 : index
    %c0_27 = arith.constant 0 : index
    %40 = vector.load %arg6[%c0_26, %c0_27] : memref<1x128xf32, #tpu.memory_space<vmem>>, vector<1x128xf32>
    %41 = vector.broadcast %40 : vector<1x128xf32> to vector<16x128xf32>
    %42 = arith.addf %39, %41 : vector<16x128xf32>
    %cst_28 = arith.constant 0.000000e+00 : f32
    %43 = vector.broadcast %cst_28 : f32 to vector<16x128xf32>
    %44 = arith.cmpf oge, %42, %43 : vector<16x128xf32>
    %cst_29 = arith.constant 2.000000e-01 : f32
    %45 = vector.broadcast %cst_29 : f32 to vector<16x128xf32>
    %46 = arith.mulf %45, %42 : vector<16x128xf32>
    %47 = arith.select %44, %42, %46 : vector<16x128xi1>, vector<16x128xf32>
    %48 = vector.broadcast %15 : vector<1x128xf32> to vector<16x128xf32>
    %49 = arith.mulf %47, %48 : vector<16x128xf32>
    %50 = arith.negf %49 : vector<16x128xf32>
    %51 = math.exp %50 : vector<16x128xf32>
    %cst_30 = arith.constant 1.000000e+00 : f32
    %52 = vector.broadcast %cst_30 : f32 to vector<16x128xf32>
    %53 = arith.addf %52, %51 : vector<16x128xf32>
    %54 = arith.divf %52, %53 : vector<16x128xf32>
    %55 = arith.mulf %54, %1 : vector<16x128xf32>
    %c0_31 = arith.constant 0 : index
    %c0_32 = arith.constant 0 : index
    %c0_33 = arith.constant 0 : index
    %56 = vector.load %arg14[%c0_31, %c0_32, %c0_33] : memref<1x16x128xf32, #tpu.memory_space<vmem>>, vector<1x16x128xf32>
    %57 = vector.shape_cast %56 : vector<1x16x128xf32> to vector<16x128xf32>
    %58 = vector.shape_cast %55 : vector<16x128xf32> to vector<1x16x128xf32>
    tpu.vector_store %arg14[%c0_31, %c0_32, %c0_33], %58 {strides = array<i32>} : memref<1x16x128xf32, #tpu.memory_space<vmem>>, vector<1x16x128xf32>,
    %59 = arith.truncf %55 : vector<16x128xf32> to vector<16x128xbf16>
    %c0_34 = arith.constant 0 : index
    %c0_35 = arith.constant 0 : index
    %c0_36 = arith.constant 0 : index
    %60 = vector.load %arg7[%c0_34, %c0_35, %c0_36] : memref<3x128x512xbf16, #tpu.memory_space<vmem>>, vector<1x128x512xbf16>
    %61 = vector.shape_cast %60 : vector<1x128x512xbf16> to vector<128x512xbf16>
    %cst_37 = arith.constant dense<0.000000e+00> : vector<16x512xf32>
    %62 = tpu.matmul %59, %61, %cst_37 {dimension_numbers = #tpu.dot_dimension_numbers<[1], [0], [0], [1], [0, 0, 1, 1], [], []>} : vector<16x128xbf16>, vector<128x512xbf16>, vector<16x512xf32> -> vector<16x512xf32>
    %c1_38 = arith.constant 1 : index
    %c0_39 = arith.constant 0 : index
    %c0_40 = arith.constant 0 : index
    %63 = vector.load %arg7[%c1_38, %c0_39, %c0_40] : memref<3x128x512xbf16, #tpu.memory_space<vmem>>, vector<1x128x512xbf16>
    %64 = vector.shape_cast %63 : vector<1x128x512xbf16> to vector<128x512xbf16>
    %cst_41 = arith.constant dense<0.000000e+00> : vector<16x512xf32>
    %65 = tpu.matmul %59, %64, %cst_41 {dimension_numbers = #tpu.dot_dimension_numbers<[1], [0], [0], [1], [0, 0, 1, 1], [], []>} : vector<16x128xbf16>, vector<128x512xbf16>, vector<16x512xf32> -> vector<16x512xf32>
    %c2_42 = arith.constant 2 : index
    %c0_43 = arith.constant 0 : index
    %c0_44 = arith.constant 0 : index
    %66 = vector.load %arg7[%c2_42, %c0_43, %c0_44] : memref<3x128x512xbf16, #tpu.memory_space<vmem>>, vector<1x128x512xbf16>
    %67 = vector.shape_cast %66 : vector<1x128x512xbf16> to vector<128x512xbf16>
    %cst_45 = arith.constant dense<0.000000e+00> : vector<16x512xf32>
    %68 = tpu.matmul %59, %67, %cst_45 {dimension_numbers = #tpu.dot_dimension_numbers<[1], [0], [0], [1], [0, 0, 1, 1], [], []>} : vector<16x128xbf16>, vector<128x512xbf16>, vector<16x512xf32> -> vector<16x512xf32>
    %69 = tpu.iota {dimensions = array<i32: 0>} : vector<16x512xi32>
    %c0_i32_46 = arith.constant 0 : i32
    %70 = vector.broadcast %c0_i32_46 : i32 to vector<16x512xi32>
    %71 = arith.cmpi eq, %69, %70 : vector<16x512xi32>
    %c1_i32_47 = arith.constant 1 : i32
    %72 = tpu.dynamic_rotate %62 by %c1_i32_47 dim 0 : vector<16x512xf32>, i32 -> vector<16x512xf32>
    %cst_48 = arith.constant 0.000000e+00 : f32
    %73 = vector.broadcast %cst_48 : f32 to vector<16x512xf32>
    %74 = arith.select %71, %73, %72 : vector<16x512xi1>, vector<16x512xf32>
    %c15_i32_49 = arith.constant 15 : i32
    %75 = vector.broadcast %c15_i32_49 : i32 to vector<16x512xi32>
    %76 = arith.cmpi eq, %69, %75 : vector<16x512xi32>
    %c15_i32_50 = arith.constant 15 : i32
    %77 = tpu.dynamic_rotate %68 by %c15_i32_50 dim 0 : vector<16x512xf32>, i32 -> vector<16x512xf32>
    %cst_51 = arith.constant 0.000000e+00 : f32
    %78 = vector.broadcast %cst_51 : f32 to vector<16x512xf32>
    %79 = arith.select %76, %78, %77 : vector<16x512xi1>, vector<16x512xf32>
    %80 = arith.addf %74, %65 : vector<16x512xf32>
    %81 = arith.addf %80, %79 : vector<16x512xf32>
    %c0_52 = arith.constant 0 : index
    %c0_53 = arith.constant 0 : index
    %82 = vector.load %arg8[%c0_52, %c0_53] : memref<1x512xf32, #tpu.memory_space<vmem>>, vector<1x512xf32>
    %83 = vector.broadcast %82 : vector<1x512xf32> to vector<16x512xf32>
    %84 = arith.addf %81, %83 : vector<16x512xf32>
    %cst_54 = arith.constant 0.000000e+00 : f32
    %85 = vector.broadcast %cst_54 : f32 to vector<16x512xf32>
    %86 = arith.cmpf oge, %84, %85 : vector<16x512xf32>
    %cst_55 = arith.constant 2.000000e-01 : f32
    %87 = vector.broadcast %cst_55 : f32 to vector<16x512xf32>
    %88 = arith.mulf %87, %84 : vector<16x512xf32>
    %89 = arith.select %86, %84, %88 : vector<16x512xi1>, vector<16x512xf32>
    %90 = arith.truncf %89 : vector<16x512xf32> to vector<16x512xbf16>
    %c0_56 = arith.constant 0 : index
    %c0_57 = arith.constant 0 : index
    %c0_58 = arith.constant 0 : index
    %91 = vector.load %arg9[%c0_56, %c0_57, %c0_58] : memref<3x512x512xbf16, #tpu.memory_space<vmem>>, vector<1x512x512xbf16>
    %92 = vector.shape_cast %91 : vector<1x512x512xbf16> to vector<512x512xbf16>
    %cst_59 = arith.constant dense<0.000000e+00> : vector<16x512xf32>
    %93 = tpu.matmul %90, %92, %cst_59 {dimension_numbers = #tpu.dot_dimension_numbers<[1], [0], [0], [1], [0, 0, 1, 1], [], []>} : vector<16x512xbf16>, vector<512x512xbf16>, vector<16x512xf32> -> vector<16x512xf32>
    %c1_60 = arith.constant 1 : index
    %c0_61 = arith.constant 0 : index
    %c0_62 = arith.constant 0 : index
    %94 = vector.load %arg9[%c1_60, %c0_61, %c0_62] : memref<3x512x512xbf16, #tpu.memory_space<vmem>>, vector<1x512x512xbf16>
    %95 = vector.shape_cast %94 : vector<1x512x512xbf16> to vector<512x512xbf16>
    %cst_63 = arith.constant dense<0.000000e+00> : vector<16x512xf32>
    %96 = tpu.matmul %90, %95, %cst_63 {dimension_numbers = #tpu.dot_dimension_numbers<[1], [0], [0], [1], [0, 0, 1, 1], [], []>} : vector<16x512xbf16>, vector<512x512xbf16>, vector<16x512xf32> -> vector<16x512xf32>
    %c2_64 = arith.constant 2 : index
    %c0_65 = arith.constant 0 : index
    %c0_66 = arith.constant 0 : index
    %97 = vector.load %arg9[%c2_64, %c0_65, %c0_66] : memref<3x512x512xbf16, #tpu.memory_space<vmem>>, vector<1x512x512xbf16>
    %98 = vector.shape_cast %97 : vector<1x512x512xbf16> to vector<512x512xbf16>
    %cst_67 = arith.constant dense<0.000000e+00> : vector<16x512xf32>
    %99 = tpu.matmul %90, %98, %cst_67 {dimension_numbers = #tpu.dot_dimension_numbers<[1], [0], [0], [1], [0, 0, 1, 1], [], []>} : vector<16x512xbf16>, vector<512x512xbf16>, vector<16x512xf32> -> vector<16x512xf32>
    %100 = tpu.iota {dimensions = array<i32: 0>} : vector<16x512xi32>
    %c0_i32_68 = arith.constant 0 : i32
    %101 = vector.broadcast %c0_i32_68 : i32 to vector<16x512xi32>
    %102 = arith.cmpi eq, %100, %101 : vector<16x512xi32>
    %c1_i32_69 = arith.constant 1 : i32
    %103 = tpu.dynamic_rotate %93 by %c1_i32_69 dim 0 : vector<16x512xf32>, i32 -> vector<16x512xf32>
    %cst_70 = arith.constant 0.000000e+00 : f32
    %104 = vector.broadcast %cst_70 : f32 to vector<16x512xf32>
    %105 = arith.select %102, %104, %103 : vector<16x512xi1>, vector<16x512xf32>
    %c15_i32_71 = arith.constant 15 : i32
    %106 = vector.broadcast %c15_i32_71 : i32 to vector<16x512xi32>
    %107 = arith.cmpi eq, %100, %106 : vector<16x512xi32>
    %c15_i32_72 = arith.constant 15 : i32
    %108 = tpu.dynamic_rotate %99 by %c15_i32_72 dim 0 : vector<16x512xf32>, i32 -> vector<16x512xf32>
    %cst_73 = arith.constant 0.000000e+00 : f32
    %109 = vector.broadcast %cst_73 : f32 to vector<16x512xf32>
    %110 = arith.select %107, %109, %108 : vector<16x512xi1>, vector<16x512xf32>
    %111 = arith.addf %105, %96 : vector<16x512xf32>
    %112 = arith.addf %111, %110 : vector<16x512xf32>
    %c0_74 = arith.constant 0 : index
    %c0_75 = arith.constant 0 : index
    %113 = vector.load %arg10[%c0_74, %c0_75] : memref<1x512xf32, #tpu.memory_space<vmem>>, vector<1x512xf32>
    %114 = vector.broadcast %113 : vector<1x512xf32> to vector<16x512xf32>
    %115 = arith.addf %112, %114 : vector<16x512xf32>
    %cst_76 = arith.constant 0.000000e+00 : f32
    %116 = vector.broadcast %cst_76 : f32 to vector<16x512xf32>
    %117 = arith.cmpf oge, %115, %116 : vector<16x512xf32>
    %cst_77 = arith.constant 2.000000e-01 : f32
    %118 = vector.broadcast %cst_77 : f32 to vector<16x512xf32>
    %119 = arith.mulf %118, %115 : vector<16x512xf32>
    %120 = arith.select %117, %115, %119 : vector<16x512xi1>, vector<16x512xf32>
    %121 = arith.truncf %120 : vector<16x512xf32> to vector<16x512xbf16>
    %c0_78 = arith.constant 0 : index
    %c0_79 = arith.constant 0 : index
    %122 = vector.load %arg11[%c0_78, %c0_79] : memref<512x1xbf16, #tpu.memory_space<vmem>>, vector<512x1xbf16>
    %cst_80 = arith.constant dense<0.000000e+00> : vector<16x1xf32>
    %123 = tpu.matmul %121, %122, %cst_80 {dimension_numbers = #tpu.dot_dimension_numbers<[1], [0], [0], [1], [0, 0, 1, 1], [], []>} : vector<16x512xbf16>, vector<512x1xbf16>, vector<16x1xf32> -> vector<16x1xf32>
    %c0_81 = arith.constant 0 : index
    %c0_82 = arith.constant 0 : index
    %124 = vector.load %arg12[%c0_81, %c0_82] : memref<1x1xf32, #tpu.memory_space<vmem>>, vector<1x1xf32>
    %125 = vector.broadcast %124 : vector<1x1xf32> to vector<16x1xf32>
    %126 = arith.addf %123, %125 : vector<16x1xf32>
    %127 = arith.negf %126 : vector<16x1xf32>
    %128 = math.exp %127 : vector<16x1xf32>
    %cst_83 = arith.constant 1.000000e+00 : f32
    %129 = vector.broadcast %cst_83 : f32 to vector<16x1xf32>
    %130 = arith.addf %129, %128 : vector<16x1xf32>
    %131 = arith.divf %129, %130 : vector<16x1xf32>
    %c0_84 = arith.constant 0 : index
    %c0_85 = arith.constant 0 : index
    %c0_86 = arith.constant 0 : index
    %132 = vector.load %arg13[%c0_84, %c0_85, %c0_86] : memref<1x16x1xf32, #tpu.memory_space<vmem>>, vector<1x16x1xf32>
    %133 = vector.shape_cast %132 : vector<1x16x1xf32> to vector<16x1xf32>
    %134 = vector.shape_cast %131 : vector<16x1xf32> to vector<1x16x1xf32>
    tpu.vector_store %arg13[%c0_84, %c0_85, %c0_86], %134 {strides = array<i32>} : memref<1x16x1xf32, #tpu.memory_space<vmem>>, vector<1x16x1xf32>,
    return
  }
  func.func @transform_0(%arg0: i32) -> (i32, i32, i32) {
    %c0_i32 = arith.constant 0 : i32
    %c0_i32_0 = arith.constant 0 : i32
    %c0_i32_1 = arith.constant 0 : i32
    return %arg0, %c0_i32, %c0_i32_0 : i32, i32, i32
  }
  func.func @transform_1(%arg0: i32) -> (i32, i32, i32) {
    %c0_i32 = arith.constant 0 : i32
    %c0_i32_0 = arith.constant 0 : i32
    %c0_i32_1 = arith.constant 0 : i32
    return %arg0, %c0_i32, %c0_i32_0 : i32, i32, i32
  }
  func.func @transform_2(%arg0: i32) -> (i32, i32) {
    %c0_i32 = arith.constant 0 : i32
    %c0_i32_0 = arith.constant 0 : i32
    %c0_i32_1 = arith.constant 0 : i32
    return %c0_i32, %c0_i32_0 : i32, i32
  }
  func.func @transform_3(%arg0: i32) -> (i32, i32) {
    %c0_i32 = arith.constant 0 : i32
    %c0_i32_0 = arith.constant 0 : i32
    %c0_i32_1 = arith.constant 0 : i32
    return %c0_i32, %c0_i32_0 : i32, i32
  }
  func.func @transform_4(%arg0: i32) -> (i32, i32, i32) {
    %c0_i32 = arith.constant 0 : i32
    %c0_i32_0 = arith.constant 0 : i32
    %c0_i32_1 = arith.constant 0 : i32
    %c0_i32_2 = arith.constant 0 : i32
    return %c0_i32, %c0_i32_0, %c0_i32_1 : i32, i32, i32
  }
  func.func @transform_5(%arg0: i32) -> (i32, i32) {
    %c0_i32 = arith.constant 0 : i32
    %c0_i32_0 = arith.constant 0 : i32
    %c0_i32_1 = arith.constant 0 : i32
    return %c0_i32, %c0_i32_0 : i32, i32
  }
  func.func @transform_6(%arg0: i32) -> (i32, i32, i32) {
    %c0_i32 = arith.constant 0 : i32
    %c0_i32_0 = arith.constant 0 : i32
    %c0_i32_1 = arith.constant 0 : i32
    %c0_i32_2 = arith.constant 0 : i32
    return %c0_i32, %c0_i32_0, %c0_i32_1 : i32, i32, i32
  }
  func.func @transform_7(%arg0: i32) -> (i32, i32) {
    %c0_i32 = arith.constant 0 : i32
    %c0_i32_0 = arith.constant 0 : i32
    %c0_i32_1 = arith.constant 0 : i32
    return %c0_i32, %c0_i32_0 : i32, i32
  }
  func.func @transform_8(%arg0: i32) -> (i32, i32, i32) {
    %c0_i32 = arith.constant 0 : i32
    %c0_i32_0 = arith.constant 0 : i32
    %c0_i32_1 = arith.constant 0 : i32
    %c0_i32_2 = arith.constant 0 : i32
    return %c0_i32, %c0_i32_0, %c0_i32_1 : i32, i32, i32
  }
  func.func @transform_9(%arg0: i32) -> (i32, i32) {
    %c0_i32 = arith.constant 0 : i32
    %c0_i32_0 = arith.constant 0 : i32
    %c0_i32_1 = arith.constant 0 : i32
    return %c0_i32, %c0_i32_0 : i32, i32
  }
  func.func @transform_10(%arg0: i32) -> (i32, i32) {
    %c0_i32 = arith.constant 0 : i32
    %c0_i32_0 = arith.constant 0 : i32
    %c0_i32_1 = arith.constant 0 : i32
    return %c0_i32, %c0_i32_0 : i32, i32
  }
  func.func @transform_11(%arg0: i32) -> (i32, i32) {
    %c0_i32 = arith.constant 0 : i32
    %c0_i32_0 = arith.constant 0 : i32
    %c0_i32_1 = arith.constant 0 : i32
    return %c0_i32, %c0_i32_0 : i32, i32
  }
  func.func @transform_12(%arg0: i32) -> (i32, i32, i32) {
    %c0_i32 = arith.constant 0 : i32
    %c0_i32_0 = arith.constant 0 : i32
    %c0_i32_1 = arith.constant 0 : i32
    return %arg0, %c0_i32, %c0_i32_0 : i32, i32, i32
  }
  func.func @transform_13(%arg0: i32) -> (i32, i32, i32) {
    %c0_i32 = arith.constant 0 : i32
    %c0_i32_0 = arith.constant 0 : i32
    %c0_i32_1 = arith.constant 0 : i32
    return %arg0, %c0_i32, %c0_i32_0 : i32, i32, i32
  }
}

</mosaic_0001>

<llo_original>
// kernel: tpu_custom_call.1
$region0: #{tpu_custom_call.1}
  #allocation0 [shape = 'u32[]', space=smem, size = 0x4, offset = 0x4, fixed_abs, tag = 'smem constant byte address 0x4 - core index']
  #allocation1 [shape = 'u32[72,128]{1,0:T(1,128)}', space=vmem, size = 0x9000, scoped, tag = 'internal scratch']
  #allocation2 [shape = 'f32[1,1]{1,0:T(1,128)S(1)}', space=vmem, size = 0x200, scoped, tag = 'scoped memory for tpu_custom_call.1']
  %s0 = inlined_call_operand.hbm [shape: f32[2,16,128], index: 0, kind: input, shape index: {}]
  %s1 = inlined_call_operand.hbm [shape: bf16[2,16,128], index: 1, kind: input, shape index: {}]
  %s2 = inlined_call_operand.hbm [shape: bf16[128,128], index: 2, kind: input, shape index: {}]
  %s3 = inlined_call_operand.hbm [shape: f32[1,128], index: 3, kind: input, shape index: {}]
  %s4 = inlined_call_operand.hbm [shape: bf16[3,128,128], index: 4, kind: input, shape index: {}]
  %s5 = inlined_call_operand.hbm [shape: f32[1,128], index: 5, kind: input, shape index: {}]
  %s6 = inlined_call_operand.hbm [shape: bf16[3,128,512], index: 6, kind: input, shape index: {}]
  %s7 = inlined_call_operand.hbm [shape: f32[1,512], index: 7, kind: input, shape index: {}]
  %s8 = inlined_call_operand.hbm [shape: bf16[3,512,512], index: 8, kind: input, shape index: {}]
  %s9 = inlined_call_operand.hbm [shape: f32[1,512], index: 9, kind: input, shape index: {}]
  %s10 = inlined_call_operand.vmem [shape: bf16[512,1], index: 10, kind: input, shape index: {}]
  %s11 = inlined_call_operand.<no memory space> [shape: f32[1,1], index: 11, kind: input, shape index: {}]
  %s12 = inlined_call_operand.vmem [shape: f32[2,16,1], index: 12, kind: output, shape index: {0}]
  %s13 = inlined_call_operand.hbm [shape: f32[2,16,128], index: 13, kind: output, shape index: {1}]
  %14 = xla_tuple %s12, %s13
  %s15 = sld [smem:[#allocation0]]
  $region129: #{tpu_custom_call.1} parent=0
    _
  %s17 = ssub.s32 1, %s15
  %s18 = scalar_select 0, %s17, %s15
  %v19 = vstv %s11
  %20 = vst [vmem:[#allocation2] sm:$0x1] %v19
  $region1: #{tpu_custom_call.1} parent=0
    #allocation3 [shape = 'u8[16384]{0}', space=vmem, size = 0x4000, scoped, tag = 'input window, operand 0']
    #allocation4 [shape = 's32[2]{0}', space=sflag, size = 0x8, scoped, tag = 'scoped memory for tpu_custom_call.1']
    #allocation5 [shape = 's32[2]{0}', space=sflag, size = 0x8, scoped, tag = 'scoped memory for tpu_custom_call.1']
    #allocation6 [shape = 'u8[8192]{0}', space=vmem, size = 0x2000, scoped, tag = 'input window, operand 1']
    #allocation7 [shape = 's32[2]{0}', space=sflag, size = 0x8, scoped, tag = 'scoped memory for tpu_custom_call.1']
    #allocation8 [shape = 'u8[32768]{0}', space=vmem, size = 0x8000, scoped, tag = 'input window, operand 2, single buffered']
    #allocation9 [shape = 'u8[512]{0}', space=vmem, size = 0x400, scoped, tag = 'input window, operand 3, single buffered']
    #allocation10 [shape = 's32[1]{0}', space=sflag, size = 0x4, scoped, tag = 'scoped memory for tpu_custom_call.1']
    #allocation11 [shape = 'u8[98304]{0}', space=vmem, size = 0x18000, scoped, tag = 'input window, operand 4, single buffered']
    #allocation12 [shape = 'u8[512]{0}', space=vmem, size = 0x400, scoped, tag = 'input window, operand 5, single buffered']
    #allocation13 [shape = 's32[1]{0}', space=sflag, size = 0x4, scoped, tag = 'scoped memory for tpu_custom_call.1']
    #allocation14 [shape = 'u8[393216]{0}', space=vmem, size = 0x60000, scoped, tag = 'input window, operand 6, single buffered']
    #allocation15 [shape = 'u8[2048]{0}', space=vmem, size = 0x800, scoped, tag = 'input window, operand 7, single buffered']
    #allocation16 [shape = 's32[1]{0}', space=sflag, size = 0x4, scoped, tag = 'scoped memory for tpu_custom_call.1']
    #allocation17 [shape = 'u8[1572864]{0}', space=vmem, size = 0x180000, scoped, tag = 'input window, operand 8, single buffered']
    #allocation18 [shape = 'u8[2048]{0}', space=vmem, size = 0x800, scoped, tag = 'input window, operand 9, single buffered']
    #allocation19 [shape = 's32[1]{0}', space=sflag, size = 0x4, scoped, tag = 'scoped memory for tpu_custom_call.1']
    #allocation20 [shape = 'u8[16384]{0}', space=vmem, size = 0x4000, scoped, tag = 'output window, operand 1']
    %21 = vsyncpa [#allocation4], 0
    %s22 = scalar_lea.sflag [#allocation4], 1
    %23 = vsyncpa %s22, 0
    %24 = vsyncpa [#allocation7], 0
    %s25 = scalar_lea.sflag [#allocation7], 1
    %26 = vsyncpa %s25, 0
    %27 = vsyncpa [#allocation10], 0
    %28 = vsyncpa [#allocation13], 0
    %29 = vsyncpa [#allocation16], 0
    %30 = vsyncpa [#allocation19], 0
    %31 = vsyncpa [#allocation5], 0
    %s32 = scalar_lea.sflag [#allocation5], 1
    %33 = vsyncpa %s32, 0
    loop: start=0, step=1, limit=4
    $region2: #{tpu_custom_call.1} parent=1 // loop_pre_header
      _
    $region3: #{tpu_custom_call.1} parent=1 // loop_header
      %s35 = sphi 0, %s39
      %p36 = scmp.ge.s32.totalorder %s35, 4
      %s45 = sphi 0, %s47
      %s48 = sphi 0, %s45
      %s49 = sphi 0, %s48
      %s65 = sphi 0, %s49
      %s71 = sphi 0, %s73
      %s74 = sphi 0, %s71
      %s75 = sphi 0, %s74
      %s91 = sphi 0, %s75
      %s95 = sphi 0, %s95
      %s97 = sphi 0, %s95
      %s98 = sphi 0, %s97
      %s112 = sphi 0, %s98
      %s116 = sphi 0, %s116
      %s118 = sphi 0, %s116
      %s119 = sphi 0, %s118
      %s133 = sphi 0, %s119
      %s137 = sphi 0, %s137
      %s139 = sphi 0, %s137
      %s140 = sphi 0, %s139
      %s154 = sphi 0, %s140
      %s158 = sphi 0, %s158
      %s160 = sphi 0, %s158
      %s161 = sphi 0, %s160
      %s175 = sphi 0, %s161
      %s179 = sphi 0, %s179
      %s181 = sphi 0, %s179
      %s182 = sphi 0, %s181
      %s196 = sphi 0, %s182
      %s200 = sphi 0, %s200
      %s202 = sphi 0, %s200
      %s203 = sphi 0, %s202
      %s217 = sphi 0, %s203
      %s221 = sphi 0, %s221
      %s223 = sphi 0, %s221
      %s224 = sphi 0, %s223
      %s238 = sphi 0, %s224
      %s242 = sphi 0, %s242
      %s244 = sphi 0, %s242
      %s245 = sphi 0, %s244
      %s259 = sphi 0, %s245
      %s263 = sphi 0, %s263
      %s265 = sphi 0, %s263
      %s266 = sphi 0, %s265
      %s280 = sphi 0, %s266
      %s284 = sphi 0, %s284
      %s286 = sphi 0, %s284
      %s287 = sphi 0, %s286
      %s301 = sphi 0, %s287
      %s307 = sphi 0, %s309
      %s310 = sphi 0, %s307
      %s311 = sphi 0, %s310
      %s327 = sphi 0, %s311
      %s333 = sphi 0, %s335
      %s336 = sphi 0, %s333
      %s337 = sphi 0, %s336
      %s353 = sphi 0, %s337
    $region4: #{tpu_custom_call.1} parent=1 // loop_header_branch
      %38 = sbr.rel (%p36) target = $region8
    $region5: #{tpu_custom_call.1} parent=1 // loop_body
      %s40 = ssub.s32 %s35, 1
      %s41 = ssub.s32 %s35, 2
      %s42 = sadd.s32 %s35, 1
      %s43 = ssub.s32 %s35, %s42
      %p44 = scmp.eq.s32.totalorder %s43, 0
      %s46 = sadd.s32 %s45, 1
      %s47 = scalar_select %p44, %s45, %s46
      %p50 = pneg %p44
      %p51 = scmp.eq.s32.totalorder %s35, 1
      %p52 = por %p50, %p51
      %p53 = scmp.ne.s32.totalorder %s45, %s48
      %p54 = scmp.eq.s32.totalorder %s35, 0
      %p55 = por %p53, %p54
      %p56 = scmp.ne.s32.totalorder %s45, %s48
      %p57 = scmp.eq.s32.totalorder %s40, 1
      %p58 = por %p56, %p57
      %p59 = scmp.ne.s32.totalorder %s48, %s49
      %p60 = scmp.eq.s32.totalorder %s40, 0
      %p61 = por %p59, %p60
      %p62 = scmp.ne.s32.totalorder %s48, %s49
      %p63 = scmp.eq.s32.totalorder %s41, 1
      %p64 = por %p62, %p63
      %p66 = scmp.ne.s32.totalorder %s49, %s65
      %p67 = scmp.eq.s32.totalorder %s41, 0
      %p68 = por %p66, %p67
      %s69 = ssub.s32 %s35, %s42
      %p70 = scmp.eq.s32.totalorder %s69, 0
      %s72 = sadd.s32 %s71, 1
      %s73 = scalar_select %p70, %s71, %s72
      %p76 = pneg %p70
      %p77 = scmp.eq.s32.totalorder %s35, 1
      %p78 = por %p76, %p77
      %p79 = scmp.ne.s32.totalorder %s71, %s74
      %p80 = scmp.eq.s32.totalorder %s35, 0
      %p81 = por %p79, %p80
      %p82 = scmp.ne.s32.totalorder %s71, %s74
      %p83 = scmp.eq.s32.totalorder %s40, 1
      %p84 = por %p82, %p83
      %p85 = scmp.ne.s32.totalorder %s74, %s75
      %p86 = scmp.eq.s32.totalorder %s40, 0
      %p87 = por %p85, %p86
      %p88 = scmp.ne.s32.totalorder %s74, %s75
      %p89 = scmp.eq.s32.totalorder %s41, 1
      %p90 = por %p88, %p89
      %p92 = scmp.ne.s32.totalorder %s75, %s91
      %p93 = scmp.eq.s32.totalorder %s41, 0
      %p94 = por %p92, %p93
      %s96 = sadd.s32 %s95, 1
      %p99 = scmp.eq.s32.totalorder %s35, 1
      %p100 = scmp.ne.s32.totalorder %s95, %s97
      %p101 = scmp.eq.s32.totalorder %s35, 0
      %p102 = por %p100, %p101
      %p103 = scmp.ne.s32.totalorder %s95, %s97
      %p104 = scmp.eq.s32.totalorder %s40, 1
      %p105 = por %p103, %p104
      %p106 = scmp.ne.s32.totalorder %s97, %s98
      %p107 = scmp.eq.s32.totalorder %s40, 0
      %p108 = por %p106, %p107
      %p109 = scmp.ne.s32.totalorder %s97, %s98
      %p110 = scmp.eq.s32.totalorder %s41, 1
      %p111 = por %p109, %p110
      %p113 = scmp.ne.s32.totalorder %s98, %s112
      %p114 = scmp.eq.s32.totalorder %s41, 0
      %p115 = por %p113, %p114
      %s117 = sadd.s32 %s116, 1
      %p120 = scmp.eq.s32.totalorder %s35, 1
      %p121 = scmp.ne.s32.totalorder %s116, %s118
      %p122 = scmp.eq.s32.totalorder %s35, 0
      %p123 = por %p121, %p122
      %p124 = scmp.ne.s32.totalorder %s116, %s118
      %p125 = scmp.eq.s32.totalorder %s40, 1
      %p126 = por %p124, %p125
      %p127 = scmp.ne.s32.totalorder %s118, %s119
      %p128 = scmp.eq.s32.totalorder %s40, 0
      %p129 = por %p127, %p128
      %p130 = scmp.ne.s32.totalorder %s118, %s119
      %p131 = scmp.eq.s32.totalorder %s41, 1
      %p132 = por %p130, %p131
      %p134 = scmp.ne.s32.totalorder %s119, %s133
      %p135 = scmp.eq.s32.totalorder %s41, 0
      %p136 = por %p134, %p135
      %s138 = sadd.s32 %s137, 1
      %p141 = scmp.eq.s32.totalorder %s35, 1
      %p142 = scmp.ne.s32.totalorder %s137, %s139
      %p143 = scmp.eq.s32.totalorder %s35, 0
      %p144 = por %p142, %p143
      %p145 = scmp.ne.s32.totalorder %s137, %s139
      %p146 = scmp.eq.s32.totalorder %s40, 1
      %p147 = por %p145, %p146
      %p148 = scmp.ne.s32.totalorder %s139, %s140
      %p149 = scmp.eq.s32.totalorder %s40, 0
      %p150 = por %p148, %p149
      %p151 = scmp.ne.s32.totalorder %s139, %s140
      %p152 = scmp.eq.s32.totalorder %s41, 1
      %p153 = por %p151, %p152
      %p155 = scmp.ne.s32.totalorder %s140, %s154
      %p156 = scmp.eq.s32.totalorder %s41, 0
      %p157 = por %p155, %p156
      %s159 = sadd.s32 %s158, 1
      %p162 = scmp.eq.s32.totalorder %s35, 1
      %p163 = scmp.ne.s32.totalorder %s158, %s160
      %p164 = scmp.eq.s32.totalorder %s35, 0
      %p165 = por %p163, %p164
      %p166 = scmp.ne.s32.totalorder %s158, %s160
      %p167 = scmp.eq.s32.totalorder %s40, 1
      %p168 = por %p166, %p167
      %p169 = scmp.ne.s32.totalorder %s160, %s161
      %p170 = scmp.eq.s32.totalorder %s40, 0
      %p171 = por %p169, %p170
      %p172 = scmp.ne.s32.totalorder %s160, %s161
      %p173 = scmp.eq.s32.totalorder %s41, 1
      %p174 = por %p172, %p173
      %p176 = scmp.ne.s32.totalorder %s161, %s175
      %p177 = scmp.eq.s32.totalorder %s41, 0
      %p178 = por %p176, %p177
      %s180 = sadd.s32 %s179, 1
      %p183 = scmp.eq.s32.totalorder %s35, 1
      %p184 = scmp.ne.s32.totalorder %s179, %s181
      %p185 = scmp.eq.s32.totalorder %s35, 0
      %p186 = por %p184, %p185
      %p187 = scmp.ne.s32.totalorder %s179, %s181
      %p188 = scmp.eq.s32.totalorder %s40, 1
      %p189 = por %p187, %p188
      %p190 = scmp.ne.s32.totalorder %s181, %s182
      %p191 = scmp.eq.s32.totalorder %s40, 0
      %p192 = por %p190, %p191
      %p193 = scmp.ne.s32.totalorder %s181, %s182
      %p194 = scmp.eq.s32.totalorder %s41, 1
      %p195 = por %p193, %p194
      %p197 = scmp.ne.s32.totalorder %s182, %s196
      %p198 = scmp.eq.s32.totalorder %s41, 0
      %p199 = por %p197, %p198
      %s201 = sadd.s32 %s200, 1
      %p204 = scmp.eq.s32.totalorder %s35, 1
      %p205 = scmp.ne.s32.totalorder %s200, %s202
      %p206 = scmp.eq.s32.totalorder %s35, 0
      %p207 = por %p205, %p206
      %p208 = scmp.ne.s32.totalorder %s200, %s202
      %p209 = scmp.eq.s32.totalorder %s40, 1
      %p210 = por %p208, %p209
      %p211 = scmp.ne.s32.totalorder %s202, %s203
      %p212 = scmp.eq.s32.totalorder %s40, 0
      %p213 = por %p211, %p212
      %p214 = scmp.ne.s32.totalorder %s202, %s203
      %p215 = scmp.eq.s32.totalorder %s41, 1
      %p216 = por %p214, %p215
      %p218 = scmp.ne.s32.totalorder %s203, %s217
      %p219 = scmp.eq.s32.totalorder %s41, 0
      %p220 = por %p218, %p219
      %s222 = sadd.s32 %s221, 1
      %p225 = scmp.eq.s32.totalorder %s35, 1
      %p226 = scmp.ne.s32.totalorder %s221, %s223
      %p227 = scmp.eq.s32.totalorder %s35, 0
      %p228 = por %p226, %p227
      %p229 = scmp.ne.s32.totalorder %s221, %s223
      %p230 = scmp.eq.s32.totalorder %s40, 1
      %p231 = por %p229, %p230
      %p232 = scmp.ne.s32.totalorder %s223, %s224
      %p233 = scmp.eq.s32.totalorder %s40, 0
      %p234 = por %p232, %p233
      %p235 = scmp.ne.s32.totalorder %s223, %s224
      %p236 = scmp.eq.s32.totalorder %s41, 1
      %p237 = por %p235, %p236
      %p239 = scmp.ne.s32.totalorder %s224, %s238
      %p240 = scmp.eq.s32.totalorder %s41, 0
      %p241 = por %p239, %p240
      %s243 = sadd.s32 %s242, 1
      %p246 = scmp.eq.s32.totalorder %s35, 1
      %p247 = scmp.ne.s32.totalorder %s242, %s244
      %p248 = scmp.eq.s32.totalorder %s35, 0
      %p249 = por %p247, %p248
      %p250 = scmp.ne.s32.totalorder %s242, %s244
      %p251 = scmp.eq.s32.totalorder %s40, 1
      %p252 = por %p250, %p251
      %p253 = scmp.ne.s32.totalorder %s244, %s245
      %p254 = scmp.eq.s32.totalorder %s40, 0
      %p255 = por %p253, %p254
      %p256 = scmp.ne.s32.totalorder %s244, %s245
      %p257 = scmp.eq.s32.totalorder %s41, 1
      %p258 = por %p256, %p257
      %p260 = scmp.ne.s32.totalorder %s245, %s259
      %p261 = scmp.eq.s32.totalorder %s41, 0
      %p262 = por %p260, %p261
      %s264 = sadd.s32 %s263, 1
      %p267 = scmp.eq.s32.totalorder %s35, 1
      %p268 = scmp.ne.s32.totalorder %s263, %s265
      %p269 = scmp.eq.s32.totalorder %s35, 0
      %p270 = por %p268, %p269
      %p271 = scmp.ne.s32.totalorder %s263, %s265
      %p272 = scmp.eq.s32.totalorder %s40, 1
      %p273 = por %p271, %p272
      %p274 = scmp.ne.s32.totalorder %s265, %s266
      %p275 = scmp.eq.s32.totalorder %s40, 0
      %p276 = por %p274, %p275
      %p277 = scmp.ne.s32.totalorder %s265, %s266
      %p278 = scmp.eq.s32.totalorder %s41, 1
      %p279 = por %p277, %p278
      %p281 = scmp.ne.s32.totalorder %s266, %s280
      %p282 = scmp.eq.s32.totalorder %s41, 0
      %p283 = por %p281, %p282
      %s285 = sadd.s32 %s284, 1
      %p288 = scmp.eq.s32.totalorder %s35, 1
      %p289 = scmp.ne.s32.totalorder %s284, %s286
      %p290 = scmp.eq.s32.totalorder %s35, 0
      %p291 = por %p289, %p290
      %p292 = scmp.ne.s32.totalorder %s284, %s286
      %p293 = scmp.eq.s32.totalorder %s40, 1
      %p294 = por %p292, %p293
      %p295 = scmp.ne.s32.totalorder %s286, %s287
      %p296 = scmp.eq.s32.totalorder %s40, 0
      %p297 = por %p295, %p296
      %p298 = scmp.ne.s32.totalorder %s286, %s287
      %p299 = scmp.eq.s32.totalorder %s41, 1
      %p300 = por %p298, %p299
      %p302 = scmp.ne.s32.totalorder %s287, %s301
      %p303 = scmp.eq.s32.totalorder %s41, 0
      %p304 = por %p302, %p303
      %s305 = ssub.s32 %s35, %s42
      %p306 = scmp.eq.s32.totalorder %s305, 0
      %s308 = sadd.s32 %s307, 1
      %s309 = scalar_select %p306, %s307, %s308
      %p312 = pneg %p306
      %p313 = scmp.eq.s32.totalorder %s35, 1
      %p314 = por %p312, %p313
      %p315 = scmp.ne.s32.totalorder %s307, %s310
      %p316 = scmp.eq.s32.totalorder %s35, 0
      %p317 = por %p315, %p316
      %p318 = scmp.ne.s32.totalorder %s307, %s310
      %p319 = scmp.eq.s32.totalorder %s40, 1
      %p320 = por %p318, %p319
      %p321 = scmp.ne.s32.totalorder %s310, %s311
      %p322 = scmp.eq.s32.totalorder %s40, 0
      %p323 = por %p321, %p322
      %p324 = scmp.ne.s32.totalorder %s310, %s311
      %p325 = scmp.eq.s32.totalorder %s41, 1
      %p326 = por %p324, %p325
      %p328 = scmp.ne.s32.totalorder %s311, %s327
      %p329 = scmp.eq.s32.totalorder %s41, 0
      %p330 = por %p328, %p329
      %s331 = ssub.s32 %s35, %s42
      %p332 = scmp.eq.s32.totalorder %s331, 0
      %s334 = sadd.s32 %s333, 1
      %s335 = scalar_select %p332, %s333, %s334
      %p338 = pneg %p332
      %p339 = scmp.eq.s32.totalorder %s35, 1
      %p340 = por %p338, %p339
      %p341 = scmp.ne.s32.totalorder %s333, %s336
      %p342 = scmp.eq.s32.totalorder %s35, 0
      %p343 = por %p341, %p342
      %p344 = scmp.ne.s32.totalorder %s333, %s336
      %p345 = scmp.eq.s32.totalorder %s40, 1
      %p346 = por %p344, %p345
      %p347 = scmp.ne.s32.totalorder %s336, %s337
      %p348 = scmp.eq.s32.totalorder %s40, 0
      %p349 = por %p347, %p348
      %p350 = scmp.ne.s32.totalorder %s336, %s337
      %p351 = scmp.eq.s32.totalorder %s41, 1
      %p352 = por %p350, %p351
      %p354 = scmp.ne.s32.totalorder %s337, %s353
      %p355 = scmp.eq.s32.totalorder %s41, 0
      %p356 = por %p354, %p355
      %p357 = scmp.le.s32.totalorder 1, %s35
      %p358 = scmp.lt.s32.totalorder %s35, 3
      %p359 = pnand %p357, %p358
      %p360 = pneg %p359
      // Predicated region
      $region9: #{tpu_custom_call.1} parent=5 // pred_check
        _
      $region10: #{tpu_custom_call.1} parent=5 // pred_check_branch
        %362 = sbr.rel (%p359) target = $region12
      $region11: #{tpu_custom_call.1} parent=5 // pred_region
        %s363 = ssub.s32 %s35, 1
        // Predicated region
        $region13: #{tpu_custom_call.1} parent=11 // pred_check
          %p364 = pneg %p108
        $region14: #{tpu_custom_call.1} parent=11 // pred_check_branch
          %366 = sbr.rel (%p364) target = $region16
        $region15: #{tpu_custom_call.1} parent=11 // pred_region
          %368 = vsyncadd [#allocation7], 0
          %s369 = sshll.u32 %s2, 4
          %s370 = int_to_ptr.hbm [resolvable:$true] %s369
          %s371 = sshll.u32 [#allocation8], 4
          %s372 = int_to_ptr.vmem [resolvable:$true] %s371
          %377 = dma.hbm_to_vmem [thread:$0]  %s370, 1024, %s372, [#allocation7], 64, 64, 4
        $region16: #{tpu_custom_call.1} parent=11 // pred_fallthru
          _
        // Predicated region
        $region17: #{tpu_custom_call.1} parent=11 // pred_check
          %p378 = pneg %p129
        $region18: #{tpu_custom_call.1} parent=11 // pred_check_branch
          %380 = sbr.rel (%p378) target = $region20
        $region19: #{tpu_custom_call.1} parent=11 // pred_region
          %382 = vsyncadd [#allocation10], 0
          %s384 = sshll.u32 %s3, 4
          %s385 = int_to_ptr.hbm [resolvable:$true] %s384
          %s386 = sshll.u32 [#allocation9], 4
          %s387 = int_to_ptr.vmem [resolvable:$true] %s386
          %389 = dma.hbm_to_vmem [thread:$0]  %s385, 16, %s387, [#allocation10]
        $region20: #{tpu_custom_call.1} parent=11 // pred_fallthru
          _
        // Predicated region
        $region21: #{tpu_custom_call.1} parent=11 // pred_check
          %p390 = pneg %p150
        $region22: #{tpu_custom_call.1} parent=11 // pred_check_branch
          %392 = sbr.rel (%p390) target = $region24
        $region23: #{tpu_custom_call.1} parent=11 // pred_region
          %394 = vsyncadd [#allocation10], 0
          %s395 = sshll.u32 %s4, 4
          %s396 = int_to_ptr.hbm [resolvable:$true] %s395
          %s397 = sshll.u32 [#allocation11], 4
          %s398 = int_to_ptr.vmem [resolvable:$true] %s397
          %403 = dma.hbm_to_vmem [thread:$0]  %s396, 3072, %s398, [#allocation10], 64, 64, 4
        $region24: #{tpu_custom_call.1} parent=11 // pred_fallthru
          _
        // Predicated region
        $region25: #{tpu_custom_call.1} parent=11 // pred_check
          %p404 = pneg %p171
        $region26: #{tpu_custom_call.1} parent=11 // pred_check_branch
          %406 = sbr.rel (%p404) target = $region28
        $region27: #{tpu_custom_call.1} parent=11 // pred_region
          %408 = vsyncadd [#allocation13], 0
          %s410 = sshll.u32 %s5, 4
          %s411 = int_to_ptr.hbm [resolvable:$true] %s410
          %s412 = sshll.u32 [#allocation12], 4
          %s413 = int_to_ptr.vmem [resolvable:$true] %s412
          %415 = dma.hbm_to_vmem [thread:$0]  %s411, 16, %s413, [#allocation13]
        $region28: #{tpu_custom_call.1} parent=11 // pred_fallthru
          _
        // Predicated region
        $region29: #{tpu_custom_call.1} parent=11 // pred_check
          %p416 = pneg %p192
        $region30: #{tpu_custom_call.1} parent=11 // pred_check_branch
          %418 = sbr.rel (%p416) target = $region32
        $region31: #{tpu_custom_call.1} parent=11 // pred_region
          %420 = vsyncadd [#allocation13], 0
          %s421 = sshll.u32 %s6, 4
          %s422 = int_to_ptr.hbm [resolvable:$true] %s421
          %s423 = sshll.u32 [#allocation14], 4
          %s424 = int_to_ptr.vmem [resolvable:$true] %s423
          %429 = dma.hbm_to_vmem [thread:$0]  %s422, 12288, %s424, [#allocation13], 256, 256, 16
        $region32: #{tpu_custom_call.1} parent=11 // pred_fallthru
          _
        // Predicated region
        $region33: #{tpu_custom_call.1} parent=11 // pred_check
          %p430 = pneg %p213
        $region34: #{tpu_custom_call.1} parent=11 // pred_check_branch
          %432 = sbr.rel (%p430) target = $region36
        $region35: #{tpu_custom_call.1} parent=11 // pred_region
          %434 = vsyncadd [#allocation16], 0
          %s436 = sshll.u32 %s7, 4
          %s437 = int_to_ptr.hbm [resolvable:$true] %s436
          %s438 = sshll.u32 [#allocation15], 4
          %s439 = int_to_ptr.vmem [resolvable:$true] %s438
          %441 = dma.hbm_to_vmem [thread:$0]  %s437, 64, %s439, [#allocation16]
        $region36: #{tpu_custom_call.1} parent=11 // pred_fallthru
          _
        // Predicated region
        $region37: #{tpu_custom_call.1} parent=11 // pred_check
          %p442 = pneg %p234
        $region38: #{tpu_custom_call.1} parent=11 // pred_check_branch
          %444 = sbr.rel (%p442) target = $region40
        $region39: #{tpu_custom_call.1} parent=11 // pred_region
          %446 = vsyncadd [#allocation16], 0
          %s447 = sshll.u32 %s8, 4
          %s448 = int_to_ptr.hbm [resolvable:$true] %s447
          %s449 = sshll.u32 [#allocation17], 4
          %s450 = int_to_ptr.vmem [resolvable:$true] %s449
          %455 = dma.hbm_to_vmem [thread:$0]  %s448, 49152, %s450, [#allocation16], 256, 256, 16
        $region40: #{tpu_custom_call.1} parent=11 // pred_fallthru
          _
        // Predicated region
        $region41: #{tpu_custom_call.1} parent=11 // pred_check
          %p456 = pneg %p255
        $region42: #{tpu_custom_call.1} parent=11 // pred_check_branch
          %458 = sbr.rel (%p456) target = $region44
        $region43: #{tpu_custom_call.1} parent=11 // pred_region
          %460 = vsyncadd [#allocation19], 0
          %s462 = sshll.u32 %s9, 4
          %s463 = int_to_ptr.hbm [resolvable:$true] %s462
          %s464 = sshll.u32 [#allocation18], 4
          %s465 = int_to_ptr.vmem [resolvable:$true] %s464
          %467 = dma.hbm_to_vmem [thread:$0]  %s463, 64, %s465, [#allocation19]
        $region44: #{tpu_custom_call.1} parent=11 // pred_fallthru
          _
        // Predicated region
        $region45: #{tpu_custom_call.1} parent=11 // pred_check
          %p468 = pneg %p276
        $region46: #{tpu_custom_call.1} parent=11 // pred_check_branch
          %470 = sbr.rel (%p468) target = $region48
        $region47: #{tpu_custom_call.1} parent=11 // pred_region
          _
        $region48: #{tpu_custom_call.1} parent=11 // pred_fallthru
          _
        // Predicated region
        $region49: #{tpu_custom_call.1} parent=11 // pred_check
          %p471 = pneg %p297
        $region50: #{tpu_custom_call.1} parent=11 // pred_check_branch
          %473 = sbr.rel (%p471) target = $region52
        $region51: #{tpu_custom_call.1} parent=11 // pred_region
          _
        $region52: #{tpu_custom_call.1} parent=11 // pred_fallthru
          _
      $region12: #{tpu_custom_call.1} parent=5 // pred_fallthru
        _
      %p474 = scmp.lt.s32.totalorder %s35, 2
      // Predicated region
      $region53: #{tpu_custom_call.1} parent=5 // pred_check
        %p475 = pneg %p474
      $region54: #{tpu_custom_call.1} parent=5 // pred_check_branch
        %477 = sbr.rel (%p475) target = $region56
      $region55: #{tpu_custom_call.1} parent=5 // pred_region
        // Predicated region
        $region57: #{tpu_custom_call.1} parent=55 // pred_check
          %p478 = pneg %p55
        $region58: #{tpu_custom_call.1} parent=55 // pred_check_branch
          %480 = sbr.rel (%p478) target = $region60
        $region59: #{tpu_custom_call.1} parent=55 // pred_region
          %s481 = sand.u32 %s45, 1
          %s482 = scalar_lea.sflag [#allocation4], %s481
          %s483 = sand.u32 %s45, 1
          %s484 = smul.addr %s483, 16
          %s485 = scalar_lea.vmem [#allocation3], %s484
          %487 = vsyncadd %s482, 0
          %s488 = smul.addr %s35, 2
          %s489 = smul.addr %s488, 8
          %s490 = scalar_lea.hbm %s0, %s489
          %s491 = sshll.u32 %s490, 4
          %s492 = int_to_ptr.hbm [resolvable:$true] %s491
          %s493 = sshll.u32 %s485, 4
          %s494 = int_to_ptr.vmem [resolvable:$true] %s493
          %499 = dma.hbm_to_vmem [thread:$0]  %s492, 256, %s494, %s482, 128, 128, 8
        $region60: #{tpu_custom_call.1} parent=55 // pred_fallthru
          _
        // Predicated region
        $region61: #{tpu_custom_call.1} parent=55 // pred_check
          %p500 = pneg %p81
        $region62: #{tpu_custom_call.1} parent=55 // pred_check_branch
          %502 = sbr.rel (%p500) target = $region64
        $region63: #{tpu_custom_call.1} parent=55 // pred_region
          %s503 = sand.u32 %s35, 1
          %s504 = scalar_lea.sflag [#allocation7], %s503
          %s505 = sand.u32 %s71, 1
          %s506 = smul.addr %s505, 8
          %s507 = scalar_lea.vmem [#allocation6], %s506
          %509 = vsyncadd %s504, 0
          %s510 = smul.addr %s35, 2
          %s511 = smul.addr %s510, 4
          %s512 = scalar_lea.hbm %s1, %s511
          %s513 = sshll.u32 %s512, 4
          %s514 = int_to_ptr.hbm [resolvable:$true] %s513
          %s515 = sshll.u32 %s507, 4
          %s516 = int_to_ptr.vmem [resolvable:$true] %s515
          %521 = dma.hbm_to_vmem [thread:$0]  %s514, 128, %s516, %s504, 64, 64, 4
        $region64: #{tpu_custom_call.1} parent=55 // pred_fallthru
          _
      $region56: #{tpu_custom_call.1} parent=5 // pred_fallthru
        _
      %p522 = scmp.le.s32.totalorder 1, %s35
      %p523 = scmp.lt.s32.totalorder %s35, 3
      %p524 = pnand %p522, %p523
      %p525 = pneg %p524
      // Predicated region
      $region65: #{tpu_custom_call.1} parent=5 // pred_check
        _
      $region66: #{tpu_custom_call.1} parent=5 // pred_check_branch
        %527 = sbr.rel (%p524) target = $region68
      $region67: #{tpu_custom_call.1} parent=5 // pred_region
        %s528 = ssub.s32 %s35, 1
        %s529 = sand.u32 %s48, 1
        %s530 = scalar_lea.sflag [#allocation4], %s529
        %s531 = sand.u32 %s48, 1
        %s532 = smul.addr %s531, 16
        %s533 = scalar_lea.vmem [#allocation3], %s532
        // Predicated region
        $region69: #{tpu_custom_call.1} parent=67 // pred_check
          %p534 = pneg %p61
        $region70: #{tpu_custom_call.1} parent=67 // pred_check_branch
          %536 = sbr.rel (%p534) target = $region72
        $region71: #{tpu_custom_call.1} parent=67 // pred_region
          %538 = dma.done %s530, 256
        $region72: #{tpu_custom_call.1} parent=67 // pred_fallthru
          _
        %s539 = sand.u32 %s40, 1
        %s540 = scalar_lea.sflag [#allocation7], %s539
        %s541 = sand.u32 %s74, 1
        %s542 = smul.addr %s541, 8
        %s543 = scalar_lea.vmem [#allocation6], %s542
        // Predicated region
        $region73: #{tpu_custom_call.1} parent=67 // pred_check
          %p544 = pneg %p87
        $region74: #{tpu_custom_call.1} parent=67 // pred_check_branch
          %546 = sbr.rel (%p544) target = $region76
        $region75: #{tpu_custom_call.1} parent=67 // pred_region
          %548 = dma.done %s540, 128
        $region76: #{tpu_custom_call.1} parent=67 // pred_fallthru
          _
        // Predicated region
        $region77: #{tpu_custom_call.1} parent=67 // pred_check
          %p549 = pneg %p108
        $region78: #{tpu_custom_call.1} parent=67 // pred_check_branch
          %551 = sbr.rel (%p549) target = $region80
        $region79: #{tpu_custom_call.1} parent=67 // pred_region
          %553 = dma.done [#allocation7], 1024
        $region80: #{tpu_custom_call.1} parent=67 // pred_fallthru
          _
        // Predicated region
        $region81: #{tpu_custom_call.1} parent=67 // pred_check
          %p554 = pneg %p129
        $region82: #{tpu_custom_call.1} parent=67 // pred_check_branch
          %556 = sbr.rel (%p554) target = $region84
        $region83: #{tpu_custom_call.1} parent=67 // pred_region
          %558 = dma.done [#allocation10], 16
        $region84: #{tpu_custom_call.1} parent=67 // pred_fallthru
          _
        // Predicated region
        $region85: #{tpu_custom_call.1} parent=67 // pred_check
          %p559 = pneg %p150
        $region86: #{tpu_custom_call.1} parent=67 // pred_check_branch
          %561 = sbr.rel (%p559) target = $region88
        $region87: #{tpu_custom_call.1} parent=67 // pred_region
          %563 = dma.done [#allocation10], 3072
        $region88: #{tpu_custom_call.1} parent=67 // pred_fallthru
          _
        // Predicated region
        $region89: #{tpu_custom_call.1} parent=67 // pred_check
          %p564 = pneg %p171
        $region90: #{tpu_custom_call.1} parent=67 // pred_check_branch
          %566 = sbr.rel (%p564) target = $region92
        $region91: #{tpu_custom_call.1} parent=67 // pred_region
          %568 = dma.done [#allocation13], 16
        $region92: #{tpu_custom_call.1} parent=67 // pred_fallthru
          _
        // Predicated region
        $region93: #{tpu_custom_call.1} parent=67 // pred_check
          %p569 = pneg %p192
        $region94: #{tpu_custom_call.1} parent=67 // pred_check_branch
          %571 = sbr.rel (%p569) target = $region96
        $region95: #{tpu_custom_call.1} parent=67 // pred_region
          %573 = dma.done [#allocation13], 12288
        $region96: #{tpu_custom_call.1} parent=67 // pred_fallthru
          _
        // Predicated region
        $region97: #{tpu_custom_call.1} parent=67 // pred_check
          %p574 = pneg %p213
        $region98: #{tpu_custom_call.1} parent=67 // pred_check_branch
          %576 = sbr.rel (%p574) target = $region100
        $region99: #{tpu_custom_call.1} parent=67 // pred_region
          %578 = dma.done [#allocation16], 64
        $region100: #{tpu_custom_call.1} parent=67 // pred_fallthru
          _
        // Predicated region
        $region101: #{tpu_custom_call.1} parent=67 // pred_check
          %p579 = pneg %p234
        $region102: #{tpu_custom_call.1} parent=67 // pred_check_branch
          %581 = sbr.rel (%p579) target = $region104
        $region103: #{tpu_custom_call.1} parent=67 // pred_region
          %583 = dma.done [#allocation16], 49152
        $region104: #{tpu_custom_call.1} parent=67 // pred_fallthru
          _
        // Predicated region
        $region105: #{tpu_custom_call.1} parent=67 // pred_check
          %p584 = pneg %p255
        $region106: #{tpu_custom_call.1} parent=67 // pred_check_branch
          %586 = sbr.rel (%p584) target = $region108
        $region107: #{tpu_custom_call.1} parent=67 // pred_region
          %588 = dma.done [#allocation19], 64
        $region108: #{tpu_custom_call.1} parent=67 // pred_fallthru
          _
        %s589 = sand.u32 %s48, 1
        %s590 = scalar_lea.sflag [#allocation4], %s589
        %s591 = sand.u32 %s48, 1
        %s592 = smul.addr %s591, 16
        %s593 = scalar_lea.vmem [#allocation3], %s592
        %p594 = pneg %p61
        %p595 = pneg %p58
        %s596 = sand.u32 %s40, 1
        %s597 = scalar_lea.sflag [#allocation7], %s596
        %s598 = sand.u32 %s74, 1
        %s599 = smul.addr %s598, 8
        %s600 = scalar_lea.vmem [#allocation6], %s599
        %p601 = pneg %p87
        %p602 = pneg %p84
        %p603 = pneg %p108
        %p604 = pneg %p105
        %p605 = pneg %p129
        %p606 = pneg %p126
        %p607 = pneg %p150
        %p608 = pneg %p147
        %p609 = pneg %p171
        %p610 = pneg %p168
        %p611 = pneg %p192
        %p612 = pneg %p189
        %p613 = pneg %p213
        %p614 = pneg %p210
        %p615 = pneg %p234
        %p616 = pneg %p231
        %p617 = pneg %p255
        %p618 = pneg %p252
        %p619 = pneg %p276
        %p620 = pneg %p273
        %p621 = pneg %p297
        %p622 = pneg %p294
        %p623 = pneg %p323
        %p624 = pneg %p320
        %p625 = scmp.lt.s32.totalorder %s40, 1
        %s626 = scalar_select %p625, %s40, 1
        %s627 = smul.addr %s626, 2
        %s628 = smul.addr %s627, 8
        %s629 = scalar_lea.vmem %s12, %s628
        %p630 = pneg %p349
        %p631 = pneg %p346
        %s632 = sand.u32 %s336, 1
        %s633 = scalar_lea.sflag [#allocation5], %s632
        %s634 = sand.u32 %s336, 1
        %s635 = smul.addr %s634, 16
        %s636 = scalar_lea.vmem [#allocation20], %s635
        %p637 = scmp.lt.s32.totalorder %s40, 1
        %s638 = scalar_select %p637, %s40, 1
        %s639 = smul.addr %s638, 2
        %s640 = smul.addr %s639, 8
        %s641 = scalar_lea.vmem %s12, %s640
        %v642 = vld [vmem:[%s533] sm:$0xff]
        %v643 = vld [vmem:[%s533 + $0x8] sm:$0xff]
        %v644 = vadd.f32 %v642, %v643
        %v645 = vrot.slane %v644, 4
        %v646 = vadd.f32 %v644, %v645
        %v647 = vrot.slane %v646, 2
        %v648 = vadd.f32 %v646, %v647
        %v649 = vrot.slane %v648, 1
        %v650 = vadd.f32 %v648, %v649
        %v651 = vrcp.pop 16.0
        %v652 = vmul.f32 16.0, %v651
        %v653 = vsub.f32 1.0, %v652
        %v654 = vmul.f32 %v651, %v653
        %v655 = vadd.f32 %v651, %v654
        %vm656 = vweird.f32 %v651
        %v657 = vsel %vm656, %v651, %v655
        %v658 = vmul.f32 %v650, %v657
        %v659 = vpack.c.bf16 %v658, %v658
        %v660 = vld [vmem:[#allocation8] sm:$0xf]
        %v661 = vld [vmem:[#allocation8 + $0x4] sm:$0xf]
        %v662 = vld [vmem:[#allocation8 + $0x8] sm:$0xf]
        %v663 = vld [vmem:[#allocation8 + $0xc] sm:$0xf]
        %v664 = vld [vmem:[#allocation8 + $0x10] sm:$0xf]
        %v665 = vld [vmem:[#allocation8 + $0x14] sm:$0xf]
        %v666 = vld [vmem:[#allocation8 + $0x18] sm:$0xf]
        %v667 = vld [vmem:[#allocation8 + $0x1c] sm:$0xf]
        %v668 = vld [vmem:[#allocation8 + $0x20] sm:$0xf]
        %v669 = vld [vmem:[#allocation8 + $0x24] sm:$0xf]
        %v670 = vld [vmem:[#allocation8 + $0x28] sm:$0xf]
        %v671 = vld [vmem:[#allocation8 + $0x2c] sm:$0xf]
        %v672 = vld [vmem:[#allocation8 + $0x30] sm:$0xf]
        %v673 = vld [vmem:[#allocation8 + $0x34] sm:$0xf]
        %v674 = vld [vmem:[#allocation8 + $0x38] sm:$0xf]
        %v675 = vld [vmem:[#allocation8 + $0x3c] sm:$0xf]
        %v676 = vld [vmem:[#allocation9] sm:$0x1]
        %v693 = vunpack.c.l.b16 %v660
        %v694 = vunpack.c.l.b16 %v661
        %v695 = vunpack.c.l.b16 %v662
        %v696 = vunpack.c.l.b16 %v663
        %v697 = vunpack.c.l.b16 %v664
        %v698 = vunpack.c.l.b16 %v665
        %v699 = vunpack.c.l.b16 %v666
        %v700 = vunpack.c.l.b16 %v667
        %v701 = vunpack.c.l.b16 %v668
        %v702 = vunpack.c.l.b16 %v669
        %v703 = vunpack.c.l.b16 %v670
        %v704 = vunpack.c.l.b16 %v671
        %v705 = vunpack.c.l.b16 %v672
        %v706 = vunpack.c.l.b16 %v673
        %v707 = vunpack.c.l.b16 %v674
        %v708 = vunpack.c.l.b16 %v675
        %v709 = vpack.c.b16 %v694, %v693
        %v710 = vpack.c.b16 %v696, %v695
        %v711 = vpack.c.b16 %v698, %v697
        %v712 = vpack.c.b16 %v700, %v699
        %v713 = vpack.c.b16 %v702, %v701
        %v714 = vpack.c.b16 %v704, %v703
        %v715 = vpack.c.b16 %v706, %v705
        %v716 = vpack.c.b16 %v708, %v707
        %725 = vmatpush.bf16.msra.mxu0 %v716
        %726 = vmatpush.bf16.msra.mxu0 %v715
        %727 = vmatpush.bf16.msra.mxu0 %v714
        %728 = vmatpush.bf16.msra.mxu0 %v713
        %729 = vmatpush.bf16.msra.mxu0 %v712
        %730 = vmatpush.bf16.msra.mxu0 %v711
        %731 = vmatpush.bf16.msra.mxu0 %v710
        %732 = vmatpush.bf16.msra.mxu0 %v709
        %733 = vmatmul.bf16.gmra.mxu0 %v659
        %v734 = vpop.f32.mrf.mxu0
        %v735 = vadd.f32 %v676, %v734
        %v736 = vpop.f32.mrf.mxu0
        %737 = vdwg.mxu0
        %vm738 = vcmp.ge.f32.partialorder %v735, 0.0
        %v739 = vmul.f32 %v735, 0.2
        %v740 = vsel %vm738, %v735, %v739
        %v741 = vld [vmem:[%s543] sm:$0xf]
        %v742 = vld [vmem:[%s543 + $0x4] sm:$0xf]
        %v743 = vld [vmem:[#allocation11] sm:$0xf]
        %v744 = vld [vmem:[#allocation11 + $0x4] sm:$0xf]
        %v745 = vld [vmem:[#allocation11 + $0x8] sm:$0xf]
        %v746 = vld [vmem:[#allocation11 + $0xc] sm:$0xf]
        %v747 = vld [vmem:[#allocation11 + $0x10] sm:$0xf]
        %v748 = vld [vmem:[#allocation11 + $0x14] sm:$0xf]
        %v749 = vld [vmem:[#allocation11 + $0x18] sm:$0xf]
        %v750 = vld [vmem:[#allocation11 + $0x1c] sm:$0xf]
        %v751 = vld [vmem:[#allocation11 + $0x20] sm:$0xf]
        %v752 = vld [vmem:[#allocation11 + $0x24] sm:$0xf]
        %v753 = vld [vmem:[#allocation11 + $0x28] sm:$0xf]
        %v754 = vld [vmem:[#allocation11 + $0x2c] sm:$0xf]
        %v755 = vld [vmem:[#allocation11 + $0x30] sm:$0xf]
        %v756 = vld [vmem:[#allocation11 + $0x34] sm:$0xf]
        %v757 = vld [vmem:[#allocation11 + $0x38] sm:$0xf]
        %v758 = vld [vmem:[#allocation11 + $0x3c] sm:$0xf]
        %v761 = vunpack.c.l.b16 %v741
        %v762 = vunpack.c.l.b16 %v742
        %v763 = vpack.c.b16 %v762, %v761
        %v781 = vunpack.c.l.b16 %v743
        %v782 = vunpack.c.l.b16 %v744
        %v783 = vunpack.c.l.b16 %v745
        %v784 = vunpack.c.l.b16 %v746
        %v785 = vunpack.c.l.b16 %v747
        %v786 = vunpack.c.l.b16 %v748
        %v787 = vunpack.c.l.b16 %v749
        %v788 = vunpack.c.l.b16 %v750
        %v789 = vunpack.c.l.b16 %v751
        %v790 = vunpack.c.l.b16 %v752
        %v791 = vunpack.c.l.b16 %v753
        %v792 = vunpack.c.l.b16 %v754
        %v793 = vunpack.c.l.b16 %v755
        %v794 = vunpack.c.l.b16 %v756
        %v795 = vunpack.c.l.b16 %v757
        %v796 = vunpack.c.l.b16 %v758
        %v797 = vpack.c.b16 %v782, %v781
        %v798 = vpack.c.b16 %v784, %v783
        %v799 = vpack.c.b16 %v786, %v785
        %v800 = vpack.c.b16 %v788, %v787
        %v801 = vpack.c.b16 %v790, %v789
        %v802 = vpack.c.b16 %v792, %v791
        %v803 = vpack.c.b16 %v794, %v793
        %v804 = vpack.c.b16 %v796, %v795
        %813 = vmatpush.bf16.msra.mxu0 %v804
        %814 = vmatpush.bf16.msra.mxu0 %v803
        %815 = vmatpush.bf16.msra.mxu0 %v802
        %816 = vmatpush.bf16.msra.mxu0 %v801
        %817 = vmatpush.bf16.msra.mxu0 %v800
        %818 = vmatpush.bf16.msra.mxu0 %v799
        %819 = vmatpush.bf16.msra.mxu0 %v798
        %820 = vmatpush.bf16.msra.mxu0 %v797
        %821 = vmatmul.bf16.gmra.mxu0 %v763
        %v822 = vpop.f32.mrf.mxu0
        %v823 = vadd.f32 0.0, %v822
        %v824 = vpop.f32.mrf.mxu0
        %v825 = vadd.f32 0.0, %v824
        %826 = vdwg.mxu0
        %s827 = scalar_lea.vmem [#allocation11], 64
        %v828 = vld [vmem:[%s827] sm:$0xf]
        %v829 = vld [vmem:[%s827 + $0x4] sm:$0xf]
        %v830 = vld [vmem:[%s827 + $0x8] sm:$0xf]
        %v831 = vld [vmem:[%s827 + $0xc] sm:$0xf]
        %v832 = vld [vmem:[%s827 + $0x10] sm:$0xf]
        %v833 = vld [vmem:[%s827 + $0x14] sm:$0xf]
        %v834 = vld [vmem:[%s827 + $0x18] sm:$0xf]
        %v835 = vld [vmem:[%s827 + $0x1c] sm:$0xf]
        %v836 = vld [vmem:[%s827 + $0x20] sm:$0xf]
        %v837 = vld [vmem:[%s827 + $0x24] sm:$0xf]
        %v838 = vld [vmem:[%s827 + $0x28] sm:$0xf]
        %v839 = vld [vmem:[%s827 + $0x2c] sm:$0xf]
        %v840 = vld [vmem:[%s827 + $0x30] sm:$0xf]
        %v841 = vld [vmem:[%s827 + $0x34] sm:$0xf]
        %v842 = vld [vmem:[%s827 + $0x38] sm:$0xf]
        %v843 = vld [vmem:[%s827 + $0x3c] sm:$0xf]
        %v860 = vunpack.c.l.b16 %v828
        %v861 = vunpack.c.l.b16 %v829
        %v862 = vunpack.c.l.b16 %v830
        %v863 = vunpack.c.l.b16 %v831
        %v864 = vunpack.c.l.b16 %v832
        %v865 = vunpack.c.l.b16 %v833
        %v866 = vunpack.c.l.b16 %v834
        %v867 = vunpack.c.l.b16 %v835
        %v868 = vunpack.c.l.b16 %v836
        %v869 = vunpack.c.l.b16 %v837
        %v870 = vunpack.c.l.b16 %v838
        %v871 = vunpack.c.l.b16 %v839
        %v872 = vunpack.c.l.b16 %v840
        %v873 = vunpack.c.l.b16 %v841
        %v874 = vunpack.c.l.b16 %v842
        %v875 = vunpack.c.l.b16 %v843
        %v876 = vpack.c.b16 %v861, %v860
        %v877 = vpack.c.b16 %v863, %v862
        %v878 = vpack.c.b16 %v865, %v864
        %v879 = vpack.c.b16 %v867, %v866
        %v880 = vpack.c.b16 %v869, %v868
        %v881 = vpack.c.b16 %v871, %v870
        %v882 = vpack.c.b16 %v873, %v872
        %v883 = vpack.c.b16 %v875, %v874
        %892 = vmatpush.bf16.msra.mxu0 %v883
        %893 = vmatpush.bf16.msra.mxu0 %v882
        %894 = vmatpush.bf16.msra.mxu0 %v881
        %895 = vmatpush.bf16.msra.mxu0 %v880
        %896 = vmatpush.bf16.msra.mxu0 %v879
        %897 = vmatpush.bf16.msra.mxu0 %v878
        %898 = vmatpush.bf16.msra.mxu0 %v877
        %899 = vmatpush.bf16.msra.mxu0 %v876
        %900 = vmatmul.bf16.gmra.mxu0 %v763
        %v901 = vpop.f32.mrf.mxu0
        %v902 = vadd.f32 0.0, %v901
        %v903 = vpop.f32.mrf.mxu0
        %v904 = vadd.f32 0.0, %v903
        %905 = vdwg.mxu0
        %s906 = scalar_lea.vmem [#allocation11], 128
        %v907 = vld [vmem:[%s906] sm:$0xf]
        %v908 = vld [vmem:[%s906 + $0x4] sm:$0xf]
        %v909 = vld [vmem:[%s906 + $0x8] sm:$0xf]
        %v910 = vld [vmem:[%s906 + $0xc] sm:$0xf]
        %v911 = vld [vmem:[%s906 + $0x10] sm:$0xf]
        %v912 = vld [vmem:[%s906 + $0x14] sm:$0xf]
        %v913 = vld [vmem:[%s906 + $0x18] sm:$0xf]
        %v914 = vld [vmem:[%s906 + $0x1c] sm:$0xf]
        %v915 = vld [vmem:[%s906 + $0x20] sm:$0xf]
        %v916 = vld [vmem:[%s906 + $0x24] sm:$0xf]
        %v917 = vld [vmem:[%s906 + $0x28] sm:$0xf]
        %v918 = vld [vmem:[%s906 + $0x2c] sm:$0xf]
        %v919 = vld [vmem:[%s906 + $0x30] sm:$0xf]
        %v920 = vld [vmem:[%s906 + $0x34] sm:$0xf]
        %v921 = vld [vmem:[%s906 + $0x38] sm:$0xf]
        %v922 = vld [vmem:[%s906 + $0x3c] sm:$0xf]
        %v939 = vunpack.c.l.b16 %v907
        %v940 = vunpack.c.l.b16 %v908
        %v941 = vunpack.c.l.b16 %v909
        %v942 = vunpack.c.l.b16 %v910
        %v943 = vunpack.c.l.b16 %v911
        %v944 = vunpack.c.l.b16 %v912
        %v945 = vunpack.c.l.b16 %v913
        %v946 = vunpack.c.l.b16 %v914
        %v947 = vunpack.c.l.b16 %v915
        %v948 = vunpack.c.l.b16 %v916
        %v949 = vunpack.c.l.b16 %v917
        %v950 = vunpack.c.l.b16 %v918
        %v951 = vunpack.c.l.b16 %v919
        %v952 = vunpack.c.l.b16 %v920
        %v953 = vunpack.c.l.b16 %v921
        %v954 = vunpack.c.l.b16 %v922
        %v955 = vpack.c.b16 %v940, %v939
        %v956 = vpack.c.b16 %v942, %v941
        %v957 = vpack.c.b16 %v944, %v943
        %v958 = vpack.c.b16 %v946, %v945
        %v959 = vpack.c.b16 %v948, %v947
        %v960 = vpack.c.b16 %v950, %v949
        %v961 = vpack.c.b16 %v952, %v951
        %v962 = vpack.c.b16 %v954, %v953
        %971 = vmatpush.bf16.msra.mxu0 %v962
        %972 = vmatpush.bf16.msra.mxu0 %v961
        %973 = vmatpush.bf16.msra.mxu0 %v960
        %974 = vmatpush.bf16.msra.mxu0 %v959
        %975 = vmatpush.bf16.msra.mxu0 %v958
        %976 = vmatpush.bf16.msra.mxu0 %v957
        %977 = vmatpush.bf16.msra.mxu0 %v956
        %978 = vmatpush.bf16.msra.mxu0 %v955
        %979 = vmatmul.bf16.gmra.mxu0 %v763
        %v980 = vpop.f32.mrf.mxu0
        %v981 = vadd.f32 0.0, %v980
        %v982 = vpop.f32.mrf.mxu0
        %v983 = vadd.f32 0.0, %v982
        %984 = vdwg.mxu0
        %v985 = vlaneseq
        %v986 = vshrl.u32 %v985, 7
        %v987 = vadd.s32 %v986, 8
        %vm988 = vcmp.eq.s32.totalorder %v986, 0
        %vm989 = vcmp.eq.s32.totalorder %v987, 0
        %v990 = vrot.slane %v823, 7
        %v991 = vrot.slane %v825, 7
        %vm992 = vcmp.lt.s32.totalorder %v986, 1
        %v993 = vsel %vm992, %v990, %v991
        %v994 = vsel %vm992, %v991, %v990
        %v995 = vsel %vm988, 0.0, %v994
        %v996 = vsel %vm989, 0.0, %v993
        %vm997 = vcmp.eq.s32.totalorder %v986, 15
        %vm998 = vcmp.eq.s32.totalorder %v987, 15
        %v999 = vrot.slane %v981, 1
        %v1000 = vrot.slane %v983, 1
        %vm1001 = vcmp.lt.s32.totalorder %v986, 7
        %v1002 = vsel %vm1001, %v999, %v1000
        %v1003 = vsel %vm1001, %v1000, %v999
        %v1004 = vsel %vm997, 0.0, %v1002
        %v1005 = vsel %vm998, 0.0, %v1003
        %v1006 = vadd.f32 %v995, %v902
        %v1007 = vadd.f32 %v996, %v904
        %v1008 = vadd.f32 %v1006, %v1004
        %v1009 = vadd.f32 %v1007, %v1005
        %v1010 = vld [vmem:[#allocation12] sm:$0x1]
        %v1012 = vperm.slane %v1010, 0
        %v1014 = vadd.f32 %v1008, %v1012
        %v1015 = vadd.f32 %v1009, %v1012
        %vm1016 = vcmp.ge.f32.partialorder %v1014, 0.0
        %vm1017 = vcmp.ge.f32.partialorder %v1015, 0.0
        %v1018 = vmul.f32 %v1014, 0.2
        %v1019 = vmul.f32 %v1015, 0.2
        %v1020 = vsel %vm1016, %v1014, %v1018
        %v1021 = vsel %vm1017, %v1015, %v1019
        %v1022 = vperm.slane %v740, 0
        %v1023 = vmul.f32 %v1020, %v1022
        %v1024 = vmul.f32 %v1021, %v1022
        %v1025 = vxor.u32 %v1023, 2147483648
        %v1026 = vxor.u32 %v1024, 2147483648
        %v1027 = vmul.f32 %v1025, 1.442695
        %v1028 = vpow.pop %v1027
        %v1029 = vmul.f32 %v1026, 1.442695
        %v1030 = vpow.pop %v1029
        %v1031 = vadd.f32 %v1028, 1.0
        %v1032 = vadd.f32 %v1030, 1.0
        %v1033 = vrcp.pop %v1031
        %v1034 = vmul.f32 %v1031, %v1033
        %v1035 = vsub.f32 1.0, %v1034
        %v1036 = vmul.f32 %v1033, %v1035
        %v1037 = vadd.f32 %v1033, %v1036
        %vm1038 = vweird.f32 %v1031
        %vm1039 = vweird.f32 %v1033
        %vm1040 = vmor %vm1038, %vm1039
        %v1041 = vsel %vm1040, %v1033, %v1037
        %v1042 = vand.u32 2147483647, %v1031
        %vm1043 = vcmp.eq.f32.partialorder %v1042, 8.507059e+37
        %v1044 = vand.u32 %v1031, 2147483648
        %v1045 = vor.u32 1.1754944e-38, %v1044
        %v1046 = vsel %vm1043, %v1045, %v1041
        %v1047 = vmul.f32 1.0, %v1046
        %v1048 = vrcp.pop %v1032
        %v1049 = vmul.f32 %v1032, %v1048
        %v1050 = vsub.f32 1.0, %v1049
        %v1051 = vmul.f32 %v1048, %v1050
        %v1052 = vadd.f32 %v1048, %v1051
        %vm1053 = vweird.f32 %v1032
        %vm1054 = vweird.f32 %v1048
        %vm1055 = vmor %vm1053, %vm1054
        %v1056 = vsel %vm1055, %v1048, %v1052
        %v1057 = vand.u32 2147483647, %v1032
        %vm1058 = vcmp.eq.f32.partialorder %v1057, 8.507059e+37
        %v1059 = vand.u32 %v1032, 2147483648
        %v1060 = vor.u32 1.1754944e-38, %v1059
        %v1061 = vsel %vm1058, %v1060, %v1056
        %v1062 = vmul.f32 1.0, %v1061
        %v1063 = vmul.f32 %v1047, %v642
        %v1064 = vmul.f32 %v1062, %v643
        %1065 = vst [vmem:[%s636] sm:$0xff] %v1063
        %1066 = vst [vmem:[%s636 + $0x8] sm:$0xff] %v1064
        %v1067 = vpack.c.bf16 %v1064, %v1063
        %v1068 = vld [vmem:[#allocation14] sm:$0xff]
        %v1069 = vld [vmem:[#allocation14 + $0x8] sm:$0xff]
        %v1070 = vld [vmem:[#allocation14 + $0x10] sm:$0xff]
        %v1071 = vld [vmem:[#allocation14 + $0x18] sm:$0xff]
        %v1072 = vld [vmem:[#allocation14 + $0x20] sm:$0xff]
        %v1073 = vld [vmem:[#allocation14 + $0x28] sm:$0xff]
        %v1074 = vld [vmem:[#allocation14 + $0x30] sm:$0xff]
        %v1075 = vld [vmem:[#allocation14 + $0x38] sm:$0xff]
        %v1076 = vld [vmem:[#allocation14 + $0x40] sm:$0xff]
        %v1077 = vld [vmem:[#allocation14 + $0x48] sm:$0xff]
        %v1078 = vld [vmem:[#allocation14 + $0x50] sm:$0xff]
        %v1079 = vld [vmem:[#allocation14 + $0x58] sm:$0xff]
        %v1080 = vld [vmem:[#allocation14 + $0x60] sm:$0xff]
        %v1081 = vld [vmem:[#allocation14 + $0x68] sm:$0xff]
        %v1082 = vld [vmem:[#allocation14 + $0x70] sm:$0xff]
        %v1083 = vld [vmem:[#allocation14 + $0x78] sm:$0xff]
        %v1084 = vld [vmem:[#allocation14 + $0x80] sm:$0xff]
        %v1085 = vld [vmem:[#allocation14 + $0x88] sm:$0xff]
        %v1086 = vld [vmem:[#allocation14 + $0x90] sm:$0xff]
        %v1087 = vld [vmem:[#allocation14 + $0x98] sm:$0xff]
        %v1088 = vld [vmem:[#allocation14 + $0xa0] sm:$0xff]
        %v1089 = vld [vmem:[#allocation14 + $0xa8] sm:$0xff]
        %v1090 = vld [vmem:[#allocation14 + $0xb0] sm:$0xff]
        %v1091 = vld [vmem:[#allocation14 + $0xb8] sm:$0xff]
        %v1092 = vld [vmem:[#allocation14 + $0xc0] sm:$0xff]
        %v1093 = vld [vmem:[#allocation14 + $0xc8] sm:$0xff]
        %v1094 = vld [vmem:[#allocation14 + $0xd0] sm:$0xff]
        %v1095 = vld [vmem:[#allocation14 + $0xd8] sm:$0xff]
        %v1096 = vld [vmem:[#allocation14 + $0xe0] sm:$0xff]
        %v1097 = vld [vmem:[#allocation14 + $0xe8] sm:$0xff]
        %v1098 = vld [vmem:[#allocation14 + $0xf0] sm:$0xff]
        %v1099 = vld [vmem:[#allocation14 + $0xf8] sm:$0xff]
        %v1132 = vunpack.c.l.b16 %v1068
        %v1133 = vunpack.c.h.b16 %v1068
        %v1134 = vunpack.c.l.b16 %v1069
        %v1135 = vunpack.c.h.b16 %v1069
        %v1136 = vunpack.c.l.b16 %v1070
        %v1137 = vunpack.c.h.b16 %v1070
        %v1138 = vunpack.c.l.b16 %v1071
        %v1139 = vunpack.c.h.b16 %v1071
        %v1140 = vunpack.c.l.b16 %v1072
        %v1141 = vunpack.c.h.b16 %v1072
        %v1142 = vunpack.c.l.b16 %v1073
        %v1143 = vunpack.c.h.b16 %v1073
        %v1144 = vunpack.c.l.b16 %v1074
        %v1145 = vunpack.c.h.b16 %v1074
        %v1146 = vunpack.c.l.b16 %v1075
        %v1147 = vunpack.c.h.b16 %v1075
        %v1148 = vunpack.c.l.b16 %v1076
        %v1149 = vunpack.c.h.b16 %v1076
        %v1150 = vunpack.c.l.b16 %v1077
        %v1151 = vunpack.c.h.b16 %v1077
        %v1152 = vunpack.c.l.b16 %v1078
        %v1153 = vunpack.c.h.b16 %v1078
        %v1154 = vunpack.c.l.b16 %v1079
        %v1155 = vunpack.c.h.b16 %v1079
        %v1156 = vunpack.c.l.b16 %v1080
        %v1157 = vunpack.c.h.b16 %v1080
        %v1158 = vunpack.c.l.b16 %v1081
        %v1159 = vunpack.c.h.b16 %v1081
        %v1160 = vunpack.c.l.b16 %v1082
        %v1161 = vunpack.c.h.b16 %v1082
        %v1162 = vunpack.c.l.b16 %v1083
        %v1163 = vunpack.c.h.b16 %v1083
        %v1164 = vunpack.c.l.b16 %v1084
        %v1165 = vunpack.c.h.b16 %v1084
        %v1166 = vunpack.c.l.b16 %v1085
        %v1167 = vunpack.c.h.b16 %v1085
        %v1168 = vunpack.c.l.b16 %v1086
        %v1169 = vunpack.c.h.b16 %v1086
        %v1170 = vunpack.c.l.b16 %v1087
        %v1171 = vunpack.c.h.b16 %v1087
        %v1172 = vunpack.c.l.b16 %v1088
        %v1173 = vunpack.c.h.b16 %v1088
        %v1174 = vunpack.c.l.b16 %v1089
        %v1175 = vunpack.c.h.b16 %v1089
        %v1176 = vunpack.c.l.b16 %v1090
        %v1177 = vunpack.c.h.b16 %v1090
        %v1178 = vunpack.c.l.b16 %v1091
        %v1179 = vunpack.c.h.b16 %v1091
        %v1180 = vunpack.c.l.b16 %v1092
        %v1181 = vunpack.c.h.b16 %v1092
        %v1182 = vunpack.c.l.b16 %v1093
        %v1183 = vunpack.c.h.b16 %v1093
        %v1184 = vunpack.c.l.b16 %v1094
        %v1185 = vunpack.c.h.b16 %v1094
        %v1186 = vunpack.c.l.b16 %v1095
        %v1187 = vunpack.c.h.b16 %v1095
        %v1188 = vunpack.c.l.b16 %v1096
        %v1189 = vunpack.c.h.b16 %v1096
        %v1190 = vunpack.c.l.b16 %v1097
        %v1191 = vunpack.c.h.b16 %v1097
        %v1192 = vunpack.c.l.b16 %v1098
        %v1193 = vunpack.c.h.b16 %v1098
        %v1194 = vunpack.c.l.b16 %v1099
        %v1195 = vunpack.c.h.b16 %v1099
        %v1196 = vpack.c.b16 %v1136, %v1132
        %v1197 = vpack.c.b16 %v1137, %v1133
        %v1198 = vpack.c.b16 %v1138, %v1134
        %v1199 = vpack.c.b16 %v1139, %v1135
        %v1200 = vpack.c.b16 %v1144, %v1140
        %v1201 = vpack.c.b16 %v1145, %v1141
        %v1202 = vpack.c.b16 %v1146, %v1142
        %v1203 = vpack.c.b16 %v1147, %v1143
        %v1204 = vpack.c.b16 %v1152, %v1148
        %v1205 = vpack.c.b16 %v1153, %v1149
        %v1206 = vpack.c.b16 %v1154, %v1150
        %v1207 = vpack.c.b16 %v1155, %v1151
        %v1208 = vpack.c.b16 %v1160, %v1156
        %v1209 = vpack.c.b16 %v1161, %v1157
        %v1210 = vpack.c.b16 %v1162, %v1158
        %v1211 = vpack.c.b16 %v1163, %v1159
        %v1212 = vpack.c.b16 %v1168, %v1164
        %v1213 = vpack.c.b16 %v1169, %v1165
        %v1214 = vpack.c.b16 %v1170, %v1166
        %v1215 = vpack.c.b16 %v1171, %v1167
        %v1216 = vpack.c.b16 %v1176, %v1172
        %v1217 = vpack.c.b16 %v1177, %v1173
        %v1218 = vpack.c.b16 %v1178, %v1174
        %v1219 = vpack.c.b16 %v1179, %v1175
        %v1220 = vpack.c.b16 %v1184, %v1180
        %v1221 = vpack.c.b16 %v1185, %v1181
        %v1222 = vpack.c.b16 %v1186, %v1182
        %v1223 = vpack.c.b16 %v1187, %v1183
        %v1224 = vpack.c.b16 %v1192, %v1188
        %v1225 = vpack.c.b16 %v1193, %v1189
        %v1226 = vpack.c.b16 %v1194, %v1190
        %v1227 = vpack.c.b16 %v1195, %v1191
        %1260 = vmatpush.bf16.msra.mxu0 %v1224
        %1261 = vmatpush.bf16.msra.mxu0 %v1220
        %1262 = vmatpush.bf16.msra.mxu0 %v1216
        %1263 = vmatpush.bf16.msra.mxu0 %v1212
        %1264 = vmatpush.bf16.msra.mxu0 %v1208
        %1265 = vmatpush.bf16.msra.mxu0 %v1204
        %1266 = vmatpush.bf16.msra.mxu0 %v1200
        %1267 = vmatpush.bf16.msra.mxu0 %v1196
        %1268 = vmatmul.bf16.gmra.mxu0 %v1067
        %v1269 = vpop.f32.mrf.mxu0
        %v1270 = vadd.f32 0.0, %v1269
        %v1271 = vpop.f32.mrf.mxu0
        %v1272 = vadd.f32 0.0, %v1271
        %1273 = vdwg.mxu0
        %1274 = vmatpush.bf16.msra.mxu0 %v1225
        %1275 = vmatpush.bf16.msra.mxu0 %v1221
        %1276 = vmatpush.bf16.msra.mxu0 %v1217
        %1277 = vmatpush.bf16.msra.mxu0 %v1213
        %1278 = vmatpush.bf16.msra.mxu0 %v1209
        %1279 = vmatpush.bf16.msra.mxu0 %v1205
        %1280 = vmatpush.bf16.msra.mxu0 %v1201
        %1281 = vmatpush.bf16.msra.mxu0 %v1197
        %1282 = vmatmul.bf16.gmra.mxu0 %v1067
        %v1283 = vpop.f32.mrf.mxu0
        %v1284 = vadd.f32 0.0, %v1283
        %v1285 = vpop.f32.mrf.mxu0
        %v1286 = vadd.f32 0.0, %v1285
        %1287 = vdwg.mxu0
        %1288 = vmatpush.bf16.msra.mxu0 %v1226
        %1289 = vmatpush.bf16.msra.mxu0 %v1222
        %1290 = vmatpush.bf16.msra.mxu0 %v1218
        %1291 = vmatpush.bf16.msra.mxu0 %v1214
        %1292 = vmatpush.bf16.msra.mxu0 %v1210
        %1293 = vmatpush.bf16.msra.mxu0 %v1206
        %1294 = vmatpush.bf16.msra.mxu0 %v1202
        %1295 = vmatpush.bf16.msra.mxu0 %v1198
        %1296 = vmatmul.bf16.gmra.mxu0 %v1067
        %v1297 = vpop.f32.mrf.mxu0
        %v1298 = vadd.f32 0.0, %v1297
        %v1299 = vpop.f32.mrf.mxu0
        %v1300 = vadd.f32 0.0, %v1299
        %1301 = vdwg.mxu0
        %1302 = vmatpush.bf16.msra.mxu0 %v1227
        %1303 = vmatpush.bf16.msra.mxu0 %v1223
        %1304 = vmatpush.bf16.msra.mxu0 %v1219
        %1305 = vmatpush.bf16.msra.mxu0 %v1215
        %1306 = vmatpush.bf16.msra.mxu0 %v1211
        %1307 = vmatpush.bf16.msra.mxu0 %v1207
        %1308 = vmatpush.bf16.msra.mxu0 %v1203
        %1309 = vmatpush.bf16.msra.mxu0 %v1199
        %1310 = vmatmul.bf16.gmra.mxu0 %v1067
        %v1311 = vpop.f32.mrf.mxu0
        %v1312 = vadd.f32 0.0, %v1311
        %v1313 = vpop.f32.mrf.mxu0
        %v1314 = vadd.f32 0.0, %v1313
        %1315 = vdwg.mxu0
        %s1316 = scalar_lea.vmem [#allocation14], 256
        %v1317 = vld [vmem:[%s1316] sm:$0xff]
        %v1318 = vld [vmem:[%s1316 + $0x8] sm:$0xff]
        %v1319 = vld [vmem:[%s1316 + $0x10] sm:$0xff]
        %v1320 = vld [vmem:[%s1316 + $0x18] sm:$0xff]
        %v1321 = vld [vmem:[%s1316 + $0x20] sm:$0xff]
        %v1322 = vld [vmem:[%s1316 + $0x28] sm:$0xff]
        %v1323 = vld [vmem:[%s1316 + $0x30] sm:$0xff]
        %v1324 = vld [vmem:[%s1316 + $0x38] sm:$0xff]
        %v1325 = vld [vmem:[%s1316 + $0x40] sm:$0xff]
        %v1326 = vld [vmem:[%s1316 + $0x48] sm:$0xff]
        %v1327 = vld [vmem:[%s1316 + $0x50] sm:$0xff]
        %v1328 = vld [vmem:[%s1316 + $0x58] sm:$0xff]
        %v1329 = vld [vmem:[%s1316 + $0x60] sm:$0xff]
        %v1330 = vld [vmem:[%s1316 + $0x68] sm:$0xff]
        %v1331 = vld [vmem:[%s1316 + $0x70] sm:$0xff]
        %v1332 = vld [vmem:[%s1316 + $0x78] sm:$0xff]
        %v1333 = vld [vmem:[%s1316 + $0x80] sm:$0xff]
        %v1334 = vld [vmem:[%s1316 + $0x88] sm:$0xff]
        %v1335 = vld [vmem:[%s1316 + $0x90] sm:$0xff]
        %v1336 = vld [vmem:[%s1316 + $0x98] sm:$0xff]
        %v1337 = vld [vmem:[%s1316 + $0xa0] sm:$0xff]
        %v1338 = vld [vmem:[%s1316 + $0xa8] sm:$0xff]
        %v1339 = vld [vmem:[%s1316 + $0xb0] sm:$0xff]
        %v1340 = vld [vmem:[%s1316 + $0xb8] sm:$0xff]
        %v1341 = vld [vmem:[%s1316 + $0xc0] sm:$0xff]
        %v1342 = vld [vmem:[%s1316 + $0xc8] sm:$0xff]
        %v1343 = vld [vmem:[%s1316 + $0xd0] sm:$0xff]
        %v1344 = vld [vmem:[%s1316 + $0xd8] sm:$0xff]
        %v1345 = vld [vmem:[%s1316 + $0xe0] sm:$0xff]
        %v1346 = vld [vmem:[%s1316 + $0xe8] sm:$0xff]
        %v1347 = vld [vmem:[%s1316 + $0xf0] sm:$0xff]
        %v1348 = vld [vmem:[%s1316 + $0xf8] sm:$0xff]
        %v1381 = vunpack.c.l.b16 %v1317
        %v1382 = vunpack.c.h.b16 %v1317
        %v1383 = vunpack.c.l.b16 %v1318
        %v1384 = vunpack.c.h.b16 %v1318
        %v1385 = vunpack.c.l.b16 %v1319
        %v1386 = vunpack.c.h.b16 %v1319
        %v1387 = vunpack.c.l.b16 %v1320
        %v1388 = vunpack.c.h.b16 %v1320
        %v1389 = vunpack.c.l.b16 %v1321
        %v1390 = vunpack.c.h.b16 %v1321
        %v1391 = vunpack.c.l.b16 %v1322
        %v1392 = vunpack.c.h.b16 %v1322
        %v1393 = vunpack.c.l.b16 %v1323
        %v1394 = vunpack.c.h.b16 %v1323
        %v1395 = vunpack.c.l.b16 %v1324
        %v1396 = vunpack.c.h.b16 %v1324
        %v1397 = vunpack.c.l.b16 %v1325
        %v1398 = vunpack.c.h.b16 %v1325
        %v1399 = vunpack.c.l.b16 %v1326
        %v1400 = vunpack.c.h.b16 %v1326
        %v1401 = vunpack.c.l.b16 %v1327
        %v1402 = vunpack.c.h.b16 %v1327
        %v1403 = vunpack.c.l.b16 %v1328
        %v1404 = vunpack.c.h.b16 %v1328
        %v1405 = vunpack.c.l.b16 %v1329
        %v1406 = vunpack.c.h.b16 %v1329
        %v1407 = vunpack.c.l.b16 %v1330
        %v1408 = vunpack.c.h.b16 %v1330
        %v1409 = vunpack.c.l.b16 %v1331
        %v1410 = vunpack.c.h.b16 %v1331
        %v1411 = vunpack.c.l.b16 %v1332
        %v1412 = vunpack.c.h.b16 %v1332
        %v1413 = vunpack.c.l.b16 %v1333
        %v1414 = vunpack.c.h.b16 %v1333
        %v1415 = vunpack.c.l.b16 %v1334
        %v1416 = vunpack.c.h.b16 %v1334
        %v1417 = vunpack.c.l.b16 %v1335
        %v1418 = vunpack.c.h.b16 %v1335
        %v1419 = vunpack.c.l.b16 %v1336
        %v1420 = vunpack.c.h.b16 %v1336
        %v1421 = vunpack.c.l.b16 %v1337
        %v1422 = vunpack.c.h.b16 %v1337
        %v1423 = vunpack.c.l.b16 %v1338
        %v1424 = vunpack.c.h.b16 %v1338
        %v1425 = vunpack.c.l.b16 %v1339
        %v1426 = vunpack.c.h.b16 %v1339
        %v1427 = vunpack.c.l.b16 %v1340
        %v1428 = vunpack.c.h.b16 %v1340
        %v1429 = vunpack.c.l.b16 %v1341
        %v1430 = vunpack.c.h.b16 %v1341
        %v1431 = vunpack.c.l.b16 %v1342
        %v1432 = vunpack.c.h.b16 %v1342
        %v1433 = vunpack.c.l.b16 %v1343
        %v1434 = vunpack.c.h.b16 %v1343
        %v1435 = vunpack.c.l.b16 %v1344
        %v1436 = vunpack.c.h.b16 %v1344
        %v1437 = vunpack.c.l.b16 %v1345
        %v1438 = vunpack.c.h.b16 %v1345
        %v1439 = vunpack.c.l.b16 %v1346
        %v1440 = vunpack.c.h.b16 %v1346
        %v1441 = vunpack.c.l.b16 %v1347
        %v1442 = vunpack.c.h.b16 %v1347
        %v1443 = vunpack.c.l.b16 %v1348
        %v1444 = vunpack.c.h.b16 %v1348
        %v1445 = vpack.c.b16 %v1385, %v1381
        %v1446 = vpack.c.b16 %v1386, %v1382
        %v1447 = vpack.c.b16 %v1387, %v1383
        %v1448 = vpack.c.b16 %v1388, %v1384
        %v1449 = vpack.c.b16 %v1393, %v1389
        %v1450 = vpack.c.b16 %v1394, %v1390
        %v1451 = vpack.c.b16 %v1395, %v1391
        %v1452 = vpack.c.b16 %v1396, %v1392
        %v1453 = vpack.c.b16 %v1401, %v1397
        %v1454 = vpack.c.b16 %v1402, %v1398
        %v1455 = vpack.c.b16 %v1403, %v1399
        %v1456 = vpack.c.b16 %v1404, %v1400
        %v1457 = vpack.c.b16 %v1409, %v1405
        %v1458 = vpack.c.b16 %v1410, %v1406
        %v1459 = vpack.c.b16 %v1411, %v1407
        %v1460 = vpack.c.b16 %v1412, %v1408
        %v1461 = vpack.c.b16 %v1417, %v1413
        %v1462 = vpack.c.b16 %v1418, %v1414
        %v1463 = vpack.c.b16 %v1419, %v1415
        %v1464 = vpack.c.b16 %v1420, %v1416
        %v1465 = vpack.c.b16 %v1425, %v1421
        %v1466 = vpack.c.b16 %v1426, %v1422
        %v1467 = vpack.c.b16 %v1427, %v1423
        %v1468 = vpack.c.b16 %v1428, %v1424
        %v1469 = vpack.c.b16 %v1433, %v1429
        %v1470 = vpack.c.b16 %v1434, %v1430
        %v1471 = vpack.c.b16 %v1435, %v1431
        %v1472 = vpack.c.b16 %v1436, %v1432
        %v1473 = vpack.c.b16 %v1441, %v1437
        %v1474 = vpack.c.b16 %v1442, %v1438
        %v1475 = vpack.c.b16 %v1443, %v1439
        %v1476 = vpack.c.b16 %v1444, %v1440
        %1509 = vmatpush.bf16.msra.mxu0 %v1473
        %1510 = vmatpush.bf16.msra.mxu0 %v1469
        %1511 = vmatpush.bf16.msra.mxu0 %v1465
        %1512 = vmatpush.bf16.msra.mxu0 %v1461
        %1513 = vmatpush.bf16.msra.mxu0 %v1457
        %1514 = vmatpush.bf16.msra.mxu0 %v1453
        %1515 = vmatpush.bf16.msra.mxu0 %v1449
        %1516 = vmatpush.bf16.msra.mxu0 %v1445
        %1517 = vmatmul.bf16.gmra.mxu0 %v1067
        %v1518 = vpop.f32.mrf.mxu0
        %v1519 = vadd.f32 0.0, %v1518
        %v1520 = vpop.f32.mrf.mxu0
        %v1521 = vadd.f32 0.0, %v1520
        %1522 = vdwg.mxu0
        %1523 = vmatpush.bf16.msra.mxu0 %v1474
        %1524 = vmatpush.bf16.msra.mxu0 %v1470
        %1525 = vmatpush.bf16.msra.mxu0 %v1466
        %1526 = vmatpush.bf16.msra.mxu0 %v1462
        %1527 = vmatpush.bf16.msra.mxu0 %v1458
        %1528 = vmatpush.bf16.msra.mxu0 %v1454
        %1529 = vmatpush.bf16.msra.mxu0 %v1450
        %1530 = vmatpush.bf16.msra.mxu0 %v1446
        %1531 = vmatmul.bf16.gmra.mxu0 %v1067
        %v1532 = vpop.f32.mrf.mxu0
        %v1533 = vadd.f32 0.0, %v1532
        %v1534 = vpop.f32.mrf.mxu0
        %v1535 = vadd.f32 0.0, %v1534
        %1536 = vdwg.mxu0
        %1537 = vmatpush.bf16.msra.mxu0 %v1475
        %1538 = vmatpush.bf16.msra.mxu0 %v1471
        %1539 = vmatpush.bf16.msra.mxu0 %v1467
        %1540 = vmatpush.bf16.msra.mxu0 %v1463
        %1541 = vmatpush.bf16.msra.mxu0 %v1459
        %1542 = vmatpush.bf16.msra.mxu0 %v1455
        %1543 = vmatpush.bf16.msra.mxu0 %v1451
        %1544 = vmatpush.bf16.msra.mxu0 %v1447
        %1545 = vmatmul.bf16.gmra.mxu0 %v1067
        %v1546 = vpop.f32.mrf.mxu0
        %v1547 = vadd.f32 0.0, %v1546
        %v1548 = vpop.f32.mrf.mxu0
        %v1549 = vadd.f32 0.0, %v1548
        %1550 = vdwg.mxu0
        %1551 = vmatpush.bf16.msra.mxu0 %v1476
        %1552 = vmatpush.bf16.msra.mxu0 %v1472
        %1553 = vmatpush.bf16.msra.mxu0 %v1468
        %1554 = vmatpush.bf16.msra.mxu0 %v1464
        %1555 = vmatpush.bf16.msra.mxu0 %v1460
        %1556 = vmatpush.bf16.msra.mxu0 %v1456
        %1557 = vmatpush.bf16.msra.mxu0 %v1452
        %1558 = vmatpush.bf16.msra.mxu0 %v1448
        %1559 = vmatmul.bf16.gmra.mxu0 %v1067
        %v1560 = vpop.f32.mrf.mxu0
        %v1561 = vadd.f32 0.0, %v1560
        %v1562 = vpop.f32.mrf.mxu0
        %v1563 = vadd.f32 0.0, %v1562
        %1564 = vdwg.mxu0
        %s1565 = scalar_lea.vmem [#allocation14], 512
        %v1566 = vld [vmem:[%s1565] sm:$0xff]
        %v1567 = vld [vmem:[%s1565 + $0x8] sm:$0xff]
        %v1568 = vld [vmem:[%s1565 + $0x10] sm:$0xff]
        %v1569 = vld [vmem:[%s1565 + $0x18] sm:$0xff]
        %v1570 = vld [vmem:[%s1565 + $0x20] sm:$0xff]
        %v1571 = vld [vmem:[%s1565 + $0x28] sm:$0xff]
        %v1572 = vld [vmem:[%s1565 + $0x30] sm:$0xff]
        %v1573 = vld [vmem:[%s1565 + $0x38] sm:$0xff]
        %v1574 = vld [vmem:[%s1565 + $0x40] sm:$0xff]
        %v1575 = vld [vmem:[%s1565 + $0x48] sm:$0xff]
        %v1576 = vld [vmem:[%s1565 + $0x50] sm:$0xff]
        %v1577 = vld [vmem:[%s1565 + $0x58] sm:$0xff]
        %v1578 = vld [vmem:[%s1565 + $0x60] sm:$0xff]
        %v1579 = vld [vmem:[%s1565 + $0x68] sm:$0xff]
        %v1580 = vld [vmem:[%s1565 + $0x70] sm:$0xff]
        %v1581 = vld [vmem:[%s1565 + $0x78] sm:$0xff]
        %v1582 = vld [vmem:[%s1565 + $0x80] sm:$0xff]
        %v1583 = vld [vmem:[%s1565 + $0x88] sm:$0xff]
        %v1584 = vld [vmem:[%s1565 + $0x90] sm:$0xff]
        %v1585 = vld [vmem:[%s1565 + $0x98] sm:$0xff]
        %v1586 = vld [vmem:[%s1565 + $0xa0] sm:$0xff]
        %v1587 = vld [vmem:[%s1565 + $0xa8] sm:$0xff]
        %v1588 = vld [vmem:[%s1565 + $0xb0] sm:$0xff]
        %v1589 = vld [vmem:[%s1565 + $0xb8] sm:$0xff]
        %v1590 = vld [vmem:[%s1565 + $0xc0] sm:$0xff]
        %v1591 = vld [vmem:[%s1565 + $0xc8] sm:$0xff]
        %v1592 = vld [vmem:[%s1565 + $0xd0] sm:$0xff]
        %v1593 = vld [vmem:[%s1565 + $0xd8] sm:$0xff]
        %v1594 = vld [vmem:[%s1565 + $0xe0] sm:$0xff]
        %v1595 = vld [vmem:[%s1565 + $0xe8] sm:$0xff]
        %v1596 = vld [vmem:[%s1565 + $0xf0] sm:$0xff]
        %v1597 = vld [vmem:[%s1565 + $0xf8] sm:$0xff]
        %v1630 = vunpack.c.l.b16 %v1566
        %v1631 = vunpack.c.h.b16 %v1566
        %v1632 = vunpack.c.l.b16 %v1567
        %v1633 = vunpack.c.h.b16 %v1567
        %v1634 = vunpack.c.l.b16 %v1568
        %v1635 = vunpack.c.h.b16 %v1568
        %v1636 = vunpack.c.l.b16 %v1569
        %v1637 = vunpack.c.h.b16 %v1569
        %v1638 = vunpack.c.l.b16 %v1570
        %v1639 = vunpack.c.h.b16 %v1570
        %v1640 = vunpack.c.l.b16 %v1571
        %v1641 = vunpack.c.h.b16 %v1571
        %v1642 = vunpack.c.l.b16 %v1572
        %v1643 = vunpack.c.h.b16 %v1572
        %v1644 = vunpack.c.l.b16 %v1573
        %v1645 = vunpack.c.h.b16 %v1573
        %v1646 = vunpack.c.l.b16 %v1574
        %v1647 = vunpack.c.h.b16 %v1574
        %v1648 = vunpack.c.l.b16 %v1575
        %v1649 = vunpack.c.h.b16 %v1575
        %v1650 = vunpack.c.l.b16 %v1576
        %v1651 = vunpack.c.h.b16 %v1576
        %v1652 = vunpack.c.l.b16 %v1577
        %v1653 = vunpack.c.h.b16 %v1577
        %v1654 = vunpack.c.l.b16 %v1578
        %v1655 = vunpack.c.h.b16 %v1578
        %v1656 = vunpack.c.l.b16 %v1579
        %v1657 = vunpack.c.h.b16 %v1579
        %v1658 = vunpack.c.l.b16 %v1580
        %v1659 = vunpack.c.h.b16 %v1580
        %v1660 = vunpack.c.l.b16 %v1581
        %v1661 = vunpack.c.h.b16 %v1581
        %v1662 = vunpack.c.l.b16 %v1582
        %v1663 = vunpack.c.h.b16 %v1582
        %v1664 = vunpack.c.l.b16 %v1583
        %v1665 = vunpack.c.h.b16 %v1583
        %v1666 = vunpack.c.l.b16 %v1584
        %v1667 = vunpack.c.h.b16 %v1584
        %v1668 = vunpack.c.l.b16 %v1585
        %v1669 = vunpack.c.h.b16 %v1585
        %v1670 = vunpack.c.l.b16 %v1586
        %v1671 = vunpack.c.h.b16 %v1586
        %v1672 = vunpack.c.l.b16 %v1587
        %v1673 = vunpack.c.h.b16 %v1587
        %v1674 = vunpack.c.l.b16 %v1588
        %v1675 = vunpack.c.h.b16 %v1588
        %v1676 = vunpack.c.l.b16 %v1589
        %v1677 = vunpack.c.h.b16 %v1589
        %v1678 = vunpack.c.l.b16 %v1590
        %v1679 = vunpack.c.h.b16 %v1590
        %v1680 = vunpack.c.l.b16 %v1591
        %v1681 = vunpack.c.h.b16 %v1591
        %v1682 = vunpack.c.l.b16 %v1592
        %v1683 = vunpack.c.h.b16 %v1592
        %v1684 = vunpack.c.l.b16 %v1593
        %v1685 = vunpack.c.h.b16 %v1593
        %v1686 = vunpack.c.l.b16 %v1594
        %v1687 = vunpack.c.h.b16 %v1594
        %v1688 = vunpack.c.l.b16 %v1595
        %v1689 = vunpack.c.h.b16 %v1595
        %v1690 = vunpack.c.l.b16 %v1596
        %v1691 = vunpack.c.h.b16 %v1596
        %v1692 = vunpack.c.l.b16 %v1597
        %v1693 = vunpack.c.h.b16 %v1597
        %v1694 = vpack.c.b16 %v1634, %v1630
        %v1695 = vpack.c.b16 %v1635, %v1631
        %v1696 = vpack.c.b16 %v1636, %v1632
        %v1697 = vpack.c.b16 %v1637, %v1633
        %v1698 = vpack.c.b16 %v1642, %v1638
        %v1699 = vpack.c.b16 %v1643, %v1639
        %v1700 = vpack.c.b16 %v1644, %v1640
        %v1701 = vpack.c.b16 %v1645, %v1641
        %v1702 = vpack.c.b16 %v1650, %v1646
        %v1703 = vpack.c.b16 %v1651, %v1647
        %v1704 = vpack.c.b16 %v1652, %v1648
        %v1705 = vpack.c.b16 %v1653, %v1649
        %v1706 = vpack.c.b16 %v1658, %v1654
        %v1707 = vpack.c.b16 %v1659, %v1655
        %v1708 = vpack.c.b16 %v1660, %v1656
        %v1709 = vpack.c.b16 %v1661, %v1657
        %v1710 = vpack.c.b16 %v1666, %v1662
        %v1711 = vpack.c.b16 %v1667, %v1663
        %v1712 = vpack.c.b16 %v1668, %v1664
        %v1713 = vpack.c.b16 %v1669, %v1665
        %v1714 = vpack.c.b16 %v1674, %v1670
        %v1715 = vpack.c.b16 %v1675, %v1671
        %v1716 = vpack.c.b16 %v1676, %v1672
        %v1717 = vpack.c.b16 %v1677, %v1673
        %v1718 = vpack.c.b16 %v1682, %v1678
        %v1719 = vpack.c.b16 %v1683, %v1679
        %v1720 = vpack.c.b16 %v1684, %v1680
        %v1721 = vpack.c.b16 %v1685, %v1681
        %v1722 = vpack.c.b16 %v1690, %v1686
        %v1723 = vpack.c.b16 %v1691, %v1687
        %v1724 = vpack.c.b16 %v1692, %v1688
        %v1725 = vpack.c.b16 %v1693, %v1689
        %1758 = vmatpush.bf16.msra.mxu0 %v1722
        %1759 = vmatpush.bf16.msra.mxu0 %v1718
        %1760 = vmatpush.bf16.msra.mxu0 %v1714
        %1761 = vmatpush.bf16.msra.mxu0 %v1710
        %1762 = vmatpush.bf16.msra.mxu0 %v1706
        %1763 = vmatpush.bf16.msra.mxu0 %v1702
        %1764 = vmatpush.bf16.msra.mxu0 %v1698
        %1765 = vmatpush.bf16.msra.mxu0 %v1694
        %1766 = vmatmul.bf16.gmra.mxu0 %v1067
        %v1767 = vpop.f32.mrf.mxu0
        %v1768 = vadd.f32 0.0, %v1767
        %v1769 = vpop.f32.mrf.mxu0
        %v1770 = vadd.f32 0.0, %v1769
        %1771 = vdwg.mxu0
        %1772 = vmatpush.bf16.msra.mxu0 %v1723
        %1773 = vmatpush.bf16.msra.mxu0 %v1719
        %1774 = vmatpush.bf16.msra.mxu0 %v1715
        %1775 = vmatpush.bf16.msra.mxu0 %v1711
        %1776 = vmatpush.bf16.msra.mxu0 %v1707
        %1777 = vmatpush.bf16.msra.mxu0 %v1703
        %1778 = vmatpush.bf16.msra.mxu0 %v1699
        %1779 = vmatpush.bf16.msra.mxu0 %v1695
        %1780 = vmatmul.bf16.gmra.mxu0 %v1067
        %v1781 = vpop.f32.mrf.mxu0
        %v1782 = vadd.f32 0.0, %v1781
        %v1783 = vpop.f32.mrf.mxu0
        %v1784 = vadd.f32 0.0, %v1783
        %1785 = vdwg.mxu0
        %1786 = vmatpush.bf16.msra.mxu0 %v1724
        %1787 = vmatpush.bf16.msra.mxu0 %v1720
        %1788 = vmatpush.bf16.msra.mxu0 %v1716
        %1789 = vmatpush.bf16.msra.mxu0 %v1712
        %1790 = vmatpush.bf16.msra.mxu0 %v1708
        %1791 = vmatpush.bf16.msra.mxu0 %v1704
        %1792 = vmatpush.bf16.msra.mxu0 %v1700
        %1793 = vmatpush.bf16.msra.mxu0 %v1696
        %1794 = vmatmul.bf16.gmra.mxu0 %v1067
        %v1795 = vpop.f32.mrf.mxu0
        %v1796 = vadd.f32 0.0, %v1795
        %v1797 = vpop.f32.mrf.mxu0
        %v1798 = vadd.f32 0.0, %v1797
        %1799 = vdwg.mxu0
        %1800 = vmatpush.bf16.msra.mxu0 %v1725
        %1801 = vmatpush.bf16.msra.mxu0 %v1721
        %1802 = vmatpush.bf16.msra.mxu0 %v1717
        %1803 = vmatpush.bf16.msra.mxu0 %v1713
        %1804 = vmatpush.bf16.msra.mxu0 %v1709
        %1805 = vmatpush.bf16.msra.mxu0 %v1705
        %1806 = vmatpush.bf16.msra.mxu0 %v1701
        %1807 = vmatpush.bf16.msra.mxu0 %v1697
        %1808 = vmatmul.bf16.gmra.mxu0 %v1067
        %v1809 = vpop.f32.mrf.mxu0
        %v1810 = vadd.f32 0.0, %v1809
        %v1811 = vpop.f32.mrf.mxu0
        %v1812 = vadd.f32 0.0, %v1811
        %1813 = vdwg.mxu0
        %v1814 = vrot.slane %v1270, 7
        %v1815 = vrot.slane %v1284, 7
        %v1816 = vrot.slane %v1298, 7
        %v1817 = vrot.slane %v1312, 7
        %v1818 = vrot.slane %v1272, 7
        %v1819 = vrot.slane %v1286, 7
        %v1820 = vrot.slane %v1300, 7
        %v1821 = vrot.slane %v1314, 7
        %v1822 = vsel %vm992, %v1814, %v1818
        %v1823 = vsel %vm992, %v1815, %v1819
        %v1824 = vsel %vm992, %v1816, %v1820
        %v1825 = vsel %vm992, %v1817, %v1821
        %v1826 = vsel %vm992, %v1818, %v1814
        %v1827 = vsel %vm992, %v1819, %v1815
        %v1828 = vsel %vm992, %v1820, %v1816
        %v1829 = vsel %vm992, %v1821, %v1817
        %v1830 = vsel %vm988, 0.0, %v1826
        %v1831 = vsel %vm988, 0.0, %v1827
        %v1832 = vsel %vm988, 0.0, %v1828
        %v1833 = vsel %vm988, 0.0, %v1829
        %v1834 = vsel %vm989, 0.0, %v1822
        %v1835 = vsel %vm989, 0.0, %v1823
        %v1836 = vsel %vm989, 0.0, %v1824
        %v1837 = vsel %vm989, 0.0, %v1825
        %v1838 = vrot.slane %v1768, 1
        %v1839 = vrot.slane %v1782, 1
        %v1840 = vrot.slane %v1796, 1
        %v1841 = vrot.slane %v1810, 1
        %v1842 = vrot.slane %v1770, 1
        %v1843 = vrot.slane %v1784, 1
        %v1844 = vrot.slane %v1798, 1
        %v1845 = vrot.slane %v1812, 1
        %v1846 = vsel %vm1001, %v1838, %v1842
        %v1847 = vsel %vm1001, %v1839, %v1843
        %v1848 = vsel %vm1001, %v1840, %v1844
        %v1849 = vsel %vm1001, %v1841, %v1845
        %v1850 = vsel %vm1001, %v1842, %v1838
        %v1851 = vsel %vm1001, %v1843, %v1839
        %v1852 = vsel %vm1001, %v1844, %v1840
        %v1853 = vsel %vm1001, %v1845, %v1841
        %v1854 = vsel %vm997, 0.0, %v1846
        %v1855 = vsel %vm997, 0.0, %v1847
        %v1856 = vsel %vm997, 0.0, %v1848
        %v1857 = vsel %vm997, 0.0, %v1849
        %v1858 = vsel %vm998, 0.0, %v1850
        %v1859 = vsel %vm998, 0.0, %v1851
        %v1860 = vsel %vm998, 0.0, %v1852
        %v1861 = vsel %vm998, 0.0, %v1853
        %v1862 = vadd.f32 %v1830, %v1519
        %v1863 = vadd.f32 %v1831, %v1533
        %v1864 = vadd.f32 %v1832, %v1547
        %v1865 = vadd.f32 %v1833, %v1561
        %v1866 = vadd.f32 %v1834, %v1521
        %v1867 = vadd.f32 %v1835, %v1535
        %v1868 = vadd.f32 %v1836, %v1549
        %v1869 = vadd.f32 %v1837, %v1563
        %v1870 = vadd.f32 %v1862, %v1854
        %v1871 = vadd.f32 %v1863, %v1855
        %v1872 = vadd.f32 %v1864, %v1856
        %v1873 = vadd.f32 %v1865, %v1857
        %v1874 = vadd.f32 %v1866, %v1858
        %v1875 = vadd.f32 %v1867, %v1859
        %v1876 = vadd.f32 %v1868, %v1860
        %v1877 = vadd.f32 %v1869, %v1861
        %v1878 = vld [vmem:[#allocation15] sm:$0xf]
        %v1880 = vperm.slane %v1878, 0
        %v1881 = vperm.slane %v1878, 1
        %v1882 = vperm.slane %v1878, 2
        %v1883 = vperm.slane %v1878, 3
        %v1888 = vadd.f32 %v1870, %v1880
        %v1889 = vadd.f32 %v1871, %v1881
        %v1890 = vadd.f32 %v1872, %v1882
        %v1891 = vadd.f32 %v1873, %v1883
        %v1892 = vadd.f32 %v1874, %v1880
        %v1893 = vadd.f32 %v1875, %v1881
        %v1894 = vadd.f32 %v1876, %v1882
        %v1895 = vadd.f32 %v1877, %v1883
        %vm1896 = vcmp.ge.f32.partialorder %v1888, 0.0
        %vm1897 = vcmp.ge.f32.partialorder %v1889, 0.0
        %vm1898 = vcmp.ge.f32.partialorder %v1890, 0.0
        %vm1899 = vcmp.ge.f32.partialorder %v1891, 0.0
        %vm1900 = vcmp.ge.f32.partialorder %v1892, 0.0
        %vm1901 = vcmp.ge.f32.partialorder %v1893, 0.0
        %vm1902 = vcmp.ge.f32.partialorder %v1894, 0.0
        %vm1903 = vcmp.ge.f32.partialorder %v1895, 0.0
        %v1904 = vmul.f32 %v1888, 0.2
        %v1905 = vmul.f32 %v1889, 0.2
        %v1906 = vmul.f32 %v1890, 0.2
        %v1907 = vmul.f32 %v1891, 0.2
        %v1908 = vmul.f32 %v1892, 0.2
        %v1909 = vmul.f32 %v1893, 0.2
        %v1910 = vmul.f32 %v1894, 0.2
        %v1911 = vmul.f32 %v1895, 0.2
        %v1912 = vsel %vm1896, %v1888, %v1904
        %v1913 = vsel %vm1897, %v1889, %v1905
        %v1914 = vsel %vm1898, %v1890, %v1906
        %v1915 = vsel %vm1899, %v1891, %v1907
        %v1916 = vsel %vm1900, %v1892, %v1908
        %v1917 = vsel %vm1901, %v1893, %v1909
        %v1918 = vsel %vm1902, %v1894, %v1910
        %v1919 = vsel %vm1903, %v1895, %v1911
        %v1920 = vpack.c.bf16 %v1916, %v1912
        %v1921 = vpack.c.bf16 %v1917, %v1913
        %v1922 = vpack.c.bf16 %v1918, %v1914
        %v1923 = vpack.c.bf16 %v1919, %v1915
        %v1924 = vld [vmem:[#allocation17] sm:$0xff]
        %v1925 = vld [vmem:[#allocation17 + $0x8] sm:$0xff]
        %v1926 = vld [vmem:[#allocation17 + $0x10] sm:$0xff]
        %v1927 = vld [vmem:[#allocation17 + $0x18] sm:$0xff]
        %v1928 = vld [vmem:[#allocation17 + $0x20] sm:$0xff]
        %v1929 = vld [vmem:[#allocation17 + $0x28] sm:$0xff]
        %v1930 = vld [vmem:[#allocation17 + $0x30] sm:$0xff]
        %v1931 = vld [vmem:[#allocation17 + $0x38] sm:$0xff]
        %v1932 = vld [vmem:[#allocation17 + $0x40] sm:$0xff]
        %v1933 = vld [vmem:[#allocation17 + $0x48] sm:$0xff]
        %v1934 = vld [vmem:[#allocation17 + $0x50] sm:$0xff]
        %v1935 = vld [vmem:[#allocation17 + $0x58] sm:$0xff]
        %v1936 = vld [vmem:[#allocation17 + $0x60] sm:$0xff]
        %v1937 = vld [vmem:[#allocation17 + $0x68] sm:$0xff]
        %v1938 = vld [vmem:[#allocation17 + $0x70] sm:$0xff]
        %v1939 = vld [vmem:[#allocation17 + $0x78] sm:$0xff]
        %v1940 = vld [vmem:[#allocation17 + $0x80] sm:$0xff]
        %v1941 = vld [vmem:[#allocation17 + $0x88] sm:$0xff]
        %v1942 = vld [vmem:[#allocation17 + $0x90] sm:$0xff]
        %v1943 = vld [vmem:[#allocation17 + $0x98] sm:$0xff]
        %v1944 = vld [vmem:[#allocation17 + $0xa0] sm:$0xff]
        %v1945 = vld [vmem:[#allocation17 + $0xa8] sm:$0xff]
        %v1946 = vld [vmem:[#allocation17 + $0xb0] sm:$0xff]
        %v1947 = vld [vmem:[#allocation17 + $0xb8] sm:$0xff]
        %v1948 = vld [vmem:[#allocation17 + $0xc0] sm:$0xff]
        %v1949 = vld [vmem:[#allocation17 + $0xc8] sm:$0xff]
        %v1950 = vld [vmem:[#allocation17 + $0xd0] sm:$0xff]
        %v1951 = vld [vmem:[#allocation17 + $0xd8] sm:$0xff]
        %v1952 = vld [vmem:[#allocation17 + $0xe0] sm:$0xff]
        %v1953 = vld [vmem:[#allocation17 + $0xe8] sm:$0xff]
        %v1954 = vld [vmem:[#allocation17 + $0xf0] sm:$0xff]
        %v1955 = vld [vmem:[#allocation17 + $0xf8] sm:$0xff]
        %v1956 = vld [vmem:[#allocation17 + $0x100] sm:$0xff]
        %v1957 = vld [vmem:[#allocation17 + $0x108] sm:$0xff]
        %v1958 = vld [vmem:[#allocation17 + $0x110] sm:$0xff]
        %v1959 = vld [vmem:[#allocation17 + $0x118] sm:$0xff]
        %v1960 = vld [vmem:[#allocation17 + $0x120] sm:$0xff]
        %v1961 = vld [vmem:[#allocation17 + $0x128] sm:$0xff]
        %v1962 = vld [vmem:[#allocation17 + $0x130] sm:$0xff]
        %v1963 = vld [vmem:[#allocation17 + $0x138] sm:$0xff]
        %v1964 = vld [vmem:[#allocation17 + $0x140] sm:$0xff]
        %v1965 = vld [vmem:[#allocation17 + $0x148] sm:$0xff]
        %v1966 = vld [vmem:[#allocation17 + $0x150] sm:$0xff]
        %v1967 = vld [vmem:[#allocation17 + $0x158] sm:$0xff]
        %v1968 = vld [vmem:[#allocation17 + $0x160] sm:$0xff]
        %v1969 = vld [vmem:[#allocation17 + $0x168] sm:$0xff]
        %v1970 = vld [vmem:[#allocation17 + $0x170] sm:$0xff]
        %v1971 = vld [vmem:[#allocation17 + $0x178] sm:$0xff]
        %v1972 = vld [vmem:[#allocation17 + $0x180] sm:$0xff]
        %v1973 = vld [vmem:[#allocation17 + $0x188] sm:$0xff]
        %v1974 = vld [vmem:[#allocation17 + $0x190] sm:$0xff]
        %v1975 = vld [vmem:[#allocation17 + $0x198] sm:$0xff]
        %v1976 = vld [vmem:[#allocation17 + $0x1a0] sm:$0xff]
        %v1977 = vld [vmem:[#allocation17 + $0x1a8] sm:$0xff]
        %v1978 = vld [vmem:[#allocation17 + $0x1b0] sm:$0xff]
        %v1979 = vld [vmem:[#allocation17 + $0x1b8] sm:$0xff]
        %v1980 = vld [vmem:[#allocation17 + $0x1c0] sm:$0xff]
        %v1981 = vld [vmem:[#allocation17 + $0x1c8] sm:$0xff]
        %v1982 = vld [vmem:[#allocation17 + $0x1d0] sm:$0xff]
        %v1983 = vld [vmem:[#allocation17 + $0x1d8] sm:$0xff]
        %v1984 = vld [vmem:[#allocation17 + $0x1e0] sm:$0xff]
        %v1985 = vld [vmem:[#allocation17 + $0x1e8] sm:$0xff]
        %v1986 = vld [vmem:[#allocation17 + $0x1f0] sm:$0xff]
        %v1987 = vld [vmem:[#allocation17 + $0x1f8] sm:$0xff]
        %v1988 = vld [vmem:[#allocation17 + $0x200] sm:$0xff]
        %v1989 = vld [vmem:[#allocation17 + $0x208] sm:$0xff]
        %v1990 = vld [vmem:[#allocation17 + $0x210] sm:$0xff]
        %v1991 = vld [vmem:[#allocation17 + $0x218] sm:$0xff]
        %v1992 = vld [vmem:[#allocation17 + $0x220] sm:$0xff]
        %v1993 = vld [vmem:[#allocation17 + $0x228] sm:$0xff]
        %v1994 = vld [vmem:[#allocation17 + $0x230] sm:$0xff]
        %v1995 = vld [vmem:[#allocation17 + $0x238] sm:$0xff]
        %v1996 = vld [vmem:[#allocation17 + $0x240] sm:$0xff]
        %v1997 = vld [vmem:[#allocation17 + $0x248] sm:$0xff]
        %v1998 = vld [vmem:[#allocation17 + $0x250] sm:$0xff]
        %v1999 = vld [vmem:[#allocation17 + $0x258] sm:$0xff]
        %v2000 = vld [vmem:[#allocation17 + $0x260] sm:$0xff]
        %v2001 = vld [vmem:[#allocation17 + $0x268] sm:$0xff]
        %v2002 = vld [vmem:[#allocation17 + $0x270] sm:$0xff]
        %v2003 = vld [vmem:[#allocation17 + $0x278] sm:$0xff]
        %v2004 = vld [vmem:[#allocation17 + $0x280] sm:$0xff]
        %v2005 = vld [vmem:[#allocation17 + $0x288] sm:$0xff]
        %v2006 = vld [vmem:[#allocation17 + $0x290] sm:$0xff]
        %v2007 = vld [vmem:[#allocation17 + $0x298] sm:$0xff]
        %v2008 = vld [vmem:[#allocation17 + $0x2a0] sm:$0xff]
        %v2009 = vld [vmem:[#allocation17 + $0x2a8] sm:$0xff]
        %v2010 = vld [vmem:[#allocation17 + $0x2b0] sm:$0xff]
        %v2011 = vld [vmem:[#allocation17 + $0x2b8] sm:$0xff]
        %v2012 = vld [vmem:[#allocation17 + $0x2c0] sm:$0xff]
        %v2013 = vld [vmem:[#allocation17 + $0x2c8] sm:$0xff]
        %v2014 = vld [vmem:[#allocation17 + $0x2d0] sm:$0xff]
        %v2015 = vld [vmem:[#allocation17 + $0x2d8] sm:$0xff]
        %v2016 = vld [vmem:[#allocation17 + $0x2e0] sm:$0xff]
        %v2017 = vld [vmem:[#allocation17 + $0x2e8] sm:$0xff]
        %v2018 = vld [vmem:[#allocation17 + $0x2f0] sm:$0xff]
        %v2019 = vld [vmem:[#allocation17 + $0x2f8] sm:$0xff]
        %v2020 = vld [vmem:[#allocation17 + $0x300] sm:$0xff]
        %v2021 = vld [vmem:[#allocation17 + $0x308] sm:$0xff]
        %v2022 = vld [vmem:[#allocation17 + $0x310] sm:$0xff]
        %v2023 = vld [vmem:[#allocation17 + $0x318] sm:$0xff]
        %v2024 = vld [vmem:[#allocation17 + $0x320] sm:$0xff]
        %v2025 = vld [vmem:[#allocation17 + $0x328] sm:$0xff]
        %v2026 = vld [vmem:[#allocation17 + $0x330] sm:$0xff]
        %v2027 = vld [vmem:[#allocation17 + $0x338] sm:$0xff]
        %v2028 = vld [vmem:[#allocation17 + $0x340] sm:$0xff]
        %v2029 = vld [vmem:[#allocation17 + $0x348] sm:$0xff]
        %v2030 = vld [vmem:[#allocation17 + $0x350] sm:$0xff]
        %v2031 = vld [vmem:[#allocation17 + $0x358] sm:$0xff]
        %v2032 = vld [vmem:[#allocation17 + $0x360] sm:$0xff]
        %v2033 = vld [vmem:[#allocation17 + $0x368] sm:$0xff]
        %v2034 = vld [vmem:[#allocation17 + $0x370] sm:$0xff]
        %v2035 = vld [vmem:[#allocation17 + $0x378] sm:$0xff]
        %v2036 = vld [vmem:[#allocation17 + $0x380] sm:$0xff]
        %v2037 = vld [vmem:[#allocation17 + $0x388] sm:$0xff]
        %v2038 = vld [vmem:[#allocation17 + $0x390] sm:$0xff]
        %v2039 = vld [vmem:[#allocation17 + $0x398] sm:$0xff]
        %v2040 = vld [vmem:[#allocation17 + $0x3a0] sm:$0xff]
        %v2041 = vld [vmem:[#allocation17 + $0x3a8] sm:$0xff]
        %v2042 = vld [vmem:[#allocation17 + $0x3b0] sm:$0xff]
        %v2043 = vld [vmem:[#allocation17 + $0x3b8] sm:$0xff]
        %v2044 = vld [vmem:[#allocation17 + $0x3c0] sm:$0xff]
        %v2045 = vld [vmem:[#allocation17 + $0x3c8] sm:$0xff]
        %v2046 = vld [vmem:[#allocation17 + $0x3d0] sm:$0xff]
        %v2047 = vld [vmem:[#allocation17 + $0x3d8] sm:$0xff]
        %v2048 = vld [vmem:[#allocation17 + $0x3e0] sm:$0xff]
        %v2049 = vld [vmem:[#allocation17 + $0x3e8] sm:$0xff]
        %v2050 = vld [vmem:[#allocation17 + $0x3f0] sm:$0xff]
        %v2051 = vld [vmem:[#allocation17 + $0x3f8] sm:$0xff]
        %v2180 = vunpack.c.l.b16 %v1924
        %v2181 = vunpack.c.h.b16 %v1924
        %v2182 = vunpack.c.l.b16 %v1925
        %v2183 = vunpack.c.h.b16 %v1925
        %v2184 = vunpack.c.l.b16 %v1926
        %v2185 = vunpack.c.h.b16 %v1926
        %v2186 = vunpack.c.l.b16 %v1927
        %v2187 = vunpack.c.h.b16 %v1927
        %v2188 = vunpack.c.l.b16 %v1928
        %v2189 = vunpack.c.h.b16 %v1928
        %v2190 = vunpack.c.l.b16 %v1929
        %v2191 = vunpack.c.h.b16 %v1929
        %v2192 = vunpack.c.l.b16 %v1930
        %v2193 = vunpack.c.h.b16 %v1930
        %v2194 = vunpack.c.l.b16 %v1931
        %v2195 = vunpack.c.h.b16 %v1931
        %v2196 = vunpack.c.l.b16 %v1932
        %v2197 = vunpack.c.h.b16 %v1932
        %v2198 = vunpack.c.l.b16 %v1933
        %v2199 = vunpack.c.h.b16 %v1933
        %v2200 = vunpack.c.l.b16 %v1934
        %v2201 = vunpack.c.h.b16 %v1934
        %v2202 = vunpack.c.l.b16 %v1935
        %v2203 = vunpack.c.h.b16 %v1935
        %v2204 = vunpack.c.l.b16 %v1936
        %v2205 = vunpack.c.h.b16 %v1936
        %v2206 = vunpack.c.l.b16 %v1937
        %v2207 = vunpack.c.h.b16 %v1937
        %v2208 = vunpack.c.l.b16 %v1938
        %v2209 = vunpack.c.h.b16 %v1938
        %v2210 = vunpack.c.l.b16 %v1939
        %v2211 = vunpack.c.h.b16 %v1939
        %v2212 = vunpack.c.l.b16 %v1940
        %v2213 = vunpack.c.h.b16 %v1940
        %v2214 = vunpack.c.l.b16 %v1941
        %v2215 = vunpack.c.h.b16 %v1941
        %v2216 = vunpack.c.l.b16 %v1942
        %v2217 = vunpack.c.h.b16 %v1942
        %v2218 = vunpack.c.l.b16 %v1943
        %v2219 = vunpack.c.h.b16 %v1943
        %v2220 = vunpack.c.l.b16 %v1944
        %v2221 = vunpack.c.h.b16 %v1944
        %v2222 = vunpack.c.l.b16 %v1945
        %v2223 = vunpack.c.h.b16 %v1945
        %v2224 = vunpack.c.l.b16 %v1946
        %v2225 = vunpack.c.h.b16 %v1946
        %v2226 = vunpack.c.l.b16 %v1947
        %v2227 = vunpack.c.h.b16 %v1947
        %v2228 = vunpack.c.l.b16 %v1948
        %v2229 = vunpack.c.h.b16 %v1948
        %v2230 = vunpack.c.l.b16 %v1949
        %v2231 = vunpack.c.h.b16 %v1949
        %v2232 = vunpack.c.l.b16 %v1950
        %v2233 = vunpack.c.h.b16 %v1950
        %v2234 = vunpack.c.l.b16 %v1951
        %v2235 = vunpack.c.h.b16 %v1951
        %v2236 = vunpack.c.l.b16 %v1952
        %v2237 = vunpack.c.h.b16 %v1952
        %v2238 = vunpack.c.l.b16 %v1953
        %v2239 = vunpack.c.h.b16 %v1953
        %v2240 = vunpack.c.l.b16 %v1954
        %v2241 = vunpack.c.h.b16 %v1954
        %v2242 = vunpack.c.l.b16 %v1955
        %v2243 = vunpack.c.h.b16 %v1955
        %v2244 = vunpack.c.l.b16 %v1956
        %v2245 = vunpack.c.h.b16 %v1956
        %v2246 = vunpack.c.l.b16 %v1957
        %v2247 = vunpack.c.h.b16 %v1957
        %v2248 = vunpack.c.l.b16 %v1958
        %v2249 = vunpack.c.h.b16 %v1958
        %v2250 = vunpack.c.l.b16 %v1959
        %v2251 = vunpack.c.h.b16 %v1959
        %v2252 = vunpack.c.l.b16 %v1960
        %v2253 = vunpack.c.h.b16 %v1960
        %v2254 = vunpack.c.l.b16 %v1961
        %v2255 = vunpack.c.h.b16 %v1961
        %v2256 = vunpack.c.l.b16 %v1962
        %v2257 = vunpack.c.h.b16 %v1962
        %v2258 = vunpack.c.l.b16 %v1963
        %v2259 = vunpack.c.h.b16 %v1963
        %v2260 = vunpack.c.l.b16 %v1964
        %v2261 = vunpack.c.h.b16 %v1964
        %v2262 = vunpack.c.l.b16 %v1965
        %v2263 = vunpack.c.h.b16 %v1965
        %v2264 = vunpack.c.l.b16 %v1966
        %v2265 = vunpack.c.h.b16 %v1966
        %v2266 = vunpack.c.l.b16 %v1967
        %v2267 = vunpack.c.h.b16 %v1967
        %v2268 = vunpack.c.l.b16 %v1968
        %v2269 = vunpack.c.h.b16 %v1968
        %v2270 = vunpack.c.l.b16 %v1969
        %v2271 = vunpack.c.h.b16 %v1969
        %v2272 = vunpack.c.l.b16 %v1970
        %v2273 = vunpack.c.h.b16 %v1970
        %v2274 = vunpack.c.l.b16 %v1971
        %v2275 = vunpack.c.h.b16 %v1971
        %v2276 = vunpack.c.l.b16 %v1972
        %v2277 = vunpack.c.h.b16 %v1972
        %v2278 = vunpack.c.l.b16 %v1973
        %v2279 = vunpack.c.h.b16 %v1973
        %v2280 = vunpack.c.l.b16 %v1974
        %v2281 = vunpack.c.h.b16 %v1974
        %v2282 = vunpack.c.l.b16 %v1975
        %v2283 = vunpack.c.h.b16 %v1975
        %v2284 = vunpack.c.l.b16 %v1976
        %v2285 = vunpack.c.h.b16 %v1976
        %v2286 = vunpack.c.l.b16 %v1977
        %v2287 = vunpack.c.h.b16 %v1977
        %v2288 = vunpack.c.l.b16 %v1978
        %v2289 = vunpack.c.h.b16 %v1978
        %v2290 = vunpack.c.l.b16 %v1979
        %v2291 = vunpack.c.h.b16 %v1979
        %v2292 = vunpack.c.l.b16 %v1980
        %v2293 = vunpack.c.h.b16 %v1980
        %v2294 = vunpack.c.l.b16 %v1981
        %v2295 = vunpack.c.h.b16 %v1981
        %v2296 = vunpack.c.l.b16 %v1982
        %v2297 = vunpack.c.h.b16 %v1982
        %v2298 = vunpack.c.l.b16 %v1983
        %v2299 = vunpack.c.h.b16 %v1983
        %v2300 = vunpack.c.l.b16 %v1984
        %v2301 = vunpack.c.h.b16 %v1984
        %v2302 = vunpack.c.l.b16 %v1985
        %v2303 = vunpack.c.h.b16 %v1985
        %v2304 = vunpack.c.l.b16 %v1986
        %v2305 = vunpack.c.h.b16 %v1986
        %v2306 = vunpack.c.l.b16 %v1987
        %v2307 = vunpack.c.h.b16 %v1987
        %v2308 = vunpack.c.l.b16 %v1988
        %v2309 = vunpack.c.h.b16 %v1988
        %v2310 = vunpack.c.l.b16 %v1989
        %v2311 = vunpack.c.h.b16 %v1989
        %v2312 = vunpack.c.l.b16 %v1990
        %v2313 = vunpack.c.h.b16 %v1990
        %v2314 = vunpack.c.l.b16 %v1991
        %v2315 = vunpack.c.h.b16 %v1991
        %v2316 = vunpack.c.l.b16 %v1992
        %v2317 = vunpack.c.h.b16 %v1992
        %v2318 = vunpack.c.l.b16 %v1993
        %v2319 = vunpack.c.h.b16 %v1993
        %v2320 = vunpack.c.l.b16 %v1994
        %v2321 = vunpack.c.h.b16 %v1994
        %v2322 = vunpack.c.l.b16 %v1995
        %v2323 = vunpack.c.h.b16 %v1995
        %v2324 = vunpack.c.l.b16 %v1996
        %v2325 = vunpack.c.h.b16 %v1996
        %v2326 = vunpack.c.l.b16 %v1997
        %v2327 = vunpack.c.h.b16 %v1997
        %v2328 = vunpack.c.l.b16 %v1998
        %v2329 = vunpack.c.h.b16 %v1998
        %v2330 = vunpack.c.l.b16 %v1999
        %v2331 = vunpack.c.h.b16 %v1999
        %v2332 = vunpack.c.l.b16 %v2000
        %v2333 = vunpack.c.h.b16 %v2000
        %v2334 = vunpack.c.l.b16 %v2001
        %v2335 = vunpack.c.h.b16 %v2001
        %v2336 = vunpack.c.l.b16 %v2002
        %v2337 = vunpack.c.h.b16 %v2002
        %v2338 = vunpack.c.l.b16 %v2003
        %v2339 = vunpack.c.h.b16 %v2003
        %v2340 = vunpack.c.l.b16 %v2004
        %v2341 = vunpack.c.h.b16 %v2004
        %v2342 = vunpack.c.l.b16 %v2005
        %v2343 = vunpack.c.h.b16 %v2005
        %v2344 = vunpack.c.l.b16 %v2006
        %v2345 = vunpack.c.h.b16 %v2006
        %v2346 = vunpack.c.l.b16 %v2007
        %v2347 = vunpack.c.h.b16 %v2007
        %v2348 = vunpack.c.l.b16 %v2008
        %v2349 = vunpack.c.h.b16 %v2008
        %v2350 = vunpack.c.l.b16 %v2009
        %v2351 = vunpack.c.h.b16 %v2009
        %v2352 = vunpack.c.l.b16 %v2010
        %v2353 = vunpack.c.h.b16 %v2010
        %v2354 = vunpack.c.l.b16 %v2011
        %v2355 = vunpack.c.h.b16 %v2011
        %v2356 = vunpack.c.l.b16 %v2012
        %v2357 = vunpack.c.h.b16 %v2012
        %v2358 = vunpack.c.l.b16 %v2013
        %v2359 = vunpack.c.h.b16 %v2013
        %v2360 = vunpack.c.l.b16 %v2014
        %v2361 = vunpack.c.h.b16 %v2014
        %v2362 = vunpack.c.l.b16 %v2015
        %v2363 = vunpack.c.h.b16 %v2015
        %v2364 = vunpack.c.l.b16 %v2016
        %v2365 = vunpack.c.h.b16 %v2016
        %v2366 = vunpack.c.l.b16 %v2017
        %v2367 = vunpack.c.h.b16 %v2017
        %v2368 = vunpack.c.l.b16 %v2018
        %v2369 = vunpack.c.h.b16 %v2018
        %v2370 = vunpack.c.l.b16 %v2019
        %v2371 = vunpack.c.h.b16 %v2019
        %v2372 = vunpack.c.l.b16 %v2020
        %v2373 = vunpack.c.h.b16 %v2020
        %v2374 = vunpack.c.l.b16 %v2021
        %v2375 = vunpack.c.h.b16 %v2021
        %v2376 = vunpack.c.l.b16 %v2022
        %v2377 = vunpack.c.h.b16 %v2022
        %v2378 = vunpack.c.l.b16 %v2023
        %v2379 = vunpack.c.h.b16 %v2023
        %v2380 = vunpack.c.l.b16 %v2024
        %v2381 = vunpack.c.h.b16 %v2024
        %v2382 = vunpack.c.l.b16 %v2025
        %v2383 = vunpack.c.h.b16 %v2025
        %v2384 = vunpack.c.l.b16 %v2026
        %v2385 = vunpack.c.h.b16 %v2026
        %v2386 = vunpack.c.l.b16 %v2027
        %v2387 = vunpack.c.h.b16 %v2027
        %v2388 = vunpack.c.l.b16 %v2028
        %v2389 = vunpack.c.h.b16 %v2028
        %v2390 = vunpack.c.l.b16 %v2029
        %v2391 = vunpack.c.h.b16 %v2029
        %v2392 = vunpack.c.l.b16 %v2030
        %v2393 = vunpack.c.h.b16 %v2030
        %v2394 = vunpack.c.l.b16 %v2031
        %v2395 = vunpack.c.h.b16 %v2031
        %v2396 = vunpack.c.l.b16 %v2032
        %v2397 = vunpack.c.h.b16 %v2032
        %v2398 = vunpack.c.l.b16 %v2033
        %v2399 = vunpack.c.h.b16 %v2033
        %v2400 = vunpack.c.l.b16 %v2034
        %v2401 = vunpack.c.h.b16 %v2034
        %v2402 = vunpack.c.l.b16 %v2035
        %v2403 = vunpack.c.h.b16 %v2035
        %v2404 = vunpack.c.l.b16 %v2036
        %v2405 = vunpack.c.h.b16 %v2036
        %v2406 = vunpack.c.l.b16 %v2037
        %v2407 = vunpack.c.h.b16 %v2037
        %v2408 = vunpack.c.l.b16 %v2038
        %v2409 = vunpack.c.h.b16 %v2038
        %v2410 = vunpack.c.l.b16 %v2039
        %v2411 = vunpack.c.h.b16 %v2039
        %v2412 = vunpack.c.l.b16 %v2040
        %v2413 = vunpack.c.h.b16 %v2040
        %v2414 = vunpack.c.l.b16 %v2041
        %v2415 = vunpack.c.h.b16 %v2041
        %v2416 = vunpack.c.l.b16 %v2042
        %v2417 = vunpack.c.h.b16 %v2042
        %v2418 = vunpack.c.l.b16 %v2043
        %v2419 = vunpack.c.h.b16 %v2043
        %v2420 = vunpack.c.l.b16 %v2044
        %v2421 = vunpack.c.h.b16 %v2044
        %v2422 = vunpack.c.l.b16 %v2045
        %v2423 = vunpack.c.h.b16 %v2045
        %v2424 = vunpack.c.l.b16 %v2046
        %v2425 = vunpack.c.h.b16 %v2046
        %v2426 = vunpack.c.l.b16 %v2047
        %v2427 = vunpack.c.h.b16 %v2047
        %v2428 = vunpack.c.l.b16 %v2048
        %v2429 = vunpack.c.h.b16 %v2048
        %v2430 = vunpack.c.l.b16 %v2049
        %v2431 = vunpack.c.h.b16 %v2049
        %v2432 = vunpack.c.l.b16 %v2050
        %v2433 = vunpack.c.h.b16 %v2050
        %v2434 = vunpack.c.l.b16 %v2051
        %v2435 = vunpack.c.h.b16 %v2051
        %v2436 = vpack.c.b16 %v2184, %v2180
        %v2437 = vpack.c.b16 %v2185, %v2181
        %v2438 = vpack.c.b16 %v2186, %v2182
        %v2439 = vpack.c.b16 %v2187, %v2183
        %v2440 = vpack.c.b16 %v2192, %v2188
        %v2441 = vpack.c.b16 %v2193, %v2189
        %v2442 = vpack.c.b16 %v2194, %v2190
        %v2443 = vpack.c.b16 %v2195, %v2191
        %v2444 = vpack.c.b16 %v2200, %v2196
        %v2445 = vpack.c.b16 %v2201, %v2197
        %v2446 = vpack.c.b16 %v2202, %v2198
        %v2447 = vpack.c.b16 %v2203, %v2199
        %v2448 = vpack.c.b16 %v2208, %v2204
        %v2449 = vpack.c.b16 %v2209, %v2205
        %v2450 = vpack.c.b16 %v2210, %v2206
        %v2451 = vpack.c.b16 %v2211, %v2207
        %v2452 = vpack.c.b16 %v2216, %v2212
        %v2453 = vpack.c.b16 %v2217, %v2213
        %v2454 = vpack.c.b16 %v2218, %v2214
        %v2455 = vpack.c.b16 %v2219, %v2215
        %v2456 = vpack.c.b16 %v2224, %v2220
        %v2457 = vpack.c.b16 %v2225, %v2221
        %v2458 = vpack.c.b16 %v2226, %v2222
        %v2459 = vpack.c.b16 %v2227, %v2223
        %v2460 = vpack.c.b16 %v2232, %v2228
        %v2461 = vpack.c.b16 %v2233, %v2229
        %v2462 = vpack.c.b16 %v2234, %v2230
        %v2463 = vpack.c.b16 %v2235, %v2231
        %v2464 = vpack.c.b16 %v2240, %v2236
        %v2465 = vpack.c.b16 %v2241, %v2237
        %v2466 = vpack.c.b16 %v2242, %v2238
        %v2467 = vpack.c.b16 %v2243, %v2239
        %v2468 = vpack.c.b16 %v2248, %v2244
        %v2469 = vpack.c.b16 %v2249, %v2245
        %v2470 = vpack.c.b16 %v2250, %v2246
        %v2471 = vpack.c.b16 %v2251, %v2247
        %v2472 = vpack.c.b16 %v2256, %v2252
        %v2473 = vpack.c.b16 %v2257, %v2253
        %v2474 = vpack.c.b16 %v2258, %v2254
        %v2475 = vpack.c.b16 %v2259, %v2255
        %v2476 = vpack.c.b16 %v2264, %v2260
        %v2477 = vpack.c.b16 %v2265, %v2261
        %v2478 = vpack.c.b16 %v2266, %v2262
        %v2479 = vpack.c.b16 %v2267, %v2263
        %v2480 = vpack.c.b16 %v2272, %v2268
        %v2481 = vpack.c.b16 %v2273, %v2269
        %v2482 = vpack.c.b16 %v2274, %v2270
        %v2483 = vpack.c.b16 %v2275, %v2271
        %v2484 = vpack.c.b16 %v2280, %v2276
        %v2485 = vpack.c.b16 %v2281, %v2277
        %v2486 = vpack.c.b16 %v2282, %v2278
        %v2487 = vpack.c.b16 %v2283, %v2279
        %v2488 = vpack.c.b16 %v2288, %v2284
        %v2489 = vpack.c.b16 %v2289, %v2285
        %v2490 = vpack.c.b16 %v2290, %v2286
        %v2491 = vpack.c.b16 %v2291, %v2287
        %v2492 = vpack.c.b16 %v2296, %v2292
        %v2493 = vpack.c.b16 %v2297, %v2293
        %v2494 = vpack.c.b16 %v2298, %v2294
        %v2495 = vpack.c.b16 %v2299, %v2295
        %v2496 = vpack.c.b16 %v2304, %v2300
        %v2497 = vpack.c.b16 %v2305, %v2301
        %v2498 = vpack.c.b16 %v2306, %v2302
        %v2499 = vpack.c.b16 %v2307, %v2303
        %v2500 = vpack.c.b16 %v2312, %v2308
        %v2501 = vpack.c.b16 %v2313, %v2309
        %v2502 = vpack.c.b16 %v2314, %v2310
        %v2503 = vpack.c.b16 %v2315, %v2311
        %v2504 = vpack.c.b16 %v2320, %v2316
        %v2505 = vpack.c.b16 %v2321, %v2317
        %v2506 = vpack.c.b16 %v2322, %v2318
        %v2507 = vpack.c.b16 %v2323, %v2319
        %v2508 = vpack.c.b16 %v2328, %v2324
        %v2509 = vpack.c.b16 %v2329, %v2325
        %v2510 = vpack.c.b16 %v2330, %v2326
        %v2511 = vpack.c.b16 %v2331, %v2327
        %v2512 = vpack.c.b16 %v2336, %v2332
        %v2513 = vpack.c.b16 %v2337, %v2333
        %v2514 = vpack.c.b16 %v2338, %v2334
        %v2515 = vpack.c.b16 %v2339, %v2335
        %v2516 = vpack.c.b16 %v2344, %v2340
        %v2517 = vpack.c.b16 %v2345, %v2341
        %v2518 = vpack.c.b16 %v2346, %v2342
        %v2519 = vpack.c.b16 %v2347, %v2343
        %v2520 = vpack.c.b16 %v2352, %v2348
        %v2521 = vpack.c.b16 %v2353, %v2349
        %v2522 = vpack.c.b16 %v2354, %v2350
        %v2523 = vpack.c.b16 %v2355, %v2351
        %v2524 = vpack.c.b16 %v2360, %v2356
        %v2525 = vpack.c.b16 %v2361, %v2357
        %v2526 = vpack.c.b16 %v2362, %v2358
        %v2527 = vpack.c.b16 %v2363, %v2359
        %v2528 = vpack.c.b16 %v2368, %v2364
        %v2529 = vpack.c.b16 %v2369, %v2365
        %v2530 = vpack.c.b16 %v2370, %v2366
        %v2531 = vpack.c.b16 %v2371, %v2367
        %v2532 = vpack.c.b16 %v2376, %v2372
        %v2533 = vpack.c.b16 %v2377, %v2373
        %v2534 = vpack.c.b16 %v2378, %v2374
        %v2535 = vpack.c.b16 %v2379, %v2375
        %v2536 = vpack.c.b16 %v2384, %v2380
        %v2537 = vpack.c.b16 %v2385, %v2381
        %v2538 = vpack.c.b16 %v2386, %v2382
        %v2539 = vpack.c.b16 %v2387, %v2383
        %v2540 = vpack.c.b16 %v2392, %v2388
        %v2541 = vpack.c.b16 %v2393, %v2389
        %v2542 = vpack.c.b16 %v2394, %v2390
        %v2543 = vpack.c.b16 %v2395, %v2391
        %v2544 = vpack.c.b16 %v2400, %v2396
        %v2545 = vpack.c.b16 %v2401, %v2397
        %v2546 = vpack.c.b16 %v2402, %v2398
        %v2547 = vpack.c.b16 %v2403, %v2399
        %v2548 = vpack.c.b16 %v2408, %v2404
        %v2549 = vpack.c.b16 %v2409, %v2405
        %v2550 = vpack.c.b16 %v2410, %v2406
        %v2551 = vpack.c.b16 %v2411, %v2407
        %v2552 = vpack.c.b16 %v2416, %v2412
        %v2553 = vpack.c.b16 %v2417, %v2413
        %v2554 = vpack.c.b16 %v2418, %v2414
        %v2555 = vpack.c.b16 %v2419, %v2415
        %v2556 = vpack.c.b16 %v2424, %v2420
        %v2557 = vpack.c.b16 %v2425, %v2421
        %v2558 = vpack.c.b16 %v2426, %v2422
        %v2559 = vpack.c.b16 %v2427, %v2423
        %v2560 = vpack.c.b16 %v2432, %v2428
        %v2561 = vpack.c.b16 %v2433, %v2429
        %v2562 = vpack.c.b16 %v2434, %v2430
        %v2563 = vpack.c.b16 %v2435, %v2431
        %2692 = vmatpush.bf16.msra.mxu0 %v2464
        %2693 = vmatpush.bf16.msra.mxu0 %v2460
        %2694 = vmatpush.bf16.msra.mxu0 %v2456
        %2695 = vmatpush.bf16.msra.mxu0 %v2452
        %2696 = vmatpush.bf16.msra.mxu0 %v2448
        %2697 = vmatpush.bf16.msra.mxu0 %v2444
        %2698 = vmatpush.bf16.msra.mxu0 %v2440
        %2699 = vmatpush.bf16.msra.mxu0 %v2436
        %2700 = vmatmul.bf16.gmra.mxu0 %v1920
        %v2701 = vpop.f32.mrf.mxu0
        %v2702 = vadd.f32 0.0, %v2701
        %v2703 = vpop.f32.mrf.mxu0
        %v2704 = vadd.f32 0.0, %v2703
        %2705 = vdwg.mxu0
        %2706 = vmatpush.bf16.msra.mxu0 %v2496
        %2707 = vmatpush.bf16.msra.mxu0 %v2492
        %2708 = vmatpush.bf16.msra.mxu0 %v2488
        %2709 = vmatpush.bf16.msra.mxu0 %v2484
        %2710 = vmatpush.bf16.msra.mxu0 %v2480
        %2711 = vmatpush.bf16.msra.mxu0 %v2476
        %2712 = vmatpush.bf16.msra.mxu0 %v2472
        %2713 = vmatpush.bf16.msra.mxu0 %v2468
        %2714 = vmatmul.bf16.gmra.mxu0 %v1921
        %v2715 = vpop.f32.mrf.mxu0
        %v2716 = vadd.f32 %v2702, %v2715
        %v2717 = vpop.f32.mrf.mxu0
        %v2718 = vadd.f32 %v2704, %v2717
        %2719 = vdwg.mxu0
        %2720 = vmatpush.bf16.msra.mxu0 %v2528
        %2721 = vmatpush.bf16.msra.mxu0 %v2524
        %2722 = vmatpush.bf16.msra.mxu0 %v2520
        %2723 = vmatpush.bf16.msra.mxu0 %v2516
        %2724 = vmatpush.bf16.msra.mxu0 %v2512
        %2725 = vmatpush.bf16.msra.mxu0 %v2508
        %2726 = vmatpush.bf16.msra.mxu0 %v2504
        %2727 = vmatpush.bf16.msra.mxu0 %v2500
        %2728 = vmatmul.bf16.gmra.mxu0 %v1922
        %v2729 = vpop.f32.mrf.mxu0
        %v2730 = vadd.f32 %v2716, %v2729
        %v2731 = vpop.f32.mrf.mxu0
        %v2732 = vadd.f32 %v2718, %v2731
        %2733 = vdwg.mxu0
        %2734 = vmatpush.bf16.msra.mxu0 %v2560
        %2735 = vmatpush.bf16.msra.mxu0 %v2556
        %2736 = vmatpush.bf16.msra.mxu0 %v2552
        %2737 = vmatpush.bf16.msra.mxu0 %v2548
        %2738 = vmatpush.bf16.msra.mxu0 %v2544
        %2739 = vmatpush.bf16.msra.mxu0 %v2540
        %2740 = vmatpush.bf16.msra.mxu0 %v2536
        %2741 = vmatpush.bf16.msra.mxu0 %v2532
        %2742 = vmatmul.bf16.gmra.mxu0 %v1923
        %v2743 = vpop.f32.mrf.mxu0
        %v2744 = vadd.f32 %v2730, %v2743
        %v2745 = vpop.f32.mrf.mxu0
        %v2746 = vadd.f32 %v2732, %v2745
        %2747 = vdwg.mxu0
        %2748 = vmatpush.bf16.msra.mxu0 %v2465
        %2749 = vmatpush.bf16.msra.mxu0 %v2461
        %2750 = vmatpush.bf16.msra.mxu0 %v2457
        %2751 = vmatpush.bf16.msra.mxu0 %v2453
        %2752 = vmatpush.bf16.msra.mxu0 %v2449
        %2753 = vmatpush.bf16.msra.mxu0 %v2445
        %2754 = vmatpush.bf16.msra.mxu0 %v2441
        %2755 = vmatpush.bf16.msra.mxu0 %v2437
        %2756 = vmatmul.bf16.gmra.mxu0 %v1920
        %v2757 = vpop.f32.mrf.mxu0
        %v2758 = vadd.f32 0.0, %v2757
        %v2759 = vpop.f32.mrf.mxu0
        %v2760 = vadd.f32 0.0, %v2759
        %2761 = vdwg.mxu0
        %2762 = vmatpush.bf16.msra.mxu0 %v2497
        %2763 = vmatpush.bf16.msra.mxu0 %v2493
        %2764 = vmatpush.bf16.msra.mxu0 %v2489
        %2765 = vmatpush.bf16.msra.mxu0 %v2485
        %2766 = vmatpush.bf16.msra.mxu0 %v2481
        %2767 = vmatpush.bf16.msra.mxu0 %v2477
        %2768 = vmatpush.bf16.msra.mxu0 %v2473
        %2769 = vmatpush.bf16.msra.mxu0 %v2469
        %2770 = vmatmul.bf16.gmra.mxu0 %v1921
        %v2771 = vpop.f32.mrf.mxu0
        %v2772 = vadd.f32 %v2758, %v2771
        %v2773 = vpop.f32.mrf.mxu0
        %v2774 = vadd.f32 %v2760, %v2773
        %2775 = vdwg.mxu0
        %2776 = vmatpush.bf16.msra.mxu0 %v2529
        %2777 = vmatpush.bf16.msra.mxu0 %v2525
        %2778 = vmatpush.bf16.msra.mxu0 %v2521
        %2779 = vmatpush.bf16.msra.mxu0 %v2517
        %2780 = vmatpush.bf16.msra.mxu0 %v2513
        %2781 = vmatpush.bf16.msra.mxu0 %v2509
        %2782 = vmatpush.bf16.msra.mxu0 %v2505
        %2783 = vmatpush.bf16.msra.mxu0 %v2501
        %2784 = vmatmul.bf16.gmra.mxu0 %v1922
        %v2785 = vpop.f32.mrf.mxu0
        %v2786 = vadd.f32 %v2772, %v2785
        %v2787 = vpop.f32.mrf.mxu0
        %v2788 = vadd.f32 %v2774, %v2787
        %2789 = vdwg.mxu0
        %2790 = vmatpush.bf16.msra.mxu0 %v2561
        %2791 = vmatpush.bf16.msra.mxu0 %v2557
        %2792 = vmatpush.bf16.msra.mxu0 %v2553
        %2793 = vmatpush.bf16.msra.mxu0 %v2549
        %2794 = vmatpush.bf16.msra.mxu0 %v2545
        %2795 = vmatpush.bf16.msra.mxu0 %v2541
        %2796 = vmatpush.bf16.msra.mxu0 %v2537
        %2797 = vmatpush.bf16.msra.mxu0 %v2533
        %2798 = vmatmul.bf16.gmra.mxu0 %v1923
        %v2799 = vpop.f32.mrf.mxu0
        %v2800 = vadd.f32 %v2786, %v2799
        %v2801 = vpop.f32.mrf.mxu0
        %v2802 = vadd.f32 %v2788, %v2801
        %2803 = vdwg.mxu0
        %2804 = vmatpush.bf16.msra.mxu0 %v2466
        %2805 = vmatpush.bf16.msra.mxu0 %v2462
        %2806 = vmatpush.bf16.msra.mxu0 %v2458
        %2807 = vmatpush.bf16.msra.mxu0 %v2454
        %2808 = vmatpush.bf16.msra.mxu0 %v2450
        %2809 = vmatpush.bf16.msra.mxu0 %v2446
        %2810 = vmatpush.bf16.msra.mxu0 %v2442
        %2811 = vmatpush.bf16.msra.mxu0 %v2438
        %2812 = vmatmul.bf16.gmra.mxu0 %v1920
        %v2813 = vpop.f32.mrf.mxu0
        %v2814 = vadd.f32 0.0, %v2813
        %v2815 = vpop.f32.mrf.mxu0
        %v2816 = vadd.f32 0.0, %v2815
        %2817 = vdwg.mxu0
        %2818 = vmatpush.bf16.msra.mxu0 %v2498
        %2819 = vmatpush.bf16.msra.mxu0 %v2494
        %2820 = vmatpush.bf16.msra.mxu0 %v2490
        %2821 = vmatpush.bf16.msra.mxu0 %v2486
        %2822 = vmatpush.bf16.msra.mxu0 %v2482
        %2823 = vmatpush.bf16.msra.mxu0 %v2478
        %2824 = vmatpush.bf16.msra.mxu0 %v2474
        %2825 = vmatpush.bf16.msra.mxu0 %v2470
        %2826 = vmatmul.bf16.gmra.mxu0 %v1921
        %v2827 = vpop.f32.mrf.mxu0
        %v2828 = vadd.f32 %v2814, %v2827
        %v2829 = vpop.f32.mrf.mxu0
        %v2830 = vadd.f32 %v2816, %v2829
        %2831 = vdwg.mxu0
        %2832 = vmatpush.bf16.msra.mxu0 %v2530
        %2833 = vmatpush.bf16.msra.mxu0 %v2526
        %2834 = vmatpush.bf16.msra.mxu0 %v2522
        %2835 = vmatpush.bf16.msra.mxu0 %v2518
        %2836 = vmatpush.bf16.msra.mxu0 %v2514
        %2837 = vmatpush.bf16.msra.mxu0 %v2510
        %2838 = vmatpush.bf16.msra.mxu0 %v2506
        %2839 = vmatpush.bf16.msra.mxu0 %v2502
        %2840 = vmatmul.bf16.gmra.mxu0 %v1922
        %v2841 = vpop.f32.mrf.mxu0
        %v2842 = vadd.f32 %v2828, %v2841
        %v2843 = vpop.f32.mrf.mxu0
        %v2844 = vadd.f32 %v2830, %v2843
        %2845 = vdwg.mxu0
        %2846 = vmatpush.bf16.msra.mxu0 %v2562
        %2847 = vmatpush.bf16.msra.mxu0 %v2558
        %2848 = vmatpush.bf16.msra.mxu0 %v2554
        %2849 = vmatpush.bf16.msra.mxu0 %v2550
        %2850 = vmatpush.bf16.msra.mxu0 %v2546
        %2851 = vmatpush.bf16.msra.mxu0 %v2542
        %2852 = vmatpush.bf16.msra.mxu0 %v2538
        %2853 = vmatpush.bf16.msra.mxu0 %v2534
        %2854 = vmatmul.bf16.gmra.mxu0 %v1923
        %v2855 = vpop.f32.mrf.mxu0
        %v2856 = vadd.f32 %v2842, %v2855
        %v2857 = vpop.f32.mrf.mxu0
        %v2858 = vadd.f32 %v2844, %v2857
        %2859 = vdwg.mxu0
        %2860 = vmatpush.bf16.msra.mxu0 %v2467
        %2861 = vmatpush.bf16.msra.mxu0 %v2463
        %2862 = vmatpush.bf16.msra.mxu0 %v2459
        %2863 = vmatpush.bf16.msra.mxu0 %v2455
        %2864 = vmatpush.bf16.msra.mxu0 %v2451
        %2865 = vmatpush.bf16.msra.mxu0 %v2447
        %2866 = vmatpush.bf16.msra.mxu0 %v2443
        %2867 = vmatpush.bf16.msra.mxu0 %v2439
        %2868 = vmatmul.bf16.gmra.mxu0 %v1920
        %v2869 = vpop.f32.mrf.mxu0
        %v2870 = vadd.f32 0.0, %v2869
        %v2871 = vpop.f32.mrf.mxu0
        %v2872 = vadd.f32 0.0, %v2871
        %2873 = vdwg.mxu0
        %2874 = vmatpush.bf16.msra.mxu0 %v2499
        %2875 = vmatpush.bf16.msra.mxu0 %v2495
        %2876 = vmatpush.bf16.msra.mxu0 %v2491
        %2877 = vmatpush.bf16.msra.mxu0 %v2487
        %2878 = vmatpush.bf16.msra.mxu0 %v2483
        %2879 = vmatpush.bf16.msra.mxu0 %v2479
        %2880 = vmatpush.bf16.msra.mxu0 %v2475
        %2881 = vmatpush.bf16.msra.mxu0 %v2471
        %2882 = vmatmul.bf16.gmra.mxu0 %v1921
        %v2883 = vpop.f32.mrf.mxu0
        %v2884 = vadd.f32 %v2870, %v2883
        %v2885 = vpop.f32.mrf.mxu0
        %v2886 = vadd.f32 %v2872, %v2885
        %2887 = vdwg.mxu0
        %2888 = vmatpush.bf16.msra.mxu0 %v2531
        %2889 = vmatpush.bf16.msra.mxu0 %v2527
        %2890 = vmatpush.bf16.msra.mxu0 %v2523
        %2891 = vmatpush.bf16.msra.mxu0 %v2519
        %2892 = vmatpush.bf16.msra.mxu0 %v2515
        %2893 = vmatpush.bf16.msra.mxu0 %v2511
        %2894 = vmatpush.bf16.msra.mxu0 %v2507
        %2895 = vmatpush.bf16.msra.mxu0 %v2503
        %2896 = vmatmul.bf16.gmra.mxu0 %v1922
        %v2897 = vpop.f32.mrf.mxu0
        %v2898 = vadd.f32 %v2884, %v2897
        %v2899 = vpop.f32.mrf.mxu0
        %v2900 = vadd.f32 %v2886, %v2899
        %2901 = vdwg.mxu0
        %2902 = vmatpush.bf16.msra.mxu0 %v2563
        %2903 = vmatpush.bf16.msra.mxu0 %v2559
        %2904 = vmatpush.bf16.msra.mxu0 %v2555
        %2905 = vmatpush.bf16.msra.mxu0 %v2551
        %2906 = vmatpush.bf16.msra.mxu0 %v2547
        %2907 = vmatpush.bf16.msra.mxu0 %v2543
        %2908 = vmatpush.bf16.msra.mxu0 %v2539
        %2909 = vmatpush.bf16.msra.mxu0 %v2535
        %2910 = vmatmul.bf16.gmra.mxu0 %v1923
        %v2911 = vpop.f32.mrf.mxu0
        %v2912 = vadd.f32 %v2898, %v2911
        %v2913 = vpop.f32.mrf.mxu0
        %v2914 = vadd.f32 %v2900, %v2913
        %2915 = vdwg.mxu0
        %s2916 = scalar_lea.vmem [#allocation17], 1024
        %v2917 = vld [vmem:[%s2916] sm:$0xff]
        %v2918 = vld [vmem:[%s2916 + $0x8] sm:$0xff]
        %v2919 = vld [vmem:[%s2916 + $0x10] sm:$0xff]
        %v2920 = vld [vmem:[%s2916 + $0x18] sm:$0xff]
        %v2921 = vld [vmem:[%s2916 + $0x20] sm:$0xff]
        %v2922 = vld [vmem:[%s2916 + $0x28] sm:$0xff]
        %v2923 = vld [vmem:[%s2916 + $0x30] sm:$0xff]
        %v2924 = vld [vmem:[%s2916 + $0x38] sm:$0xff]
        %v2925 = vld [vmem:[%s2916 + $0x40] sm:$0xff]
        %v2926 = vld [vmem:[%s2916 + $0x48] sm:$0xff]
        %v2927 = vld [vmem:[%s2916 + $0x50] sm:$0xff]
        %v2928 = vld [vmem:[%s2916 + $0x58] sm:$0xff]
        %v2929 = vld [vmem:[%s2916 + $0x60] sm:$0xff]
        %v2930 = vld [vmem:[%s2916 + $0x68] sm:$0xff]
        %v2931 = vld [vmem:[%s2916 + $0x70] sm:$0xff]
        %v2932 = vld [vmem:[%s2916 + $0x78] sm:$0xff]
        %v2933 = vld [vmem:[%s2916 + $0x80] sm:$0xff]
        %v2934 = vld [vmem:[%s2916 + $0x88] sm:$0xff]
        %v2935 = vld [vmem:[%s2916 + $0x90] sm:$0xff]
        %v2936 = vld [vmem:[%s2916 + $0x98] sm:$0xff]
        %v2937 = vld [vmem:[%s2916 + $0xa0] sm:$0xff]
        %v2938 = vld [vmem:[%s2916 + $0xa8] sm:$0xff]
        %v2939 = vld [vmem:[%s2916 + $0xb0] sm:$0xff]
        %v2940 = vld [vmem:[%s2916 + $0xb8] sm:$0xff]
        %v2941 = vld [vmem:[%s2916 + $0xc0] sm:$0xff]
        %v2942 = vld [vmem:[%s2916 + $0xc8] sm:$0xff]
        %v2943 = vld [vmem:[%s2916 + $0xd0] sm:$0xff]
        %v2944 = vld [vmem:[%s2916 + $0xd8] sm:$0xff]
        %v2945 = vld [vmem:[%s2916 + $0xe0] sm:$0xff]
        %v2946 = vld [vmem:[%s2916 + $0xe8] sm:$0xff]
        %v2947 = vld [vmem:[%s2916 + $0xf0] sm:$0xff]
        %v2948 = vld [vmem:[%s2916 + $0xf8] sm:$0xff]
        %v2949 = vld [vmem:[%s2916 + $0x100] sm:$0xff]
        %v2950 = vld [vmem:[%s2916 + $0x108] sm:$0xff]
        %v2951 = vld [vmem:[%s2916 + $0x110] sm:$0xff]
        %v2952 = vld [vmem:[%s2916 + $0x118] sm:$0xff]
        %v2953 = vld [vmem:[%s2916 + $0x120] sm:$0xff]
        %v2954 = vld [vmem:[%s2916 + $0x128] sm:$0xff]
        %v2955 = vld [vmem:[%s2916 + $0x130] sm:$0xff]
        %v2956 = vld [vmem:[%s2916 + $0x138] sm:$0xff]
        %v2957 = vld [vmem:[%s2916 + $0x140] sm:$0xff]
        %v2958 = vld [vmem:[%s2916 + $0x148] sm:$0xff]
        %v2959 = vld [vmem:[%s2916 + $0x150] sm:$0xff]
        %v2960 = vld [vmem:[%s2916 + $0x158] sm:$0xff]
        %v2961 = vld [vmem:[%s2916 + $0x160] sm:$0xff]
        %v2962 = vld [vmem:[%s2916 + $0x168] sm:$0xff]
        %v2963 = vld [vmem:[%s2916 + $0x170] sm:$0xff]
        %v2964 = vld [vmem:[%s2916 + $0x178] sm:$0xff]
        %v2965 = vld [vmem:[%s2916 + $0x180] sm:$0xff]
        %v2966 = vld [vmem:[%s2916 + $0x188] sm:$0xff]
        %v2967 = vld [vmem:[%s2916 + $0x190] sm:$0xff]
        %v2968 = vld [vmem:[%s2916 + $0x198] sm:$0xff]
        %v2969 = vld [vmem:[%s2916 + $0x1a0] sm:$0xff]
        %v2970 = vld [vmem:[%s2916 + $0x1a8] sm:$0xff]
        %v2971 = vld [vmem:[%s2916 + $0x1b0] sm:$0xff]
        %v2972 = vld [vmem:[%s2916 + $0x1b8] sm:$0xff]
        %v2973 = vld [vmem:[%s2916 + $0x1c0] sm:$0xff]
        %v2974 = vld [vmem:[%s2916 + $0x1c8] sm:$0xff]
        %v2975 = vld [vmem:[%s2916 + $0x1d0] sm:$0xff]
        %v2976 = vld [vmem:[%s2916 + $0x1d8] sm:$0xff]
        %v2977 = vld [vmem:[%s2916 + $0x1e0] sm:$0xff]
        %v2978 = vld [vmem:[%s2916 + $0x1e8] sm:$0xff]
        %v2979 = vld [vmem:[%s2916 + $0x1f0] sm:$0xff]
        %v2980 = vld [vmem:[%s2916 + $0x1f8] sm:$0xff]
        %v2981 = vld [vmem:[%s2916 + $0x200] sm:$0xff]
        %v2982 = vld [vmem:[%s2916 + $0x208] sm:$0xff]
        %v2983 = vld [vmem:[%s2916 + $0x210] sm:$0xff]
        %v2984 = vld [vmem:[%s2916 + $0x218] sm:$0xff]
        %v2985 = vld [vmem:[%s2916 + $0x220] sm:$0xff]
        %v2986 = vld [vmem:[%s2916 + $0x228] sm:$0xff]
        %v2987 = vld [vmem:[%s2916 + $0x230] sm:$0xff]
        %v2988 = vld [vmem:[%s2916 + $0x238] sm:$0xff]
        %v2989 = vld [vmem:[%s2916 + $0x240] sm:$0xff]
        %v2990 = vld [vmem:[%s2916 + $0x248] sm:$0xff]
        %v2991 = vld [vmem:[%s2916 + $0x250] sm:$0xff]
        %v2992 = vld [vmem:[%s2916 + $0x258] sm:$0xff]
        %v2993 = vld [vmem:[%s2916 + $0x260] sm:$0xff]
        %v2994 = vld [vmem:[%s2916 + $0x268] sm:$0xff]
        %v2995 = vld [vmem:[%s2916 + $0x270] sm:$0xff]
        %v2996 = vld [vmem:[%s2916 + $0x278] sm:$0xff]
        %v2997 = vld [vmem:[%s2916 + $0x280] sm:$0xff]
        %v2998 = vld [vmem:[%s2916 + $0x288] sm:$0xff]
        %v2999 = vld [vmem:[%s2916 + $0x290] sm:$0xff]
        %v3000 = vld [vmem:[%s2916 + $0x298] sm:$0xff]
        %v3001 = vld [vmem:[%s2916 + $0x2a0] sm:$0xff]
        %v3002 = vld [vmem:[%s2916 + $0x2a8] sm:$0xff]
        %v3003 = vld [vmem:[%s2916 + $0x2b0] sm:$0xff]
        %v3004 = vld [vmem:[%s2916 + $0x2b8] sm:$0xff]
        %v3005 = vld [vmem:[%s2916 + $0x2c0] sm:$0xff]
        %v3006 = vld [vmem:[%s2916 + $0x2c8] sm:$0xff]
        %v3007 = vld [vmem:[%s2916 + $0x2d0] sm:$0xff]
        %v3008 = vld [vmem:[%s2916 + $0x2d8] sm:$0xff]
        %v3009 = vld [vmem:[%s2916 + $0x2e0] sm:$0xff]
        %v3010 = vld [vmem:[%s2916 + $0x2e8] sm:$0xff]
        %v3011 = vld [vmem:[%s2916 + $0x2f0] sm:$0xff]
        %v3012 = vld [vmem:[%s2916 + $0x2f8] sm:$0xff]
        %v3013 = vld [vmem:[%s2916 + $0x300] sm:$0xff]
        %v3014 = vld [vmem:[%s2916 + $0x308] sm:$0xff]
        %v3015 = vld [vmem:[%s2916 + $0x310] sm:$0xff]
        %v3016 = vld [vmem:[%s2916 + $0x318] sm:$0xff]
        %v3017 = vld [vmem:[%s2916 + $0x320] sm:$0xff]
        %v3018 = vld [vmem:[%s2916 + $0x328] sm:$0xff]
        %v3019 = vld [vmem:[%s2916 + $0x330] sm:$0xff]
        %v3020 = vld [vmem:[%s2916 + $0x338] sm:$0xff]
        %v3021 = vld [vmem:[%s2916 + $0x340] sm:$0xff]
        %v3022 = vld [vmem:[%s2916 + $0x348] sm:$0xff]
        %v3023 = vld [vmem:[%s2916 + $0x350] sm:$0xff]
        %v3024 = vld [vmem:[%s2916 + $0x358] sm:$0xff]
        %v3025 = vld [vmem:[%s2916 + $0x360] sm:$0xff]
        %v3026 = vld [vmem:[%s2916 + $0x368] sm:$0xff]
        %v3027 = vld [vmem:[%s2916 + $0x370] sm:$0xff]
        %v3028 = vld [vmem:[%s2916 + $0x378] sm:$0xff]
        %v3029 = vld [vmem:[%s2916 + $0x380] sm:$0xff]
        %v3030 = vld [vmem:[%s2916 + $0x388] sm:$0xff]
        %v3031 = vld [vmem:[%s2916 + $0x390] sm:$0xff]
        %v3032 = vld [vmem:[%s2916 + $0x398] sm:$0xff]
        %v3033 = vld [vmem:[%s2916 + $0x3a0] sm:$0xff]
        %v3034 = vld [vmem:[%s2916 + $0x3a8] sm:$0xff]
        %v3035 = vld [vmem:[%s2916 + $0x3b0] sm:$0xff]
        %v3036 = vld [vmem:[%s2916 + $0x3b8] sm:$0xff]
        %v3037 = vld [vmem:[%s2916 + $0x3c0] sm:$0xff]
        %v3038 = vld [vmem:[%s2916 + $0x3c8] sm:$0xff]
        %v3039 = vld [vmem:[%s2916 + $0x3d0] sm:$0xff]
        %v3040 = vld [vmem:[%s2916 + $0x3d8] sm:$0xff]
        %v3041 = vld [vmem:[%s2916 + $0x3e0] sm:$0xff]
        %v3042 = vld [vmem:[%s2916 + $0x3e8] sm:$0xff]
        %v3043 = vld [vmem:[%s2916 + $0x3f0] sm:$0xff]
        %v3044 = vld [vmem:[%s2916 + $0x3f8] sm:$0xff]
        %v3173 = vunpack.c.l.b16 %v2917
        %v3174 = vunpack.c.h.b16 %v2917
        %v3175 = vunpack.c.l.b16 %v2918
        %v3176 = vunpack.c.h.b16 %v2918
        %v3177 = vunpack.c.l.b16 %v2919
        %v3178 = vunpack.c.h.b16 %v2919
        %v3179 = vunpack.c.l.b16 %v2920
        %v3180 = vunpack.c.h.b16 %v2920
        %v3181 = vunpack.c.l.b16 %v2921
        %v3182 = vunpack.c.h.b16 %v2921
        %v3183 = vunpack.c.l.b16 %v2922
        %v3184 = vunpack.c.h.b16 %v2922
        %v3185 = vunpack.c.l.b16 %v2923
        %v3186 = vunpack.c.h.b16 %v2923
        %v3187 = vunpack.c.l.b16 %v2924
        %v3188 = vunpack.c.h.b16 %v2924
        %v3189 = vunpack.c.l.b16 %v2925
        %v3190 = vunpack.c.h.b16 %v2925
        %v3191 = vunpack.c.l.b16 %v2926
        %v3192 = vunpack.c.h.b16 %v2926
        %v3193 = vunpack.c.l.b16 %v2927
        %v3194 = vunpack.c.h.b16 %v2927
        %v3195 = vunpack.c.l.b16 %v2928
        %v3196 = vunpack.c.h.b16 %v2928
        %v3197 = vunpack.c.l.b16 %v2929
        %v3198 = vunpack.c.h.b16 %v2929
        %v3199 = vunpack.c.l.b16 %v2930
        %v3200 = vunpack.c.h.b16 %v2930
        %v3201 = vunpack.c.l.b16 %v2931
        %v3202 = vunpack.c.h.b16 %v2931
        %v3203 = vunpack.c.l.b16 %v2932
        %v3204 = vunpack.c.h.b16 %v2932
        %v3205 = vunpack.c.l.b16 %v2933
        %v3206 = vunpack.c.h.b16 %v2933
        %v3207 = vunpack.c.l.b16 %v2934
        %v3208 = vunpack.c.h.b16 %v2934
        %v3209 = vunpack.c.l.b16 %v2935
        %v3210 = vunpack.c.h.b16 %v2935
        %v3211 = vunpack.c.l.b16 %v2936
        %v3212 = vunpack.c.h.b16 %v2936
        %v3213 = vunpack.c.l.b16 %v2937
        %v3214 = vunpack.c.h.b16 %v2937
        %v3215 = vunpack.c.l.b16 %v2938
        %v3216 = vunpack.c.h.b16 %v2938
        %v3217 = vunpack.c.l.b16 %v2939
        %v3218 = vunpack.c.h.b16 %v2939
        %v3219 = vunpack.c.l.b16 %v2940
        %v3220 = vunpack.c.h.b16 %v2940
        %v3221 = vunpack.c.l.b16 %v2941
        %v3222 = vunpack.c.h.b16 %v2941
        %v3223 = vunpack.c.l.b16 %v2942
        %v3224 = vunpack.c.h.b16 %v2942
        %v3225 = vunpack.c.l.b16 %v2943
        %v3226 = vunpack.c.h.b16 %v2943
        %v3227 = vunpack.c.l.b16 %v2944
        %v3228 = vunpack.c.h.b16 %v2944
        %v3229 = vunpack.c.l.b16 %v2945
        %v3230 = vunpack.c.h.b16 %v2945
        %v3231 = vunpack.c.l.b16 %v2946
        %v3232 = vunpack.c.h.b16 %v2946
        %v3233 = vunpack.c.l.b16 %v2947
        %v3234 = vunpack.c.h.b16 %v2947
        %v3235 = vunpack.c.l.b16 %v2948
        %v3236 = vunpack.c.h.b16 %v2948
        %v3237 = vunpack.c.l.b16 %v2949
        %v3238 = vunpack.c.h.b16 %v2949
        %v3239 = vunpack.c.l.b16 %v2950
        %v3240 = vunpack.c.h.b16 %v2950
        %v3241 = vunpack.c.l.b16 %v2951
        %v3242 = vunpack.c.h.b16 %v2951
        %v3243 = vunpack.c.l.b16 %v2952
        %v3244 = vunpack.c.h.b16 %v2952
        %v3245 = vunpack.c.l.b16 %v2953
        %v3246 = vunpack.c.h.b16 %v2953
        %v3247 = vunpack.c.l.b16 %v2954
        %v3248 = vunpack.c.h.b16 %v2954
        %v3249 = vunpack.c.l.b16 %v2955
        %v3250 = vunpack.c.h.b16 %v2955
        %v3251 = vunpack.c.l.b16 %v2956
        %v3252 = vunpack.c.h.b16 %v2956
        %v3253 = vunpack.c.l.b16 %v2957
        %v3254 = vunpack.c.h.b16 %v2957
        %v3255 = vunpack.c.l.b16 %v2958
        %v3256 = vunpack.c.h.b16 %v2958
        %v3257 = vunpack.c.l.b16 %v2959
        %v3258 = vunpack.c.h.b16 %v2959
        %v3259 = vunpack.c.l.b16 %v2960
        %v3260 = vunpack.c.h.b16 %v2960
        %v3261 = vunpack.c.l.b16 %v2961
        %v3262 = vunpack.c.h.b16 %v2961
        %v3263 = vunpack.c.l.b16 %v2962
        %v3264 = vunpack.c.h.b16 %v2962
        %v3265 = vunpack.c.l.b16 %v2963
        %v3266 = vunpack.c.h.b16 %v2963
        %v3267 = vunpack.c.l.b16 %v2964
        %v3268 = vunpack.c.h.b16 %v2964
        %v3269 = vunpack.c.l.b16 %v2965
        %v3270 = vunpack.c.h.b16 %v2965
        %v3271 = vunpack.c.l.b16 %v2966
        %v3272 = vunpack.c.h.b16 %v2966
        %v3273 = vunpack.c.l.b16 %v2967
        %v3274 = vunpack.c.h.b16 %v2967
        %v3275 = vunpack.c.l.b16 %v2968
        %v3276 = vunpack.c.h.b16 %v2968
        %v3277 = vunpack.c.l.b16 %v2969
        %v3278 = vunpack.c.h.b16 %v2969
        %v3279 = vunpack.c.l.b16 %v2970
        %v3280 = vunpack.c.h.b16 %v2970
        %v3281 = vunpack.c.l.b16 %v2971
        %v3282 = vunpack.c.h.b16 %v2971
        %v3283 = vunpack.c.l.b16 %v2972
        %v3284 = vunpack.c.h.b16 %v2972
        %v3285 = vunpack.c.l.b16 %v2973
        %v3286 = vunpack.c.h.b16 %v2973
        %v3287 = vunpack.c.l.b16 %v2974
        %v3288 = vunpack.c.h.b16 %v2974
        %v3289 = vunpack.c.l.b16 %v2975
        %v3290 = vunpack.c.h.b16 %v2975
        %v3291 = vunpack.c.l.b16 %v2976
        %v3292 = vunpack.c.h.b16 %v2976
        %v3293 = vunpack.c.l.b16 %v2977
        %v3294 = vunpack.c.h.b16 %v2977
        %v3295 = vunpack.c.l.b16 %v2978
        %v3296 = vunpack.c.h.b16 %v2978
        %v3297 = vunpack.c.l.b16 %v2979
        %v3298 = vunpack.c.h.b16 %v2979
        %v3299 = vunpack.c.l.b16 %v2980
        %v3300 = vunpack.c.h.b16 %v2980
        %v3301 = vunpack.c.l.b16 %v2981
        %v3302 = vunpack.c.h.b16 %v2981
        %v3303 = vunpack.c.l.b16 %v2982
        %v3304 = vunpack.c.h.b16 %v2982
        %v3305 = vunpack.c.l.b16 %v2983
        %v3306 = vunpack.c.h.b16 %v2983
        %v3307 = vunpack.c.l.b16 %v2984
        %v3308 = vunpack.c.h.b16 %v2984
        %v3309 = vunpack.c.l.b16 %v2985
        %v3310 = vunpack.c.h.b16 %v2985
        %v3311 = vunpack.c.l.b16 %v2986
        %v3312 = vunpack.c.h.b16 %v2986
        %v3313 = vunpack.c.l.b16 %v2987
        %v3314 = vunpack.c.h.b16 %v2987
        %v3315 = vunpack.c.l.b16 %v2988
        %v3316 = vunpack.c.h.b16 %v2988
        %v3317 = vunpack.c.l.b16 %v2989
        %v3318 = vunpack.c.h.b16 %v2989
        %v3319 = vunpack.c.l.b16 %v2990
        %v3320 = vunpack.c.h.b16 %v2990
        %v3321 = vunpack.c.l.b16 %v2991
        %v3322 = vunpack.c.h.b16 %v2991
        %v3323 = vunpack.c.l.b16 %v2992
        %v3324 = vunpack.c.h.b16 %v2992
        %v3325 = vunpack.c.l.b16 %v2993
        %v3326 = vunpack.c.h.b16 %v2993
        %v3327 = vunpack.c.l.b16 %v2994
        %v3328 = vunpack.c.h.b16 %v2994
        %v3329 = vunpack.c.l.b16 %v2995
        %v3330 = vunpack.c.h.b16 %v2995
        %v3331 = vunpack.c.l.b16 %v2996
        %v3332 = vunpack.c.h.b16 %v2996
        %v3333 = vunpack.c.l.b16 %v2997
        %v3334 = vunpack.c.h.b16 %v2997
        %v3335 = vunpack.c.l.b16 %v2998
        %v3336 = vunpack.c.h.b16 %v2998
        %v3337 = vunpack.c.l.b16 %v2999
        %v3338 = vunpack.c.h.b16 %v2999
        %v3339 = vunpack.c.l.b16 %v3000
        %v3340 = vunpack.c.h.b16 %v3000
        %v3341 = vunpack.c.l.b16 %v3001
        %v3342 = vunpack.c.h.b16 %v3001
        %v3343 = vunpack.c.l.b16 %v3002
        %v3344 = vunpack.c.h.b16 %v3002
        %v3345 = vunpack.c.l.b16 %v3003
        %v3346 = vunpack.c.h.b16 %v3003
        %v3347 = vunpack.c.l.b16 %v3004
        %v3348 = vunpack.c.h.b16 %v3004
        %v3349 = vunpack.c.l.b16 %v3005
        %v3350 = vunpack.c.h.b16 %v3005
        %v3351 = vunpack.c.l.b16 %v3006
        %v3352 = vunpack.c.h.b16 %v3006
        %v3353 = vunpack.c.l.b16 %v3007
        %v3354 = vunpack.c.h.b16 %v3007
        %v3355 = vunpack.c.l.b16 %v3008
        %v3356 = vunpack.c.h.b16 %v3008
        %v3357 = vunpack.c.l.b16 %v3009
        %v3358 = vunpack.c.h.b16 %v3009
        %v3359 = vunpack.c.l.b16 %v3010
        %v3360 = vunpack.c.h.b16 %v3010
        %v3361 = vunpack.c.l.b16 %v3011
        %v3362 = vunpack.c.h.b16 %v3011
        %v3363 = vunpack.c.l.b16 %v3012
        %v3364 = vunpack.c.h.b16 %v3012
        %v3365 = vunpack.c.l.b16 %v3013
        %v3366 = vunpack.c.h.b16 %v3013
        %v3367 = vunpack.c.l.b16 %v3014
        %v3368 = vunpack.c.h.b16 %v3014
        %v3369 = vunpack.c.l.b16 %v3015
        %v3370 = vunpack.c.h.b16 %v3015
        %v3371 = vunpack.c.l.b16 %v3016
        %v3372 = vunpack.c.h.b16 %v3016
        %v3373 = vunpack.c.l.b16 %v3017
        %v3374 = vunpack.c.h.b16 %v3017
        %v3375 = vunpack.c.l.b16 %v3018
        %v3376 = vunpack.c.h.b16 %v3018
        %v3377 = vunpack.c.l.b16 %v3019
        %v3378 = vunpack.c.h.b16 %v3019
        %v3379 = vunpack.c.l.b16 %v3020
        %v3380 = vunpack.c.h.b16 %v3020
        %v3381 = vunpack.c.l.b16 %v3021
        %v3382 = vunpack.c.h.b16 %v3021
        %v3383 = vunpack.c.l.b16 %v3022
        %v3384 = vunpack.c.h.b16 %v3022
        %v3385 = vunpack.c.l.b16 %v3023
        %v3386 = vunpack.c.h.b16 %v3023
        %v3387 = vunpack.c.l.b16 %v3024
        %v3388 = vunpack.c.h.b16 %v3024
        %v3389 = vunpack.c.l.b16 %v3025
        %v3390 = vunpack.c.h.b16 %v3025
        %v3391 = vunpack.c.l.b16 %v3026
        %v3392 = vunpack.c.h.b16 %v3026
        %v3393 = vunpack.c.l.b16 %v3027
        %v3394 = vunpack.c.h.b16 %v3027
        %v3395 = vunpack.c.l.b16 %v3028
        %v3396 = vunpack.c.h.b16 %v3028
        %v3397 = vunpack.c.l.b16 %v3029
        %v3398 = vunpack.c.h.b16 %v3029
        %v3399 = vunpack.c.l.b16 %v3030
        %v3400 = vunpack.c.h.b16 %v3030
        %v3401 = vunpack.c.l.b16 %v3031
        %v3402 = vunpack.c.h.b16 %v3031
        %v3403 = vunpack.c.l.b16 %v3032
        %v3404 = vunpack.c.h.b16 %v3032
        %v3405 = vunpack.c.l.b16 %v3033
        %v3406 = vunpack.c.h.b16 %v3033
        %v3407 = vunpack.c.l.b16 %v3034
        %v3408 = vunpack.c.h.b16 %v3034
        %v3409 = vunpack.c.l.b16 %v3035
        %v3410 = vunpack.c.h.b16 %v3035
        %v3411 = vunpack.c.l.b16 %v3036
        %v3412 = vunpack.c.h.b16 %v3036
        %v3413 = vunpack.c.l.b16 %v3037
        %v3414 = vunpack.c.h.b16 %v3037
        %v3415 = vunpack.c.l.b16 %v3038
        %v3416 = vunpack.c.h.b16 %v3038
        %v3417 = vunpack.c.l.b16 %v3039
        %v3418 = vunpack.c.h.b16 %v3039
        %v3419 = vunpack.c.l.b16 %v3040
        %v3420 = vunpack.c.h.b16 %v3040
        %v3421 = vunpack.c.l.b16 %v3041
        %v3422 = vunpack.c.h.b16 %v3041
        %v3423 = vunpack.c.l.b16 %v3042
        %v3424 = vunpack.c.h.b16 %v3042
        %v3425 = vunpack.c.l.b16 %v3043
        %v3426 = vunpack.c.h.b16 %v3043
        %v3427 = vunpack.c.l.b16 %v3044
        %v3428 = vunpack.c.h.b16 %v3044
        %v3429 = vpack.c.b16 %v3177, %v3173
        %v3430 = vpack.c.b16 %v3178, %v3174
        %v3431 = vpack.c.b16 %v3179, %v3175
        %v3432 = vpack.c.b16 %v3180, %v3176
        %v3433 = vpack.c.b16 %v3185, %v3181
        %v3434 = vpack.c.b16 %v3186, %v3182
        %v3435 = vpack.c.b16 %v3187, %v3183
        %v3436 = vpack.c.b16 %v3188, %v3184
        %v3437 = vpack.c.b16 %v3193, %v3189
        %v3438 = vpack.c.b16 %v3194, %v3190
        %v3439 = vpack.c.b16 %v3195, %v3191
        %v3440 = vpack.c.b16 %v3196, %v3192
        %v3441 = vpack.c.b16 %v3201, %v3197
        %v3442 = vpack.c.b16 %v3202, %v3198
        %v3443 = vpack.c.b16 %v3203, %v3199
        %v3444 = vpack.c.b16 %v3204, %v3200
        %v3445 = vpack.c.b16 %v3209, %v3205
        %v3446 = vpack.c.b16 %v3210, %v3206
        %v3447 = vpack.c.b16 %v3211, %v3207
        %v3448 = vpack.c.b16 %v3212, %v3208
        %v3449 = vpack.c.b16 %v3217, %v3213
        %v3450 = vpack.c.b16 %v3218, %v3214
        %v3451 = vpack.c.b16 %v3219, %v3215
        %v3452 = vpack.c.b16 %v3220, %v3216
        %v3453 = vpack.c.b16 %v3225, %v3221
        %v3454 = vpack.c.b16 %v3226, %v3222
        %v3455 = vpack.c.b16 %v3227, %v3223
        %v3456 = vpack.c.b16 %v3228, %v3224
        %v3457 = vpack.c.b16 %v3233, %v3229
        %v3458 = vpack.c.b16 %v3234, %v3230
        %v3459 = vpack.c.b16 %v3235, %v3231
        %v3460 = vpack.c.b16 %v3236, %v3232
        %v3461 = vpack.c.b16 %v3241, %v3237
        %v3462 = vpack.c.b16 %v3242, %v3238
        %v3463 = vpack.c.b16 %v3243, %v3239
        %v3464 = vpack.c.b16 %v3244, %v3240
        %v3465 = vpack.c.b16 %v3249, %v3245
        %v3466 = vpack.c.b16 %v3250, %v3246
        %v3467 = vpack.c.b16 %v3251, %v3247
        %v3468 = vpack.c.b16 %v3252, %v3248
        %v3469 = vpack.c.b16 %v3257, %v3253
        %v3470 = vpack.c.b16 %v3258, %v3254
        %v3471 = vpack.c.b16 %v3259, %v3255
        %v3472 = vpack.c.b16 %v3260, %v3256
        %v3473 = vpack.c.b16 %v3265, %v3261
        %v3474 = vpack.c.b16 %v3266, %v3262
        %v3475 = vpack.c.b16 %v3267, %v3263
        %v3476 = vpack.c.b16 %v3268, %v3264
        %v3477 = vpack.c.b16 %v3273, %v3269
        %v3478 = vpack.c.b16 %v3274, %v3270
        %v3479 = vpack.c.b16 %v3275, %v3271
        %v3480 = vpack.c.b16 %v3276, %v3272
        %v3481 = vpack.c.b16 %v3281, %v3277
        %v3482 = vpack.c.b16 %v3282, %v3278
        %v3483 = vpack.c.b16 %v3283, %v3279
        %v3484 = vpack.c.b16 %v3284, %v3280
        %v3485 = vpack.c.b16 %v3289, %v3285
        %v3486 = vpack.c.b16 %v3290, %v3286
        %v3487 = vpack.c.b16 %v3291, %v3287
        %v3488 = vpack.c.b16 %v3292, %v3288
        %v3489 = vpack.c.b16 %v3297, %v3293
        %v3490 = vpack.c.b16 %v3298, %v3294
        %v3491 = vpack.c.b16 %v3299, %v3295
        %v3492 = vpack.c.b16 %v3300, %v3296
        %v3493 = vpack.c.b16 %v3305, %v3301
        %v3494 = vpack.c.b16 %v3306, %v3302
        %v3495 = vpack.c.b16 %v3307, %v3303
        %v3496 = vpack.c.b16 %v3308, %v3304
        %v3497 = vpack.c.b16 %v3313, %v3309
        %v3498 = vpack.c.b16 %v3314, %v3310
        %v3499 = vpack.c.b16 %v3315, %v3311
        %v3500 = vpack.c.b16 %v3316, %v3312
        %v3501 = vpack.c.b16 %v3321, %v3317
        %v3502 = vpack.c.b16 %v3322, %v3318
        %v3503 = vpack.c.b16 %v3323, %v3319
        %v3504 = vpack.c.b16 %v3324, %v3320
        %v3505 = vpack.c.b16 %v3329, %v3325
        %v3506 = vpack.c.b16 %v3330, %v3326
        %v3507 = vpack.c.b16 %v3331, %v3327
        %v3508 = vpack.c.b16 %v3332, %v3328
        %v3509 = vpack.c.b16 %v3337, %v3333
        %v3510 = vpack.c.b16 %v3338, %v3334
        %v3511 = vpack.c.b16 %v3339, %v3335
        %v3512 = vpack.c.b16 %v3340, %v3336
        %v3513 = vpack.c.b16 %v3345, %v3341
        %v3514 = vpack.c.b16 %v3346, %v3342
        %v3515 = vpack.c.b16 %v3347, %v3343
        %v3516 = vpack.c.b16 %v3348, %v3344
        %v3517 = vpack.c.b16 %v3353, %v3349
        %v3518 = vpack.c.b16 %v3354, %v3350
        %v3519 = vpack.c.b16 %v3355, %v3351
        %v3520 = vpack.c.b16 %v3356, %v3352
        %v3521 = vpack.c.b16 %v3361, %v3357
        %v3522 = vpack.c.b16 %v3362, %v3358
        %v3523 = vpack.c.b16 %v3363, %v3359
        %v3524 = vpack.c.b16 %v3364, %v3360
        %v3525 = vpack.c.b16 %v3369, %v3365
        %v3526 = vpack.c.b16 %v3370, %v3366
        %v3527 = vpack.c.b16 %v3371, %v3367
        %v3528 = vpack.c.b16 %v3372, %v3368
        %v3529 = vpack.c.b16 %v3377, %v3373
        %v3530 = vpack.c.b16 %v3378, %v3374
        %v3531 = vpack.c.b16 %v3379, %v3375
        %v3532 = vpack.c.b16 %v3380, %v3376
        %v3533 = vpack.c.b16 %v3385, %v3381
        %v3534 = vpack.c.b16 %v3386, %v3382
        %v3535 = vpack.c.b16 %v3387, %v3383
        %v3536 = vpack.c.b16 %v3388, %v3384
        %v3537 = vpack.c.b16 %v3393, %v3389
        %v3538 = vpack.c.b16 %v3394, %v3390
        %v3539 = vpack.c.b16 %v3395, %v3391
        %v3540 = vpack.c.b16 %v3396, %v3392
        %v3541 = vpack.c.b16 %v3401, %v3397
        %v3542 = vpack.c.b16 %v3402, %v3398
        %v3543 = vpack.c.b16 %v3403, %v3399
        %v3544 = vpack.c.b16 %v3404, %v3400
        %v3545 = vpack.c.b16 %v3409, %v3405
        %v3546 = vpack.c.b16 %v3410, %v3406
        %v3547 = vpack.c.b16 %v3411, %v3407
        %v3548 = vpack.c.b16 %v3412, %v3408
        %v3549 = vpack.c.b16 %v3417, %v3413
        %v3550 = vpack.c.b16 %v3418, %v3414
        %v3551 = vpack.c.b16 %v3419, %v3415
        %v3552 = vpack.c.b16 %v3420, %v3416
        %v3553 = vpack.c.b16 %v3425, %v3421
        %v3554 = vpack.c.b16 %v3426, %v3422
        %v3555 = vpack.c.b16 %v3427, %v3423
        %v3556 = vpack.c.b16 %v3428, %v3424
        %3685 = vmatpush.bf16.msra.mxu0 %v3457
        %3686 = vmatpush.bf16.msra.mxu0 %v3453
        %3687 = vmatpush.bf16.msra.mxu0 %v3449
        %3688 = vmatpush.bf16.msra.mxu0 %v3445
        %3689 = vmatpush.bf16.msra.mxu0 %v3441
        %3690 = vmatpush.bf16.msra.mxu0 %v3437
        %3691 = vmatpush.bf16.msra.mxu0 %v3433
        %3692 = vmatpush.bf16.msra.mxu0 %v3429
        %3693 = vmatmul.bf16.gmra.mxu0 %v1920
        %v3694 = vpop.f32.mrf.mxu0
        %v3695 = vadd.f32 0.0, %v3694
        %v3696 = vpop.f32.mrf.mxu0
        %v3697 = vadd.f32 0.0, %v3696
        %3698 = vdwg.mxu0
        %3699 = vmatpush.bf16.msra.mxu0 %v3489
        %3700 = vmatpush.bf16.msra.mxu0 %v3485
        %3701 = vmatpush.bf16.msra.mxu0 %v3481
        %3702 = vmatpush.bf16.msra.mxu0 %v3477
        %3703 = vmatpush.bf16.msra.mxu0 %v3473
        %3704 = vmatpush.bf16.msra.mxu0 %v3469
        %3705 = vmatpush.bf16.msra.mxu0 %v3465
        %3706 = vmatpush.bf16.msra.mxu0 %v3461
        %3707 = vmatmul.bf16.gmra.mxu0 %v1921
        %v3708 = vpop.f32.mrf.mxu0
        %v3709 = vadd.f32 %v3695, %v3708
        %v3710 = vpop.f32.mrf.mxu0
        %v3711 = vadd.f32 %v3697, %v3710
        %3712 = vdwg.mxu0
        %3713 = vmatpush.bf16.msra.mxu0 %v3521
        %3714 = vmatpush.bf16.msra.mxu0 %v3517
        %3715 = vmatpush.bf16.msra.mxu0 %v3513
        %3716 = vmatpush.bf16.msra.mxu0 %v3509
        %3717 = vmatpush.bf16.msra.mxu0 %v3505
        %3718 = vmatpush.bf16.msra.mxu0 %v3501
        %3719 = vmatpush.bf16.msra.mxu0 %v3497
        %3720 = vmatpush.bf16.msra.mxu0 %v3493
        %3721 = vmatmul.bf16.gmra.mxu0 %v1922
        %v3722 = vpop.f32.mrf.mxu0
        %v3723 = vadd.f32 %v3709, %v3722
        %v3724 = vpop.f32.mrf.mxu0
        %v3725 = vadd.f32 %v3711, %v3724
        %3726 = vdwg.mxu0
        %3727 = vmatpush.bf16.msra.mxu0 %v3553
        %3728 = vmatpush.bf16.msra.mxu0 %v3549
        %3729 = vmatpush.bf16.msra.mxu0 %v3545
        %3730 = vmatpush.bf16.msra.mxu0 %v3541
        %3731 = vmatpush.bf16.msra.mxu0 %v3537
        %3732 = vmatpush.bf16.msra.mxu0 %v3533
        %3733 = vmatpush.bf16.msra.mxu0 %v3529
        %3734 = vmatpush.bf16.msra.mxu0 %v3525
        %3735 = vmatmul.bf16.gmra.mxu0 %v1923
        %v3736 = vpop.f32.mrf.mxu0
        %v3737 = vadd.f32 %v3723, %v3736
        %v3738 = vpop.f32.mrf.mxu0
        %v3739 = vadd.f32 %v3725, %v3738
        %3740 = vdwg.mxu0
        %3741 = vmatpush.bf16.msra.mxu0 %v3458
        %3742 = vmatpush.bf16.msra.mxu0 %v3454
        %3743 = vmatpush.bf16.msra.mxu0 %v3450
        %3744 = vmatpush.bf16.msra.mxu0 %v3446
        %3745 = vmatpush.bf16.msra.mxu0 %v3442
        %3746 = vmatpush.bf16.msra.mxu0 %v3438
        %3747 = vmatpush.bf16.msra.mxu0 %v3434
        %3748 = vmatpush.bf16.msra.mxu0 %v3430
        %3749 = vmatmul.bf16.gmra.mxu0 %v1920
        %v3750 = vpop.f32.mrf.mxu0
        %v3751 = vadd.f32 0.0, %v3750
        %v3752 = vpop.f32.mrf.mxu0
        %v3753 = vadd.f32 0.0, %v3752
        %3754 = vdwg.mxu0
        %3755 = vmatpush.bf16.msra.mxu0 %v3490
        %3756 = vmatpush.bf16.msra.mxu0 %v3486
        %3757 = vmatpush.bf16.msra.mxu0 %v3482
        %3758 = vmatpush.bf16.msra.mxu0 %v3478
        %3759 = vmatpush.bf16.msra.mxu0 %v3474
        %3760 = vmatpush.bf16.msra.mxu0 %v3470
        %3761 = vmatpush.bf16.msra.mxu0 %v3466
        %3762 = vmatpush.bf16.msra.mxu0 %v3462
        %3763 = vmatmul.bf16.gmra.mxu0 %v1921
        %v3764 = vpop.f32.mrf.mxu0
        %v3765 = vadd.f32 %v3751, %v3764
        %v3766 = vpop.f32.mrf.mxu0
        %v3767 = vadd.f32 %v3753, %v3766
        %3768 = vdwg.mxu0
        %3769 = vmatpush.bf16.msra.mxu0 %v3522
        %3770 = vmatpush.bf16.msra.mxu0 %v3518
        %3771 = vmatpush.bf16.msra.mxu0 %v3514
        %3772 = vmatpush.bf16.msra.mxu0 %v3510
        %3773 = vmatpush.bf16.msra.mxu0 %v3506
        %3774 = vmatpush.bf16.msra.mxu0 %v3502
        %3775 = vmatpush.bf16.msra.mxu0 %v3498
        %3776 = vmatpush.bf16.msra.mxu0 %v3494
        %3777 = vmatmul.bf16.gmra.mxu0 %v1922
        %v3778 = vpop.f32.mrf.mxu0
        %v3779 = vadd.f32 %v3765, %v3778
        %v3780 = vpop.f32.mrf.mxu0
        %v3781 = vadd.f32 %v3767, %v3780
        %3782 = vdwg.mxu0
        %3783 = vmatpush.bf16.msra.mxu0 %v3554
        %3784 = vmatpush.bf16.msra.mxu0 %v3550
        %3785 = vmatpush.bf16.msra.mxu0 %v3546
        %3786 = vmatpush.bf16.msra.mxu0 %v3542
        %3787 = vmatpush.bf16.msra.mxu0 %v3538
        %3788 = vmatpush.bf16.msra.mxu0 %v3534
        %3789 = vmatpush.bf16.msra.mxu0 %v3530
        %3790 = vmatpush.bf16.msra.mxu0 %v3526
        %3791 = vmatmul.bf16.gmra.mxu0 %v1923
        %v3792 = vpop.f32.mrf.mxu0
        %v3793 = vadd.f32 %v3779, %v3792
        %v3794 = vpop.f32.mrf.mxu0
        %v3795 = vadd.f32 %v3781, %v3794
        %3796 = vdwg.mxu0
        %3797 = vmatpush.bf16.msra.mxu0 %v3459
        %3798 = vmatpush.bf16.msra.mxu0 %v3455
        %3799 = vmatpush.bf16.msra.mxu0 %v3451
        %3800 = vmatpush.bf16.msra.mxu0 %v3447
        %3801 = vmatpush.bf16.msra.mxu0 %v3443
        %3802 = vmatpush.bf16.msra.mxu0 %v3439
        %3803 = vmatpush.bf16.msra.mxu0 %v3435
        %3804 = vmatpush.bf16.msra.mxu0 %v3431
        %3805 = vmatmul.bf16.gmra.mxu0 %v1920
        %v3806 = vpop.f32.mrf.mxu0
        %v3807 = vadd.f32 0.0, %v3806
        %v3808 = vpop.f32.mrf.mxu0
        %v3809 = vadd.f32 0.0, %v3808
        %3810 = vdwg.mxu0
        %3811 = vmatpush.bf16.msra.mxu0 %v3491
        %3812 = vmatpush.bf16.msra.mxu0 %v3487
        %3813 = vmatpush.bf16.msra.mxu0 %v3483
        %3814 = vmatpush.bf16.msra.mxu0 %v3479
        %3815 = vmatpush.bf16.msra.mxu0 %v3475
        %3816 = vmatpush.bf16.msra.mxu0 %v3471
        %3817 = vmatpush.bf16.msra.mxu0 %v3467
        %3818 = vmatpush.bf16.msra.mxu0 %v3463
        %3819 = vmatmul.bf16.gmra.mxu0 %v1921
        %v3820 = vpop.f32.mrf.mxu0
        %v3821 = vadd.f32 %v3807, %v3820
        %v3822 = vpop.f32.mrf.mxu0
        %v3823 = vadd.f32 %v3809, %v3822
        %3824 = vdwg.mxu0
        %3825 = vmatpush.bf16.msra.mxu0 %v3523
        %3826 = vmatpush.bf16.msra.mxu0 %v3519
        %3827 = vmatpush.bf16.msra.mxu0 %v3515
        %3828 = vmatpush.bf16.msra.mxu0 %v3511
        %3829 = vmatpush.bf16.msra.mxu0 %v3507
        %3830 = vmatpush.bf16.msra.mxu0 %v3503
        %3831 = vmatpush.bf16.msra.mxu0 %v3499
        %3832 = vmatpush.bf16.msra.mxu0 %v3495
        %3833 = vmatmul.bf16.gmra.mxu0 %v1922
        %v3834 = vpop.f32.mrf.mxu0
        %v3835 = vadd.f32 %v3821, %v3834
        %v3836 = vpop.f32.mrf.mxu0
        %v3837 = vadd.f32 %v3823, %v3836
        %3838 = vdwg.mxu0
        %3839 = vmatpush.bf16.msra.mxu0 %v3555
        %3840 = vmatpush.bf16.msra.mxu0 %v3551
        %3841 = vmatpush.bf16.msra.mxu0 %v3547
        %3842 = vmatpush.bf16.msra.mxu0 %v3543
        %3843 = vmatpush.bf16.msra.mxu0 %v3539
        %3844 = vmatpush.bf16.msra.mxu0 %v3535
        %3845 = vmatpush.bf16.msra.mxu0 %v3531
        %3846 = vmatpush.bf16.msra.mxu0 %v3527
        %3847 = vmatmul.bf16.gmra.mxu0 %v1923
        %v3848 = vpop.f32.mrf.mxu0
        %v3849 = vadd.f32 %v3835, %v3848
        %v3850 = vpop.f32.mrf.mxu0
        %v3851 = vadd.f32 %v3837, %v3850
        %3852 = vdwg.mxu0
        %3853 = vmatpush.bf16.msra.mxu0 %v3460
        %3854 = vmatpush.bf16.msra.mxu0 %v3456
        %3855 = vmatpush.bf16.msra.mxu0 %v3452
        %3856 = vmatpush.bf16.msra.mxu0 %v3448
        %3857 = vmatpush.bf16.msra.mxu0 %v3444
        %3858 = vmatpush.bf16.msra.mxu0 %v3440
        %3859 = vmatpush.bf16.msra.mxu0 %v3436
        %3860 = vmatpush.bf16.msra.mxu0 %v3432
        %3861 = vmatmul.bf16.gmra.mxu0 %v1920
        %v3862 = vpop.f32.mrf.mxu0
        %v3863 = vadd.f32 0.0, %v3862
        %v3864 = vpop.f32.mrf.mxu0
        %v3865 = vadd.f32 0.0, %v3864
        %3866 = vdwg.mxu0
        %3867 = vmatpush.bf16.msra.mxu0 %v3492
        %3868 = vmatpush.bf16.msra.mxu0 %v3488
        %3869 = vmatpush.bf16.msra.mxu0 %v3484
        %3870 = vmatpush.bf16.msra.mxu0 %v3480
        %3871 = vmatpush.bf16.msra.mxu0 %v3476
        %3872 = vmatpush.bf16.msra.mxu0 %v3472
        %3873 = vmatpush.bf16.msra.mxu0 %v3468
        %3874 = vmatpush.bf16.msra.mxu0 %v3464
        %3875 = vmatmul.bf16.gmra.mxu0 %v1921
        %v3876 = vpop.f32.mrf.mxu0
        %v3877 = vadd.f32 %v3863, %v3876
        %v3878 = vpop.f32.mrf.mxu0
        %v3879 = vadd.f32 %v3865, %v3878
        %3880 = vdwg.mxu0
        %3881 = vmatpush.bf16.msra.mxu0 %v3524
        %3882 = vmatpush.bf16.msra.mxu0 %v3520
        %3883 = vmatpush.bf16.msra.mxu0 %v3516
        %3884 = vmatpush.bf16.msra.mxu0 %v3512
        %3885 = vmatpush.bf16.msra.mxu0 %v3508
        %3886 = vmatpush.bf16.msra.mxu0 %v3504
        %3887 = vmatpush.bf16.msra.mxu0 %v3500
        %3888 = vmatpush.bf16.msra.mxu0 %v3496
        %3889 = vmatmul.bf16.gmra.mxu0 %v1922
        %v3890 = vpop.f32.mrf.mxu0
        %v3891 = vadd.f32 %v3877, %v3890
        %v3892 = vpop.f32.mrf.mxu0
        %v3893 = vadd.f32 %v3879, %v3892
        %3894 = vdwg.mxu0
        %3895 = vmatpush.bf16.msra.mxu0 %v3556
        %3896 = vmatpush.bf16.msra.mxu0 %v3552
        %3897 = vmatpush.bf16.msra.mxu0 %v3548
        %3898 = vmatpush.bf16.msra.mxu0 %v3544
        %3899 = vmatpush.bf16.msra.mxu0 %v3540
        %3900 = vmatpush.bf16.msra.mxu0 %v3536
        %3901 = vmatpush.bf16.msra.mxu0 %v3532
        %3902 = vmatpush.bf16.msra.mxu0 %v3528
        %3903 = vmatmul.bf16.gmra.mxu0 %v1923
        %v3904 = vpop.f32.mrf.mxu0
        %v3905 = vadd.f32 %v3891, %v3904
        %v3906 = vpop.f32.mrf.mxu0
        %v3907 = vadd.f32 %v3893, %v3906
        %3908 = vdwg.mxu0
        %s3909 = scalar_lea.vmem [#allocation17], 2048
        %v3910 = vld [vmem:[%s3909] sm:$0xff]
        %v3911 = vld [vmem:[%s3909 + $0x8] sm:$0xff]
        %v3912 = vld [vmem:[%s3909 + $0x10] sm:$0xff]
        %v3913 = vld [vmem:[%s3909 + $0x18] sm:$0xff]
        %v3914 = vld [vmem:[%s3909 + $0x20] sm:$0xff]
        %v3915 = vld [vmem:[%s3909 + $0x28] sm:$0xff]
        %v3916 = vld [vmem:[%s3909 + $0x30] sm:$0xff]
        %v3917 = vld [vmem:[%s3909 + $0x38] sm:$0xff]
        %v3918 = vld [vmem:[%s3909 + $0x40] sm:$0xff]
        %v3919 = vld [vmem:[%s3909 + $0x48] sm:$0xff]
        %v3920 = vld [vmem:[%s3909 + $0x50] sm:$0xff]
        %v3921 = vld [vmem:[%s3909 + $0x58] sm:$0xff]
        %v3922 = vld [vmem:[%s3909 + $0x60] sm:$0xff]
        %v3923 = vld [vmem:[%s3909 + $0x68] sm:$0xff]
        %v3924 = vld [vmem:[%s3909 + $0x70] sm:$0xff]
        %v3925 = vld [vmem:[%s3909 + $0x78] sm:$0xff]
        %v3926 = vld [vmem:[%s3909 + $0x80] sm:$0xff]
        %v3927 = vld [vmem:[%s3909 + $0x88] sm:$0xff]
        %v3928 = vld [vmem:[%s3909 + $0x90] sm:$0xff]
        %v3929 = vld [vmem:[%s3909 + $0x98] sm:$0xff]
        %v3930 = vld [vmem:[%s3909 + $0xa0] sm:$0xff]
        %v3931 = vld [vmem:[%s3909 + $0xa8] sm:$0xff]
        %v3932 = vld [vmem:[%s3909 + $0xb0] sm:$0xff]
        %v3933 = vld [vmem:[%s3909 + $0xb8] sm:$0xff]
        %v3934 = vld [vmem:[%s3909 + $0xc0] sm:$0xff]
        %v3935 = vld [vmem:[%s3909 + $0xc8] sm:$0xff]
        %v3936 = vld [vmem:[%s3909 + $0xd0] sm:$0xff]
        %v3937 = vld [vmem:[%s3909 + $0xd8] sm:$0xff]
        %v3938 = vld [vmem:[%s3909 + $0xe0] sm:$0xff]
        %v3939 = vld [vmem:[%s3909 + $0xe8] sm:$0xff]
        %v3940 = vld [vmem:[%s3909 + $0xf0] sm:$0xff]
        %v3941 = vld [vmem:[%s3909 + $0xf8] sm:$0xff]
        %v3942 = vld [vmem:[%s3909 + $0x100] sm:$0xff]
        %v3943 = vld [vmem:[%s3909 + $0x108] sm:$0xff]
        %v3944 = vld [vmem:[%s3909 + $0x110] sm:$0xff]
        %v3945 = vld [vmem:[%s3909 + $0x118] sm:$0xff]
        %v3946 = vld [vmem:[%s3909 + $0x120] sm:$0xff]
        %v3947 = vld [vmem:[%s3909 + $0x128] sm:$0xff]
        %v3948 = vld [vmem:[%s3909 + $0x130] sm:$0xff]
        %v3949 = vld [vmem:[%s3909 + $0x138] sm:$0xff]
        %v3950 = vld [vmem:[%s3909 + $0x140] sm:$0xff]
        %v3951 = vld [vmem:[%s3909 + $0x148] sm:$0xff]
        %v3952 = vld [vmem:[%s3909 + $0x150] sm:$0xff]
        %v3953 = vld [vmem:[%s3909 + $0x158] sm:$0xff]
        %v3954 = vld [vmem:[%s3909 + $0x160] sm:$0xff]
        %v3955 = vld [vmem:[%s3909 + $0x168] sm:$0xff]
        %v3956 = vld [vmem:[%s3909 + $0x170] sm:$0xff]
        %v3957 = vld [vmem:[%s3909 + $0x178] sm:$0xff]
        %v3958 = vld [vmem:[%s3909 + $0x180] sm:$0xff]
        %v3959 = vld [vmem:[%s3909 + $0x188] sm:$0xff]
        %v3960 = vld [vmem:[%s3909 + $0x190] sm:$0xff]
        %v3961 = vld [vmem:[%s3909 + $0x198] sm:$0xff]
        %v3962 = vld [vmem:[%s3909 + $0x1a0] sm:$0xff]
        %v3963 = vld [vmem:[%s3909 + $0x1a8] sm:$0xff]
        %v3964 = vld [vmem:[%s3909 + $0x1b0] sm:$0xff]
        %v3965 = vld [vmem:[%s3909 + $0x1b8] sm:$0xff]
        %v3966 = vld [vmem:[%s3909 + $0x1c0] sm:$0xff]
        %v3967 = vld [vmem:[%s3909 + $0x1c8] sm:$0xff]
        %v3968 = vld [vmem:[%s3909 + $0x1d0] sm:$0xff]
        %v3969 = vld [vmem:[%s3909 + $0x1d8] sm:$0xff]
        %v3970 = vld [vmem:[%s3909 + $0x1e0] sm:$0xff]
        %v3971 = vld [vmem:[%s3909 + $0x1e8] sm:$0xff]
        %v3972 = vld [vmem:[%s3909 + $0x1f0] sm:$0xff]
        %v3973 = vld [vmem:[%s3909 + $0x1f8] sm:$0xff]
        %v3974 = vld [vmem:[%s3909 + $0x200] sm:$0xff]
        %v3975 = vld [vmem:[%s3909 + $0x208] sm:$0xff]
        %v3976 = vld [vmem:[%s3909 + $0x210] sm:$0xff]
        %v3977 = vld [vmem:[%s3909 + $0x218] sm:$0xff]
        %v3978 = vld [vmem:[%s3909 + $0x220] sm:$0xff]
        %v3979 = vld [vmem:[%s3909 + $0x228] sm:$0xff]
        %v3980 = vld [vmem:[%s3909 + $0x230] sm:$0xff]
        %v3981 = vld [vmem:[%s3909 + $0x238] sm:$0xff]
        %v3982 = vld [vmem:[%s3909 + $0x240] sm:$0xff]
        %v3983 = vld [vmem:[%s3909 + $0x248] sm:$0xff]
        %v3984 = vld [vmem:[%s3909 + $0x250] sm:$0xff]
        %v3985 = vld [vmem:[%s3909 + $0x258] sm:$0xff]
        %v3986 = vld [vmem:[%s3909 + $0x260] sm:$0xff]
        %v3987 = vld [vmem:[%s3909 + $0x268] sm:$0xff]
        %v3988 = vld [vmem:[%s3909 + $0x270] sm:$0xff]
        %v3989 = vld [vmem:[%s3909 + $0x278] sm:$0xff]
        %v3990 = vld [vmem:[%s3909 + $0x280] sm:$0xff]
        %v3991 = vld [vmem:[%s3909 + $0x288] sm:$0xff]
        %v3992 = vld [vmem:[%s3909 + $0x290] sm:$0xff]
        %v3993 = vld [vmem:[%s3909 + $0x298] sm:$0xff]
        %v3994 = vld [vmem:[%s3909 + $0x2a0] sm:$0xff]
        %v3995 = vld [vmem:[%s3909 + $0x2a8] sm:$0xff]
        %v3996 = vld [vmem:[%s3909 + $0x2b0] sm:$0xff]
        %v3997 = vld [vmem:[%s3909 + $0x2b8] sm:$0xff]
        %v3998 = vld [vmem:[%s3909 + $0x2c0] sm:$0xff]
        %v3999 = vld [vmem:[%s3909 + $0x2c8] sm:$0xff]
        %v4000 = vld [vmem:[%s3909 + $0x2d0] sm:$0xff]
        %v4001 = vld [vmem:[%s3909 + $0x2d8] sm:$0xff]
        %v4002 = vld [vmem:[%s3909 + $0x2e0] sm:$0xff]
        %v4003 = vld [vmem:[%s3909 + $0x2e8] sm:$0xff]
        %v4004 = vld [vmem:[%s3909 + $0x2f0] sm:$0xff]
        %v4005 = vld [vmem:[%s3909 + $0x2f8] sm:$0xff]
        %v4006 = vld [vmem:[%s3909 + $0x300] sm:$0xff]
        %v4007 = vld [vmem:[%s3909 + $0x308] sm:$0xff]
        %v4008 = vld [vmem:[%s3909 + $0x310] sm:$0xff]
        %v4009 = vld [vmem:[%s3909 + $0x318] sm:$0xff]
        %v4010 = vld [vmem:[%s3909 + $0x320] sm:$0xff]
        %v4011 = vld [vmem:[%s3909 + $0x328] sm:$0xff]
        %v4012 = vld [vmem:[%s3909 + $0x330] sm:$0xff]
        %v4013 = vld [vmem:[%s3909 + $0x338] sm:$0xff]
        %v4014 = vld [vmem:[%s3909 + $0x340] sm:$0xff]
        %v4015 = vld [vmem:[%s3909 + $0x348] sm:$0xff]
        %v4016 = vld [vmem:[%s3909 + $0x350] sm:$0xff]
        %v4017 = vld [vmem:[%s3909 + $0x358] sm:$0xff]
        %v4018 = vld [vmem:[%s3909 + $0x360] sm:$0xff]
        %v4019 = vld [vmem:[%s3909 + $0x368] sm:$0xff]
        %v4020 = vld [vmem:[%s3909 + $0x370] sm:$0xff]
        %v4021 = vld [vmem:[%s3909 + $0x378] sm:$0xff]
        %v4022 = vld [vmem:[%s3909 + $0x380] sm:$0xff]
        %v4023 = vld [vmem:[%s3909 + $0x388] sm:$0xff]
        %v4024 = vld [vmem:[%s3909 + $0x390] sm:$0xff]
        %v4025 = vld [vmem:[%s3909 + $0x398] sm:$0xff]
        %v4026 = vld [vmem:[%s3909 + $0x3a0] sm:$0xff]
        %v4027 = vld [vmem:[%s3909 + $0x3a8] sm:$0xff]
        %v4028 = vld [vmem:[%s3909 + $0x3b0] sm:$0xff]
        %v4029 = vld [vmem:[%s3909 + $0x3b8] sm:$0xff]
        %v4030 = vld [vmem:[%s3909 + $0x3c0] sm:$0xff]
        %v4031 = vld [vmem:[%s3909 + $0x3c8] sm:$0xff]
        %v4032 = vld [vmem:[%s3909 + $0x3d0] sm:$0xff]
        %v4033 = vld [vmem:[%s3909 + $0x3d8] sm:$0xff]
        %v4034 = vld [vmem:[%s3909 + $0x3e0] sm:$0xff]
        %v4035 = vld [vmem:[%s3909 + $0x3e8] sm:$0xff]
        %v4036 = vld [vmem:[%s3909 + $0x3f0] sm:$0xff]
        %v4037 = vld [vmem:[%s3909 + $0x3f8] sm:$0xff]
        %v4166 = vunpack.c.l.b16 %v3910
        %v4167 = vunpack.c.h.b16 %v3910
        %v4168 = vunpack.c.l.b16 %v3911
        %v4169 = vunpack.c.h.b16 %v3911
        %v4170 = vunpack.c.l.b16 %v3912
        %v4171 = vunpack.c.h.b16 %v3912
        %v4172 = vunpack.c.l.b16 %v3913
        %v4173 = vunpack.c.h.b16 %v3913
        %v4174 = vunpack.c.l.b16 %v3914
        %v4175 = vunpack.c.h.b16 %v3914
        %v4176 = vunpack.c.l.b16 %v3915
        %v4177 = vunpack.c.h.b16 %v3915
        %v4178 = vunpack.c.l.b16 %v3916
        %v4179 = vunpack.c.h.b16 %v3916
        %v4180 = vunpack.c.l.b16 %v3917
        %v4181 = vunpack.c.h.b16 %v3917
        %v4182 = vunpack.c.l.b16 %v3918
        %v4183 = vunpack.c.h.b16 %v3918
        %v4184 = vunpack.c.l.b16 %v3919
        %v4185 = vunpack.c.h.b16 %v3919
        %v4186 = vunpack.c.l.b16 %v3920
        %v4187 = vunpack.c.h.b16 %v3920
        %v4188 = vunpack.c.l.b16 %v3921
        %v4189 = vunpack.c.h.b16 %v3921
        %v4190 = vunpack.c.l.b16 %v3922
        %v4191 = vunpack.c.h.b16 %v3922
        %v4192 = vunpack.c.l.b16 %v3923
        %v4193 = vunpack.c.h.b16 %v3923
        %v4194 = vunpack.c.l.b16 %v3924
        %v4195 = vunpack.c.h.b16 %v3924
        %v4196 = vunpack.c.l.b16 %v3925
        %v4197 = vunpack.c.h.b16 %v3925
        %v4198 = vunpack.c.l.b16 %v3926
        %v4199 = vunpack.c.h.b16 %v3926
        %v4200 = vunpack.c.l.b16 %v3927
        %v4201 = vunpack.c.h.b16 %v3927
        %v4202 = vunpack.c.l.b16 %v3928
        %v4203 = vunpack.c.h.b16 %v3928
        %v4204 = vunpack.c.l.b16 %v3929
        %v4205 = vunpack.c.h.b16 %v3929
        %v4206 = vunpack.c.l.b16 %v3930
        %v4207 = vunpack.c.h.b16 %v3930
        %v4208 = vunpack.c.l.b16 %v3931
        %v4209 = vunpack.c.h.b16 %v3931
        %v4210 = vunpack.c.l.b16 %v3932
        %v4211 = vunpack.c.h.b16 %v3932
        %v4212 = vunpack.c.l.b16 %v3933
        %v4213 = vunpack.c.h.b16 %v3933
        %v4214 = vunpack.c.l.b16 %v3934
        %v4215 = vunpack.c.h.b16 %v3934
        %v4216 = vunpack.c.l.b16 %v3935
        %v4217 = vunpack.c.h.b16 %v3935
        %v4218 = vunpack.c.l.b16 %v3936
        %v4219 = vunpack.c.h.b16 %v3936
        %v4220 = vunpack.c.l.b16 %v3937
        %v4221 = vunpack.c.h.b16 %v3937
        %v4222 = vunpack.c.l.b16 %v3938
        %v4223 = vunpack.c.h.b16 %v3938
        %v4224 = vunpack.c.l.b16 %v3939
        %v4225 = vunpack.c.h.b16 %v3939
        %v4226 = vunpack.c.l.b16 %v3940
        %v4227 = vunpack.c.h.b16 %v3940
        %v4228 = vunpack.c.l.b16 %v3941
        %v4229 = vunpack.c.h.b16 %v3941
        %v4230 = vunpack.c.l.b16 %v3942
        %v4231 = vunpack.c.h.b16 %v3942
        %v4232 = vunpack.c.l.b16 %v3943
        %v4233 = vunpack.c.h.b16 %v3943
        %v4234 = vunpack.c.l.b16 %v3944
        %v4235 = vunpack.c.h.b16 %v3944
        %v4236 = vunpack.c.l.b16 %v3945
        %v4237 = vunpack.c.h.b16 %v3945
        %v4238 = vunpack.c.l.b16 %v3946
        %v4239 = vunpack.c.h.b16 %v3946
        %v4240 = vunpack.c.l.b16 %v3947
        %v4241 = vunpack.c.h.b16 %v3947
        %v4242 = vunpack.c.l.b16 %v3948
        %v4243 = vunpack.c.h.b16 %v3948
        %v4244 = vunpack.c.l.b16 %v3949
        %v4245 = vunpack.c.h.b16 %v3949
        %v4246 = vunpack.c.l.b16 %v3950
        %v4247 = vunpack.c.h.b16 %v3950
        %v4248 = vunpack.c.l.b16 %v3951
        %v4249 = vunpack.c.h.b16 %v3951
        %v4250 = vunpack.c.l.b16 %v3952
        %v4251 = vunpack.c.h.b16 %v3952
        %v4252 = vunpack.c.l.b16 %v3953
        %v4253 = vunpack.c.h.b16 %v3953
        %v4254 = vunpack.c.l.b16 %v3954
        %v4255 = vunpack.c.h.b16 %v3954
        %v4256 = vunpack.c.l.b16 %v3955
        %v4257 = vunpack.c.h.b16 %v3955
        %v4258 = vunpack.c.l.b16 %v3956
        %v4259 = vunpack.c.h.b16 %v3956
        %v4260 = vunpack.c.l.b16 %v3957
        %v4261 = vunpack.c.h.b16 %v3957
        %v4262 = vunpack.c.l.b16 %v3958
        %v4263 = vunpack.c.h.b16 %v3958
        %v4264 = vunpack.c.l.b16 %v3959
        %v4265 = vunpack.c.h.b16 %v3959
        %v4266 = vunpack.c.l.b16 %v3960
        %v4267 = vunpack.c.h.b16 %v3960
        %v4268 = vunpack.c.l.b16 %v3961
        %v4269 = vunpack.c.h.b16 %v3961
        %v4270 = vunpack.c.l.b16 %v3962
        %v4271 = vunpack.c.h.b16 %v3962
        %v4272 = vunpack.c.l.b16 %v3963
        %v4273 = vunpack.c.h.b16 %v3963
        %v4274 = vunpack.c.l.b16 %v3964
        %v4275 = vunpack.c.h.b16 %v3964
        %v4276 = vunpack.c.l.b16 %v3965
        %v4277 = vunpack.c.h.b16 %v3965
        %v4278 = vunpack.c.l.b16 %v3966
        %v4279 = vunpack.c.h.b16 %v3966
        %v4280 = vunpack.c.l.b16 %v3967
        %v4281 = vunpack.c.h.b16 %v3967
        %v4282 = vunpack.c.l.b16 %v3968
        %v4283 = vunpack.c.h.b16 %v3968
        %v4284 = vunpack.c.l.b16 %v3969
        %v4285 = vunpack.c.h.b16 %v3969
        %v4286 = vunpack.c.l.b16 %v3970
        %v4287 = vunpack.c.h.b16 %v3970
        %v4288 = vunpack.c.l.b16 %v3971
        %v4289 = vunpack.c.h.b16 %v3971
        %v4290 = vunpack.c.l.b16 %v3972
        %v4291 = vunpack.c.h.b16 %v3972
        %v4292 = vunpack.c.l.b16 %v3973
        %v4293 = vunpack.c.h.b16 %v3973
        %v4294 = vunpack.c.l.b16 %v3974
        %v4295 = vunpack.c.h.b16 %v3974
        %v4296 = vunpack.c.l.b16 %v3975
        %v4297 = vunpack.c.h.b16 %v3975
        %v4298 = vunpack.c.l.b16 %v3976
        %v4299 = vunpack.c.h.b16 %v3976
        %v4300 = vunpack.c.l.b16 %v3977
        %v4301 = vunpack.c.h.b16 %v3977
        %v4302 = vunpack.c.l.b16 %v3978
        %v4303 = vunpack.c.h.b16 %v3978
        %v4304 = vunpack.c.l.b16 %v3979
        %v4305 = vunpack.c.h.b16 %v3979
        %v4306 = vunpack.c.l.b16 %v3980
        %v4307 = vunpack.c.h.b16 %v3980
        %v4308 = vunpack.c.l.b16 %v3981
        %v4309 = vunpack.c.h.b16 %v3981
        %v4310 = vunpack.c.l.b16 %v3982
        %v4311 = vunpack.c.h.b16 %v3982
        %v4312 = vunpack.c.l.b16 %v3983
        %v4313 = vunpack.c.h.b16 %v3983
        %v4314 = vunpack.c.l.b16 %v3984
        %v4315 = vunpack.c.h.b16 %v3984
        %v4316 = vunpack.c.l.b16 %v3985
        %v4317 = vunpack.c.h.b16 %v3985
        %v4318 = vunpack.c.l.b16 %v3986
        %v4319 = vunpack.c.h.b16 %v3986
        %v4320 = vunpack.c.l.b16 %v3987
        %v4321 = vunpack.c.h.b16 %v3987
        %v4322 = vunpack.c.l.b16 %v3988
        %v4323 = vunpack.c.h.b16 %v3988
        %v4324 = vunpack.c.l.b16 %v3989
        %v4325 = vunpack.c.h.b16 %v3989
        %v4326 = vunpack.c.l.b16 %v3990
        %v4327 = vunpack.c.h.b16 %v3990
        %v4328 = vunpack.c.l.b16 %v3991
        %v4329 = vunpack.c.h.b16 %v3991
        %v4330 = vunpack.c.l.b16 %v3992
        %v4331 = vunpack.c.h.b16 %v3992
        %v4332 = vunpack.c.l.b16 %v3993
        %v4333 = vunpack.c.h.b16 %v3993
        %v4334 = vunpack.c.l.b16 %v3994
        %v4335 = vunpack.c.h.b16 %v3994
        %v4336 = vunpack.c.l.b16 %v3995
        %v4337 = vunpack.c.h.b16 %v3995
        %v4338 = vunpack.c.l.b16 %v3996
        %v4339 = vunpack.c.h.b16 %v3996
        %v4340 = vunpack.c.l.b16 %v3997
        %v4341 = vunpack.c.h.b16 %v3997
        %v4342 = vunpack.c.l.b16 %v3998
        %v4343 = vunpack.c.h.b16 %v3998
        %v4344 = vunpack.c.l.b16 %v3999
        %v4345 = vunpack.c.h.b16 %v3999
        %v4346 = vunpack.c.l.b16 %v4000
        %v4347 = vunpack.c.h.b16 %v4000
        %v4348 = vunpack.c.l.b16 %v4001
        %v4349 = vunpack.c.h.b16 %v4001
        %v4350 = vunpack.c.l.b16 %v4002
        %v4351 = vunpack.c.h.b16 %v4002
        %v4352 = vunpack.c.l.b16 %v4003
        %v4353 = vunpack.c.h.b16 %v4003
        %v4354 = vunpack.c.l.b16 %v4004
        %v4355 = vunpack.c.h.b16 %v4004
        %v4356 = vunpack.c.l.b16 %v4005
        %v4357 = vunpack.c.h.b16 %v4005
        %v4358 = vunpack.c.l.b16 %v4006
        %v4359 = vunpack.c.h.b16 %v4006
        %v4360 = vunpack.c.l.b16 %v4007
        %v4361 = vunpack.c.h.b16 %v4007
        %v4362 = vunpack.c.l.b16 %v4008
        %v4363 = vunpack.c.h.b16 %v4008
        %v4364 = vunpack.c.l.b16 %v4009
        %v4365 = vunpack.c.h.b16 %v4009
        %v4366 = vunpack.c.l.b16 %v4010
        %v4367 = vunpack.c.h.b16 %v4010
        %v4368 = vunpack.c.l.b16 %v4011
        %v4369 = vunpack.c.h.b16 %v4011
        %v4370 = vunpack.c.l.b16 %v4012
        %v4371 = vunpack.c.h.b16 %v4012
        %v4372 = vunpack.c.l.b16 %v4013
        %v4373 = vunpack.c.h.b16 %v4013
        %v4374 = vunpack.c.l.b16 %v4014
        %v4375 = vunpack.c.h.b16 %v4014
        %v4376 = vunpack.c.l.b16 %v4015
        %v4377 = vunpack.c.h.b16 %v4015
        %v4378 = vunpack.c.l.b16 %v4016
        %v4379 = vunpack.c.h.b16 %v4016
        %v4380 = vunpack.c.l.b16 %v4017
        %v4381 = vunpack.c.h.b16 %v4017
        %v4382 = vunpack.c.l.b16 %v4018
        %v4383 = vunpack.c.h.b16 %v4018
        %v4384 = vunpack.c.l.b16 %v4019
        %v4385 = vunpack.c.h.b16 %v4019
        %v4386 = vunpack.c.l.b16 %v4020
        %v4387 = vunpack.c.h.b16 %v4020
        %v4388 = vunpack.c.l.b16 %v4021
        %v4389 = vunpack.c.h.b16 %v4021
        %v4390 = vunpack.c.l.b16 %v4022
        %v4391 = vunpack.c.h.b16 %v4022
        %v4392 = vunpack.c.l.b16 %v4023
        %v4393 = vunpack.c.h.b16 %v4023
        %v4394 = vunpack.c.l.b16 %v4024
        %v4395 = vunpack.c.h.b16 %v4024
        %v4396 = vunpack.c.l.b16 %v4025
        %v4397 = vunpack.c.h.b16 %v4025
        %v4398 = vunpack.c.l.b16 %v4026
        %v4399 = vunpack.c.h.b16 %v4026
        %v4400 = vunpack.c.l.b16 %v4027
        %v4401 = vunpack.c.h.b16 %v4027
        %v4402 = vunpack.c.l.b16 %v4028
        %v4403 = vunpack.c.h.b16 %v4028
        %v4404 = vunpack.c.l.b16 %v4029
        %v4405 = vunpack.c.h.b16 %v4029
        %v4406 = vunpack.c.l.b16 %v4030
        %v4407 = vunpack.c.h.b16 %v4030
        %v4408 = vunpack.c.l.b16 %v4031
        %v4409 = vunpack.c.h.b16 %v4031
        %v4410 = vunpack.c.l.b16 %v4032
        %v4411 = vunpack.c.h.b16 %v4032
        %v4412 = vunpack.c.l.b16 %v4033
        %v4413 = vunpack.c.h.b16 %v4033
        %v4414 = vunpack.c.l.b16 %v4034
        %v4415 = vunpack.c.h.b16 %v4034
        %v4416 = vunpack.c.l.b16 %v4035
        %v4417 = vunpack.c.h.b16 %v4035
        %v4418 = vunpack.c.l.b16 %v4036
        %v4419 = vunpack.c.h.b16 %v4036
        %v4420 = vunpack.c.l.b16 %v4037
        %v4421 = vunpack.c.h.b16 %v4037
        %v4422 = vpack.c.b16 %v4170, %v4166
        %v4423 = vpack.c.b16 %v4171, %v4167
        %v4424 = vpack.c.b16 %v4172, %v4168
        %v4425 = vpack.c.b16 %v4173, %v4169
        %v4426 = vpack.c.b16 %v4178, %v4174
        %v4427 = vpack.c.b16 %v4179, %v4175
        %v4428 = vpack.c.b16 %v4180, %v4176
        %v4429 = vpack.c.b16 %v4181, %v4177
        %v4430 = vpack.c.b16 %v4186, %v4182
        %v4431 = vpack.c.b16 %v4187, %v4183
        %v4432 = vpack.c.b16 %v4188, %v4184
        %v4433 = vpack.c.b16 %v4189, %v4185
        %v4434 = vpack.c.b16 %v4194, %v4190
        %v4435 = vpack.c.b16 %v4195, %v4191
        %v4436 = vpack.c.b16 %v4196, %v4192
        %v4437 = vpack.c.b16 %v4197, %v4193
        %v4438 = vpack.c.b16 %v4202, %v4198
        %v4439 = vpack.c.b16 %v4203, %v4199
        %v4440 = vpack.c.b16 %v4204, %v4200
        %v4441 = vpack.c.b16 %v4205, %v4201
        %v4442 = vpack.c.b16 %v4210, %v4206
        %v4443 = vpack.c.b16 %v4211, %v4207
        %v4444 = vpack.c.b16 %v4212, %v4208
        %v4445 = vpack.c.b16 %v4213, %v4209
        %v4446 = vpack.c.b16 %v4218, %v4214
        %v4447 = vpack.c.b16 %v4219, %v4215
        %v4448 = vpack.c.b16 %v4220, %v4216
        %v4449 = vpack.c.b16 %v4221, %v4217
        %v4450 = vpack.c.b16 %v4226, %v4222
        %v4451 = vpack.c.b16 %v4227, %v4223
        %v4452 = vpack.c.b16 %v4228, %v4224
        %v4453 = vpack.c.b16 %v4229, %v4225
        %v4454 = vpack.c.b16 %v4234, %v4230
        %v4455 = vpack.c.b16 %v4235, %v4231
        %v4456 = vpack.c.b16 %v4236, %v4232
        %v4457 = vpack.c.b16 %v4237, %v4233
        %v4458 = vpack.c.b16 %v4242, %v4238
        %v4459 = vpack.c.b16 %v4243, %v4239
        %v4460 = vpack.c.b16 %v4244, %v4240
        %v4461 = vpack.c.b16 %v4245, %v4241
        %v4462 = vpack.c.b16 %v4250, %v4246
        %v4463 = vpack.c.b16 %v4251, %v4247
        %v4464 = vpack.c.b16 %v4252, %v4248
        %v4465 = vpack.c.b16 %v4253, %v4249
        %v4466 = vpack.c.b16 %v4258, %v4254
        %v4467 = vpack.c.b16 %v4259, %v4255
        %v4468 = vpack.c.b16 %v4260, %v4256
        %v4469 = vpack.c.b16 %v4261, %v4257
        %v4470 = vpack.c.b16 %v4266, %v4262
        %v4471 = vpack.c.b16 %v4267, %v4263
        %v4472 = vpack.c.b16 %v4268, %v4264
        %v4473 = vpack.c.b16 %v4269, %v4265
        %v4474 = vpack.c.b16 %v4274, %v4270
        %v4475 = vpack.c.b16 %v4275, %v4271
        %v4476 = vpack.c.b16 %v4276, %v4272
        %v4477 = vpack.c.b16 %v4277, %v4273
        %v4478 = vpack.c.b16 %v4282, %v4278
        %v4479 = vpack.c.b16 %v4283, %v4279
        %v4480 = vpack.c.b16 %v4284, %v4280
        %v4481 = vpack.c.b16 %v4285, %v4281
        %v4482 = vpack.c.b16 %v4290, %v4286
        %v4483 = vpack.c.b16 %v4291, %v4287
        %v4484 = vpack.c.b16 %v4292, %v4288
        %v4485 = vpack.c.b16 %v4293, %v4289
        %v4486 = vpack.c.b16 %v4298, %v4294
        %v4487 = vpack.c.b16 %v4299, %v4295
        %v4488 = vpack.c.b16 %v4300, %v4296
        %v4489 = vpack.c.b16 %v4301, %v4297
        %v4490 = vpack.c.b16 %v4306, %v4302
        %v4491 = vpack.c.b16 %v4307, %v4303
        %v4492 = vpack.c.b16 %v4308, %v4304
        %v4493 = vpack.c.b16 %v4309, %v4305
        %v4494 = vpack.c.b16 %v4314, %v4310
        %v4495 = vpack.c.b16 %v4315, %v4311
        %v4496 = vpack.c.b16 %v4316, %v4312
        %v4497 = vpack.c.b16 %v4317, %v4313
        %v4498 = vpack.c.b16 %v4322, %v4318
        %v4499 = vpack.c.b16 %v4323, %v4319
        %v4500 = vpack.c.b16 %v4324, %v4320
        %v4501 = vpack.c.b16 %v4325, %v4321
        %v4502 = vpack.c.b16 %v4330, %v4326
        %v4503 = vpack.c.b16 %v4331, %v4327
        %v4504 = vpack.c.b16 %v4332, %v4328
        %v4505 = vpack.c.b16 %v4333, %v4329
        %v4506 = vpack.c.b16 %v4338, %v4334
        %v4507 = vpack.c.b16 %v4339, %v4335
        %v4508 = vpack.c.b16 %v4340, %v4336
        %v4509 = vpack.c.b16 %v4341, %v4337
        %v4510 = vpack.c.b16 %v4346, %v4342
        %v4511 = vpack.c.b16 %v4347, %v4343
        %v4512 = vpack.c.b16 %v4348, %v4344
        %v4513 = vpack.c.b16 %v4349, %v4345
        %v4514 = vpack.c.b16 %v4354, %v4350
        %v4515 = vpack.c.b16 %v4355, %v4351
        %v4516 = vpack.c.b16 %v4356, %v4352
        %v4517 = vpack.c.b16 %v4357, %v4353
        %v4518 = vpack.c.b16 %v4362, %v4358
        %v4519 = vpack.c.b16 %v4363, %v4359
        %v4520 = vpack.c.b16 %v4364, %v4360
        %v4521 = vpack.c.b16 %v4365, %v4361
        %v4522 = vpack.c.b16 %v4370, %v4366
        %v4523 = vpack.c.b16 %v4371, %v4367
        %v4524 = vpack.c.b16 %v4372, %v4368
        %v4525 = vpack.c.b16 %v4373, %v4369
        %v4526 = vpack.c.b16 %v4378, %v4374
        %v4527 = vpack.c.b16 %v4379, %v4375
        %v4528 = vpack.c.b16 %v4380, %v4376
        %v4529 = vpack.c.b16 %v4381, %v4377
        %v4530 = vpack.c.b16 %v4386, %v4382
        %v4531 = vpack.c.b16 %v4387, %v4383
        %v4532 = vpack.c.b16 %v4388, %v4384
        %v4533 = vpack.c.b16 %v4389, %v4385
        %v4534 = vpack.c.b16 %v4394, %v4390
        %v4535 = vpack.c.b16 %v4395, %v4391
        %v4536 = vpack.c.b16 %v4396, %v4392
        %v4537 = vpack.c.b16 %v4397, %v4393
        %v4538 = vpack.c.b16 %v4402, %v4398
        %v4539 = vpack.c.b16 %v4403, %v4399
        %v4540 = vpack.c.b16 %v4404, %v4400
        %v4541 = vpack.c.b16 %v4405, %v4401
        %v4542 = vpack.c.b16 %v4410, %v4406
        %v4543 = vpack.c.b16 %v4411, %v4407
        %v4544 = vpack.c.b16 %v4412, %v4408
        %v4545 = vpack.c.b16 %v4413, %v4409
        %v4546 = vpack.c.b16 %v4418, %v4414
        %v4547 = vpack.c.b16 %v4419, %v4415
        %v4548 = vpack.c.b16 %v4420, %v4416
        %v4549 = vpack.c.b16 %v4421, %v4417
        %4678 = vmatpush.bf16.msra.mxu0 %v4450
        %4679 = vmatpush.bf16.msra.mxu0 %v4446
        %4680 = vmatpush.bf16.msra.mxu0 %v4442
        %4681 = vmatpush.bf16.msra.mxu0 %v4438
        %4682 = vmatpush.bf16.msra.mxu0 %v4434
        %4683 = vmatpush.bf16.msra.mxu0 %v4430
        %4684 = vmatpush.bf16.msra.mxu0 %v4426
        %4685 = vmatpush.bf16.msra.mxu0 %v4422
        %4686 = vmatmul.bf16.gmra.mxu0 %v1920
        %v4687 = vpop.f32.mrf.mxu0
        %v4688 = vadd.f32 0.0, %v4687
        %v4689 = vpop.f32.mrf.mxu0
        %v4690 = vadd.f32 0.0, %v4689
        %4691 = vdwg.mxu0
        %4692 = vmatpush.bf16.msra.mxu0 %v4482
        %4693 = vmatpush.bf16.msra.mxu0 %v4478
        %4694 = vmatpush.bf16.msra.mxu0 %v4474
        %4695 = vmatpush.bf16.msra.mxu0 %v4470
        %4696 = vmatpush.bf16.msra.mxu0 %v4466
        %4697 = vmatpush.bf16.msra.mxu0 %v4462
        %4698 = vmatpush.bf16.msra.mxu0 %v4458
        %4699 = vmatpush.bf16.msra.mxu0 %v4454
        %4700 = vmatmul.bf16.gmra.mxu0 %v1921
        %v4701 = vpop.f32.mrf.mxu0
        %v4702 = vadd.f32 %v4688, %v4701
        %v4703 = vpop.f32.mrf.mxu0
        %v4704 = vadd.f32 %v4690, %v4703
        %4705 = vdwg.mxu0
        %4706 = vmatpush.bf16.msra.mxu0 %v4514
        %4707 = vmatpush.bf16.msra.mxu0 %v4510
        %4708 = vmatpush.bf16.msra.mxu0 %v4506
        %4709 = vmatpush.bf16.msra.mxu0 %v4502
        %4710 = vmatpush.bf16.msra.mxu0 %v4498
        %4711 = vmatpush.bf16.msra.mxu0 %v4494
        %4712 = vmatpush.bf16.msra.mxu0 %v4490
        %4713 = vmatpush.bf16.msra.mxu0 %v4486
        %4714 = vmatmul.bf16.gmra.mxu0 %v1922
        %v4715 = vpop.f32.mrf.mxu0
        %v4716 = vadd.f32 %v4702, %v4715
        %v4717 = vpop.f32.mrf.mxu0
        %v4718 = vadd.f32 %v4704, %v4717
        %4719 = vdwg.mxu0
        %4720 = vmatpush.bf16.msra.mxu0 %v4546
        %4721 = vmatpush.bf16.msra.mxu0 %v4542
        %4722 = vmatpush.bf16.msra.mxu0 %v4538
        %4723 = vmatpush.bf16.msra.mxu0 %v4534
        %4724 = vmatpush.bf16.msra.mxu0 %v4530
        %4725 = vmatpush.bf16.msra.mxu0 %v4526
        %4726 = vmatpush.bf16.msra.mxu0 %v4522
        %4727 = vmatpush.bf16.msra.mxu0 %v4518
        %4728 = vmatmul.bf16.gmra.mxu0 %v1923
        %v4729 = vpop.f32.mrf.mxu0
        %v4730 = vadd.f32 %v4716, %v4729
        %v4731 = vpop.f32.mrf.mxu0
        %v4732 = vadd.f32 %v4718, %v4731
        %4733 = vdwg.mxu0
        %4734 = vmatpush.bf16.msra.mxu0 %v4451
        %4735 = vmatpush.bf16.msra.mxu0 %v4447
        %4736 = vmatpush.bf16.msra.mxu0 %v4443
        %4737 = vmatpush.bf16.msra.mxu0 %v4439
        %4738 = vmatpush.bf16.msra.mxu0 %v4435
        %4739 = vmatpush.bf16.msra.mxu0 %v4431
        %4740 = vmatpush.bf16.msra.mxu0 %v4427
        %4741 = vmatpush.bf16.msra.mxu0 %v4423
        %4742 = vmatmul.bf16.gmra.mxu0 %v1920
        %v4743 = vpop.f32.mrf.mxu0
        %v4744 = vadd.f32 0.0, %v4743
        %v4745 = vpop.f32.mrf.mxu0
        %v4746 = vadd.f32 0.0, %v4745
        %4747 = vdwg.mxu0
        %4748 = vmatpush.bf16.msra.mxu0 %v4483
        %4749 = vmatpush.bf16.msra.mxu0 %v4479
        %4750 = vmatpush.bf16.msra.mxu0 %v4475
        %4751 = vmatpush.bf16.msra.mxu0 %v4471
        %4752 = vmatpush.bf16.msra.mxu0 %v4467
        %4753 = vmatpush.bf16.msra.mxu0 %v4463
        %4754 = vmatpush.bf16.msra.mxu0 %v4459
        %4755 = vmatpush.bf16.msra.mxu0 %v4455
        %4756 = vmatmul.bf16.gmra.mxu0 %v1921
        %v4757 = vpop.f32.mrf.mxu0
        %v4758 = vadd.f32 %v4744, %v4757
        %v4759 = vpop.f32.mrf.mxu0
        %v4760 = vadd.f32 %v4746, %v4759
        %4761 = vdwg.mxu0
        %4762 = vmatpush.bf16.msra.mxu0 %v4515
        %4763 = vmatpush.bf16.msra.mxu0 %v4511
        %4764 = vmatpush.bf16.msra.mxu0 %v4507
        %4765 = vmatpush.bf16.msra.mxu0 %v4503
        %4766 = vmatpush.bf16.msra.mxu0 %v4499
        %4767 = vmatpush.bf16.msra.mxu0 %v4495
        %4768 = vmatpush.bf16.msra.mxu0 %v4491
        %4769 = vmatpush.bf16.msra.mxu0 %v4487
        %4770 = vmatmul.bf16.gmra.mxu0 %v1922
        %v4771 = vpop.f32.mrf.mxu0
        %v4772 = vadd.f32 %v4758, %v4771
        %v4773 = vpop.f32.mrf.mxu0
        %v4774 = vadd.f32 %v4760, %v4773
        %4775 = vdwg.mxu0
        %4776 = vmatpush.bf16.msra.mxu0 %v4547
        %4777 = vmatpush.bf16.msra.mxu0 %v4543
        %4778 = vmatpush.bf16.msra.mxu0 %v4539
        %4779 = vmatpush.bf16.msra.mxu0 %v4535
        %4780 = vmatpush.bf16.msra.mxu0 %v4531
        %4781 = vmatpush.bf16.msra.mxu0 %v4527
        %4782 = vmatpush.bf16.msra.mxu0 %v4523
        %4783 = vmatpush.bf16.msra.mxu0 %v4519
        %4784 = vmatmul.bf16.gmra.mxu0 %v1923
        %v4785 = vpop.f32.mrf.mxu0
        %v4786 = vadd.f32 %v4772, %v4785
        %v4787 = vpop.f32.mrf.mxu0
        %v4788 = vadd.f32 %v4774, %v4787
        %4789 = vdwg.mxu0
        %4790 = vmatpush.bf16.msra.mxu0 %v4452
        %4791 = vmatpush.bf16.msra.mxu0 %v4448
        %4792 = vmatpush.bf16.msra.mxu0 %v4444
        %4793 = vmatpush.bf16.msra.mxu0 %v4440
        %4794 = vmatpush.bf16.msra.mxu0 %v4436
        %4795 = vmatpush.bf16.msra.mxu0 %v4432
        %4796 = vmatpush.bf16.msra.mxu0 %v4428
        %4797 = vmatpush.bf16.msra.mxu0 %v4424
        %4798 = vmatmul.bf16.gmra.mxu0 %v1920
        %v4799 = vpop.f32.mrf.mxu0
        %v4800 = vadd.f32 0.0, %v4799
        %v4801 = vpop.f32.mrf.mxu0
        %v4802 = vadd.f32 0.0, %v4801
        %4803 = vdwg.mxu0
        %4804 = vmatpush.bf16.msra.mxu0 %v4484
        %4805 = vmatpush.bf16.msra.mxu0 %v4480
        %4806 = vmatpush.bf16.msra.mxu0 %v4476
        %4807 = vmatpush.bf16.msra.mxu0 %v4472
        %4808 = vmatpush.bf16.msra.mxu0 %v4468
        %4809 = vmatpush.bf16.msra.mxu0 %v4464
        %4810 = vmatpush.bf16.msra.mxu0 %v4460
        %4811 = vmatpush.bf16.msra.mxu0 %v4456
        %4812 = vmatmul.bf16.gmra.mxu0 %v1921
        %v4813 = vpop.f32.mrf.mxu0
        %v4814 = vadd.f32 %v4800, %v4813
        %v4815 = vpop.f32.mrf.mxu0
        %v4816 = vadd.f32 %v4802, %v4815
        %4817 = vdwg.mxu0
        %4818 = vmatpush.bf16.msra.mxu0 %v4516
        %4819 = vmatpush.bf16.msra.mxu0 %v4512
        %4820 = vmatpush.bf16.msra.mxu0 %v4508
        %4821 = vmatpush.bf16.msra.mxu0 %v4504
        %4822 = vmatpush.bf16.msra.mxu0 %v4500
        %4823 = vmatpush.bf16.msra.mxu0 %v4496
        %4824 = vmatpush.bf16.msra.mxu0 %v4492
        %4825 = vmatpush.bf16.msra.mxu0 %v4488
        %4826 = vmatmul.bf16.gmra.mxu0 %v1922
        %v4827 = vpop.f32.mrf.mxu0
        %v4828 = vadd.f32 %v4814, %v4827
        %v4829 = vpop.f32.mrf.mxu0
        %v4830 = vadd.f32 %v4816, %v4829
        %4831 = vdwg.mxu0
        %4832 = vmatpush.bf16.msra.mxu0 %v4548
        %4833 = vmatpush.bf16.msra.mxu0 %v4544
        %4834 = vmatpush.bf16.msra.mxu0 %v4540
        %4835 = vmatpush.bf16.msra.mxu0 %v4536
        %4836 = vmatpush.bf16.msra.mxu0 %v4532
        %4837 = vmatpush.bf16.msra.mxu0 %v4528
        %4838 = vmatpush.bf16.msra.mxu0 %v4524
        %4839 = vmatpush.bf16.msra.mxu0 %v4520
        %4840 = vmatmul.bf16.gmra.mxu0 %v1923
        %v4841 = vpop.f32.mrf.mxu0
        %v4842 = vadd.f32 %v4828, %v4841
        %v4843 = vpop.f32.mrf.mxu0
        %v4844 = vadd.f32 %v4830, %v4843
        %4845 = vdwg.mxu0
        %4846 = vmatpush.bf16.msra.mxu0 %v4453
        %4847 = vmatpush.bf16.msra.mxu0 %v4449
        %4848 = vmatpush.bf16.msra.mxu0 %v4445
        %4849 = vmatpush.bf16.msra.mxu0 %v4441
        %4850 = vmatpush.bf16.msra.mxu0 %v4437
        %4851 = vmatpush.bf16.msra.mxu0 %v4433
        %4852 = vmatpush.bf16.msra.mxu0 %v4429
        %4853 = vmatpush.bf16.msra.mxu0 %v4425
        %4854 = vmatmul.bf16.gmra.mxu0 %v1920
        %v4855 = vpop.f32.mrf.mxu0
        %v4856 = vadd.f32 0.0, %v4855
        %v4857 = vpop.f32.mrf.mxu0
        %v4858 = vadd.f32 0.0, %v4857
        %4859 = vdwg.mxu0
        %4860 = vmatpush.bf16.msra.mxu0 %v4485
        %4861 = vmatpush.bf16.msra.mxu0 %v4481
        %4862 = vmatpush.bf16.msra.mxu0 %v4477
        %4863 = vmatpush.bf16.msra.mxu0 %v4473
        %4864 = vmatpush.bf16.msra.mxu0 %v4469
        %4865 = vmatpush.bf16.msra.mxu0 %v4465
        %4866 = vmatpush.bf16.msra.mxu0 %v4461
        %4867 = vmatpush.bf16.msra.mxu0 %v4457
        %4868 = vmatmul.bf16.gmra.mxu0 %v1921
        %v4869 = vpop.f32.mrf.mxu0
        %v4870 = vadd.f32 %v4856, %v4869
        %v4871 = vpop.f32.mrf.mxu0
        %v4872 = vadd.f32 %v4858, %v4871
        %4873 = vdwg.mxu0
        %4874 = vmatpush.bf16.msra.mxu0 %v4517
        %4875 = vmatpush.bf16.msra.mxu0 %v4513
        %4876 = vmatpush.bf16.msra.mxu0 %v4509
        %4877 = vmatpush.bf16.msra.mxu0 %v4505
        %4878 = vmatpush.bf16.msra.mxu0 %v4501
        %4879 = vmatpush.bf16.msra.mxu0 %v4497
        %4880 = vmatpush.bf16.msra.mxu0 %v4493
        %4881 = vmatpush.bf16.msra.mxu0 %v4489
        %4882 = vmatmul.bf16.gmra.mxu0 %v1922
        %v4883 = vpop.f32.mrf.mxu0
        %v4884 = vadd.f32 %v4870, %v4883
        %v4885 = vpop.f32.mrf.mxu0
        %v4886 = vadd.f32 %v4872, %v4885
        %4887 = vdwg.mxu0
        %4888 = vmatpush.bf16.msra.mxu0 %v4549
        %4889 = vmatpush.bf16.msra.mxu0 %v4545
        %4890 = vmatpush.bf16.msra.mxu0 %v4541
        %4891 = vmatpush.bf16.msra.mxu0 %v4537
        %4892 = vmatpush.bf16.msra.mxu0 %v4533
        %4893 = vmatpush.bf16.msra.mxu0 %v4529
        %4894 = vmatpush.bf16.msra.mxu0 %v4525
        %4895 = vmatpush.bf16.msra.mxu0 %v4521
        %4896 = vmatmul.bf16.gmra.mxu0 %v1923
        %v4897 = vpop.f32.mrf.mxu0
        %v4898 = vadd.f32 %v4884, %v4897
        %v4899 = vpop.f32.mrf.mxu0
        %v4900 = vadd.f32 %v4886, %v4899
        %4901 = vdwg.mxu0
        %v4902 = vrot.slane %v2744, 7
        %v4903 = vrot.slane %v2800, 7
        %v4904 = vrot.slane %v2856, 7
        %v4905 = vrot.slane %v2912, 7
        %v4906 = vrot.slane %v2746, 7
        %v4907 = vrot.slane %v2802, 7
        %v4908 = vrot.slane %v2858, 7
        %v4909 = vrot.slane %v2914, 7
        %v4910 = vsel %vm992, %v4902, %v4906
        %v4911 = vsel %vm992, %v4903, %v4907
        %v4912 = vsel %vm992, %v4904, %v4908
        %v4913 = vsel %vm992, %v4905, %v4909
        %v4914 = vsel %vm992, %v4906, %v4902
        %v4915 = vsel %vm992, %v4907, %v4903
        %v4916 = vsel %vm992, %v4908, %v4904
        %v4917 = vsel %vm992, %v4909, %v4905
        %v4918 = vsel %vm988, 0.0, %v4914
        %v4919 = vsel %vm988, 0.0, %v4915
        %v4920 = vsel %vm988, 0.0, %v4916
        %v4921 = vsel %vm988, 0.0, %v4917
        %v4922 = vsel %vm989, 0.0, %v4910
        %v4923 = vsel %vm989, 0.0, %v4911
        %v4924 = vsel %vm989, 0.0, %v4912
        %v4925 = vsel %vm989, 0.0, %v4913
        %v4926 = vrot.slane %v4730, 1
        %v4927 = vrot.slane %v4786, 1
        %v4928 = vrot.slane %v4842, 1
        %v4929 = vrot.slane %v4898, 1
        %v4930 = vrot.slane %v4732, 1
        %v4931 = vrot.slane %v4788, 1
        %v4932 = vrot.slane %v4844, 1
        %v4933 = vrot.slane %v4900, 1
        %v4934 = vsel %vm1001, %v4926, %v4930
        %v4935 = vsel %vm1001, %v4927, %v4931
        %v4936 = vsel %vm1001, %v4928, %v4932
        %v4937 = vsel %vm1001, %v4929, %v4933
        %v4938 = vsel %vm1001, %v4930, %v4926
        %v4939 = vsel %vm1001, %v4931, %v4927
        %v4940 = vsel %vm1001, %v4932, %v4928
        %v4941 = vsel %vm1001, %v4933, %v4929
        %v4942 = vsel %vm997, 0.0, %v4934
        %v4943 = vsel %vm997, 0.0, %v4935
        %v4944 = vsel %vm997, 0.0, %v4936
        %v4945 = vsel %vm997, 0.0, %v4937
        %v4946 = vsel %vm998, 0.0, %v4938
        %v4947 = vsel %vm998, 0.0, %v4939
        %v4948 = vsel %vm998, 0.0, %v4940
        %v4949 = vsel %vm998, 0.0, %v4941
        %v4950 = vadd.f32 %v4918, %v3737
        %v4951 = vadd.f32 %v4919, %v3793
        %v4952 = vadd.f32 %v4920, %v3849
        %v4953 = vadd.f32 %v4921, %v3905
        %v4954 = vadd.f32 %v4922, %v3739
        %v4955 = vadd.f32 %v4923, %v3795
        %v4956 = vadd.f32 %v4924, %v3851
        %v4957 = vadd.f32 %v4925, %v3907
        %v4958 = vadd.f32 %v4950, %v4942
        %v4959 = vadd.f32 %v4951, %v4943
        %v4960 = vadd.f32 %v4952, %v4944
        %v4961 = vadd.f32 %v4953, %v4945
        %v4962 = vadd.f32 %v4954, %v4946
        %v4963 = vadd.f32 %v4955, %v4947
        %v4964 = vadd.f32 %v4956, %v4948
        %v4965 = vadd.f32 %v4957, %v4949
        %v4966 = vld [vmem:[#allocation18] sm:$0xf]
        %v4968 = vperm.slane %v4966, 0
        %v4969 = vperm.slane %v4966, 1
        %v4970 = vperm.slane %v4966, 2
        %v4971 = vperm.slane %v4966, 3
        %v4976 = vadd.f32 %v4958, %v4968
        %v4977 = vadd.f32 %v4959, %v4969
        %v4978 = vadd.f32 %v4960, %v4970
        %v4979 = vadd.f32 %v4961, %v4971
        %v4980 = vadd.f32 %v4962, %v4968
        %v4981 = vadd.f32 %v4963, %v4969
        %v4982 = vadd.f32 %v4964, %v4970
        %v4983 = vadd.f32 %v4965, %v4971
        %vm4984 = vcmp.ge.f32.partialorder %v4976, 0.0
        %vm4985 = vcmp.ge.f32.partialorder %v4977, 0.0
        %vm4986 = vcmp.ge.f32.partialorder %v4978, 0.0
        %vm4987 = vcmp.ge.f32.partialorder %v4979, 0.0
        %vm4988 = vcmp.ge.f32.partialorder %v4980, 0.0
        %vm4989 = vcmp.ge.f32.partialorder %v4981, 0.0
        %vm4990 = vcmp.ge.f32.partialorder %v4982, 0.0
        %vm4991 = vcmp.ge.f32.partialorder %v4983, 0.0
        %v4992 = vmul.f32 %v4976, 0.2
        %v4993 = vmul.f32 %v4977, 0.2
        %v4994 = vmul.f32 %v4978, 0.2
        %v4995 = vmul.f32 %v4979, 0.2
        %v4996 = vmul.f32 %v4980, 0.2
        %v4997 = vmul.f32 %v4981, 0.2
        %v4998 = vmul.f32 %v4982, 0.2
        %v4999 = vmul.f32 %v4983, 0.2
        %v5000 = vsel %vm4984, %v4976, %v4992
        %v5001 = vsel %vm4985, %v4977, %v4993
        %v5002 = vsel %vm4986, %v4978, %v4994
        %v5003 = vsel %vm4987, %v4979, %v4995
        %v5004 = vsel %vm4988, %v4980, %v4996
        %v5005 = vsel %vm4989, %v4981, %v4997
        %v5006 = vsel %vm4990, %v4982, %v4998
        %v5007 = vsel %vm4991, %v4983, %v4999
        %v5008 = vpack.c.bf16 %v5004, %v5000
        %v5009 = vpack.c.bf16 %v5005, %v5001
        %v5010 = vpack.c.bf16 %v5006, %v5002
        %v5011 = vpack.c.bf16 %v5007, %v5003
        %v5012 = vld [vmem:[%s10] sm:$0xf]
        %v5013 = vld [vmem:[%s10 + $0x4] sm:$0xf]
        %v5014 = vld [vmem:[%s10 + $0x8] sm:$0xf]
        %v5015 = vld [vmem:[%s10 + $0xc] sm:$0xf]
        %v5016 = vld [vmem:[%s10 + $0x10] sm:$0xf]
        %v5017 = vld [vmem:[%s10 + $0x14] sm:$0xf]
        %v5018 = vld [vmem:[%s10 + $0x18] sm:$0xf]
        %v5019 = vld [vmem:[%s10 + $0x1c] sm:$0xf]
        %v5020 = vld [vmem:[%s10 + $0x20] sm:$0xf]
        %v5021 = vld [vmem:[%s10 + $0x24] sm:$0xf]
        %v5022 = vld [vmem:[%s10 + $0x28] sm:$0xf]
        %v5023 = vld [vmem:[%s10 + $0x2c] sm:$0xf]
        %v5024 = vld [vmem:[%s10 + $0x30] sm:$0xf]
        %v5025 = vld [vmem:[%s10 + $0x34] sm:$0xf]
        %v5026 = vld [vmem:[%s10 + $0x38] sm:$0xf]
        %v5027 = vld [vmem:[%s10 + $0x3c] sm:$0xf]
        %v5028 = vld [vmem:[%s10 + $0x40] sm:$0xf]
        %v5029 = vld [vmem:[%s10 + $0x44] sm:$0xf]
        %v5030 = vld [vmem:[%s10 + $0x48] sm:$0xf]
        %v5031 = vld [vmem:[%s10 + $0x4c] sm:$0xf]
        %v5032 = vld [vmem:[%s10 + $0x50] sm:$0xf]
        %v5033 = vld [vmem:[%s10 + $0x54] sm:$0xf]
        %v5034 = vld [vmem:[%s10 + $0x58] sm:$0xf]
        %v5035 = vld [vmem:[%s10 + $0x5c] sm:$0xf]
        %v5036 = vld [vmem:[%s10 + $0x60] sm:$0xf]
        %v5037 = vld [vmem:[%s10 + $0x64] sm:$0xf]
        %v5038 = vld [vmem:[%s10 + $0x68] sm:$0xf]
        %v5039 = vld [vmem:[%s10 + $0x6c] sm:$0xf]
        %v5040 = vld [vmem:[%s10 + $0x70] sm:$0xf]
        %v5041 = vld [vmem:[%s10 + $0x74] sm:$0xf]
        %v5042 = vld [vmem:[%s10 + $0x78] sm:$0xf]
        %v5043 = vld [vmem:[%s10 + $0x7c] sm:$0xf]
        %v5044 = vld [vmem:[%s10 + $0x80] sm:$0xf]
        %v5045 = vld [vmem:[%s10 + $0x84] sm:$0xf]
        %v5046 = vld [vmem:[%s10 + $0x88] sm:$0xf]
        %v5047 = vld [vmem:[%s10 + $0x8c] sm:$0xf]
        %v5048 = vld [vmem:[%s10 + $0x90] sm:$0xf]
        %v5049 = vld [vmem:[%s10 + $0x94] sm:$0xf]
        %v5050 = vld [vmem:[%s10 + $0x98] sm:$0xf]
        %v5051 = vld [vmem:[%s10 + $0x9c] sm:$0xf]
        %v5052 = vld [vmem:[%s10 + $0xa0] sm:$0xf]
        %v5053 = vld [vmem:[%s10 + $0xa4] sm:$0xf]
        %v5054 = vld [vmem:[%s10 + $0xa8] sm:$0xf]
        %v5055 = vld [vmem:[%s10 + $0xac] sm:$0xf]
        %v5056 = vld [vmem:[%s10 + $0xb0] sm:$0xf]
        %v5057 = vld [vmem:[%s10 + $0xb4] sm:$0xf]
        %v5058 = vld [vmem:[%s10 + $0xb8] sm:$0xf]
        %v5059 = vld [vmem:[%s10 + $0xbc] sm:$0xf]
        %v5060 = vld [vmem:[%s10 + $0xc0] sm:$0xf]
        %v5061 = vld [vmem:[%s10 + $0xc4] sm:$0xf]
        %v5062 = vld [vmem:[%s10 + $0xc8] sm:$0xf]
        %v5063 = vld [vmem:[%s10 + $0xcc] sm:$0xf]
        %v5064 = vld [vmem:[%s10 + $0xd0] sm:$0xf]
        %v5065 = vld [vmem:[%s10 + $0xd4] sm:$0xf]
        %v5066 = vld [vmem:[%s10 + $0xd8] sm:$0xf]
        %v5067 = vld [vmem:[%s10 + $0xdc] sm:$0xf]
        %v5068 = vld [vmem:[%s10 + $0xe0] sm:$0xf]
        %v5069 = vld [vmem:[%s10 + $0xe4] sm:$0xf]
        %v5070 = vld [vmem:[%s10 + $0xe8] sm:$0xf]
        %v5071 = vld [vmem:[%s10 + $0xec] sm:$0xf]
        %v5072 = vld [vmem:[%s10 + $0xf0] sm:$0xf]
        %v5073 = vld [vmem:[%s10 + $0xf4] sm:$0xf]
        %v5074 = vld [vmem:[%s10 + $0xf8] sm:$0xf]
        %v5075 = vld [vmem:[%s10 + $0xfc] sm:$0xf]
        %v5076 = vld [vmem:[#allocation2] sm:$0x1]
        %v5078 = vperm.slane %v5076, 0
        %v5144 = vunpack.c.l.b16 %v5012
        %v5145 = vunpack.c.l.b16 %v5013
        %v5146 = vunpack.c.l.b16 %v5014
        %v5147 = vunpack.c.l.b16 %v5015
        %v5148 = vunpack.c.l.b16 %v5016
        %v5149 = vunpack.c.l.b16 %v5017
        %v5150 = vunpack.c.l.b16 %v5018
        %v5151 = vunpack.c.l.b16 %v5019
        %v5152 = vunpack.c.l.b16 %v5020
        %v5153 = vunpack.c.l.b16 %v5021
        %v5154 = vunpack.c.l.b16 %v5022
        %v5155 = vunpack.c.l.b16 %v5023
        %v5156 = vunpack.c.l.b16 %v5024
        %v5157 = vunpack.c.l.b16 %v5025
        %v5158 = vunpack.c.l.b16 %v5026
        %v5159 = vunpack.c.l.b16 %v5027
        %v5160 = vunpack.c.l.b16 %v5028
        %v5161 = vunpack.c.l.b16 %v5029
        %v5162 = vunpack.c.l.b16 %v5030
        %v5163 = vunpack.c.l.b16 %v5031
        %v5164 = vunpack.c.l.b16 %v5032
        %v5165 = vunpack.c.l.b16 %v5033
        %v5166 = vunpack.c.l.b16 %v5034
        %v5167 = vunpack.c.l.b16 %v5035
        %v5168 = vunpack.c.l.b16 %v5036
        %v5169 = vunpack.c.l.b16 %v5037
        %v5170 = vunpack.c.l.b16 %v5038
        %v5171 = vunpack.c.l.b16 %v5039
        %v5172 = vunpack.c.l.b16 %v5040
        %v5173 = vunpack.c.l.b16 %v5041
        %v5174 = vunpack.c.l.b16 %v5042
        %v5175 = vunpack.c.l.b16 %v5043
        %v5176 = vunpack.c.l.b16 %v5044
        %v5177 = vunpack.c.l.b16 %v5045
        %v5178 = vunpack.c.l.b16 %v5046
        %v5179 = vunpack.c.l.b16 %v5047
        %v5180 = vunpack.c.l.b16 %v5048
        %v5181 = vunpack.c.l.b16 %v5049
        %v5182 = vunpack.c.l.b16 %v5050
        %v5183 = vunpack.c.l.b16 %v5051
        %v5184 = vunpack.c.l.b16 %v5052
        %v5185 = vunpack.c.l.b16 %v5053
        %v5186 = vunpack.c.l.b16 %v5054
        %v5187 = vunpack.c.l.b16 %v5055
        %v5188 = vunpack.c.l.b16 %v5056
        %v5189 = vunpack.c.l.b16 %v5057
        %v5190 = vunpack.c.l.b16 %v5058
        %v5191 = vunpack.c.l.b16 %v5059
        %v5192 = vunpack.c.l.b16 %v5060
        %v5193 = vunpack.c.l.b16 %v5061
        %v5194 = vunpack.c.l.b16 %v5062
        %v5195 = vunpack.c.l.b16 %v5063
        %v5196 = vunpack.c.l.b16 %v5064
        %v5197 = vunpack.c.l.b16 %v5065
        %v5198 = vunpack.c.l.b16 %v5066
        %v5199 = vunpack.c.l.b16 %v5067
        %v5200 = vunpack.c.l.b16 %v5068
        %v5201 = vunpack.c.l.b16 %v5069
        %v5202 = vunpack.c.l.b16 %v5070
        %v5203 = vunpack.c.l.b16 %v5071
        %v5204 = vunpack.c.l.b16 %v5072
        %v5205 = vunpack.c.l.b16 %v5073
        %v5206 = vunpack.c.l.b16 %v5074
        %v5207 = vunpack.c.l.b16 %v5075
        %v5208 = vpack.c.b16 %v5145, %v5144
        %v5209 = vpack.c.b16 %v5147, %v5146
        %v5210 = vpack.c.b16 %v5149, %v5148
        %v5211 = vpack.c.b16 %v5151, %v5150
        %v5212 = vpack.c.b16 %v5153, %v5152
        %v5213 = vpack.c.b16 %v5155, %v5154
        %v5214 = vpack.c.b16 %v5157, %v5156
        %v5215 = vpack.c.b16 %v5159, %v5158
        %v5216 = vpack.c.b16 %v5161, %v5160
        %v5217 = vpack.c.b16 %v5163, %v5162
        %v5218 = vpack.c.b16 %v5165, %v5164
        %v5219 = vpack.c.b16 %v5167, %v5166
        %v5220 = vpack.c.b16 %v5169, %v5168
        %v5221 = vpack.c.b16 %v5171, %v5170
        %v5222 = vpack.c.b16 %v5173, %v5172
        %v5223 = vpack.c.b16 %v5175, %v5174
        %v5224 = vpack.c.b16 %v5177, %v5176
        %v5225 = vpack.c.b16 %v5179, %v5178
        %v5226 = vpack.c.b16 %v5181, %v5180
        %v5227 = vpack.c.b16 %v5183, %v5182
        %v5228 = vpack.c.b16 %v5185, %v5184
        %v5229 = vpack.c.b16 %v5187, %v5186
        %v5230 = vpack.c.b16 %v5189, %v5188
        %v5231 = vpack.c.b16 %v5191, %v5190
        %v5232 = vpack.c.b16 %v5193, %v5192
        %v5233 = vpack.c.b16 %v5195, %v5194
        %v5234 = vpack.c.b16 %v5197, %v5196
        %v5235 = vpack.c.b16 %v5199, %v5198
        %v5236 = vpack.c.b16 %v5201, %v5200
        %v5237 = vpack.c.b16 %v5203, %v5202
        %v5238 = vpack.c.b16 %v5205, %v5204
        %v5239 = vpack.c.b16 %v5207, %v5206
        %5272 = vmatpush.bf16.msra.mxu0 %v5215
        %5273 = vmatpush.bf16.msra.mxu0 %v5214
        %5274 = vmatpush.bf16.msra.mxu0 %v5213
        %5275 = vmatpush.bf16.msra.mxu0 %v5212
        %5276 = vmatpush.bf16.msra.mxu0 %v5211
        %5277 = vmatpush.bf16.msra.mxu0 %v5210
        %5278 = vmatpush.bf16.msra.mxu0 %v5209
        %5279 = vmatpush.bf16.msra.mxu0 %v5208
        %5280 = vmatmul.bf16.gmra.mxu0 %v5008
        %v5281 = vpop.f32.mrf.mxu0
        %v5282 = vadd.f32 %v5078, %v5281
        %v5283 = vpop.f32.mrf.mxu0
        %v5284 = vadd.f32 %v5078, %v5283
        %5285 = vdwg.mxu0
        %5286 = vmatpush.bf16.msra.mxu0 %v5223
        %5287 = vmatpush.bf16.msra.mxu0 %v5222
        %5288 = vmatpush.bf16.msra.mxu0 %v5221
        %5289 = vmatpush.bf16.msra.mxu0 %v5220
        %5290 = vmatpush.bf16.msra.mxu0 %v5219
        %5291 = vmatpush.bf16.msra.mxu0 %v5218
        %5292 = vmatpush.bf16.msra.mxu0 %v5217
        %5293 = vmatpush.bf16.msra.mxu0 %v5216
        %5294 = vmatmul.bf16.gmra.mxu0 %v5009
        %v5295 = vpop.f32.mrf.mxu0
        %v5296 = vadd.f32 %v5282, %v5295
        %v5297 = vpop.f32.mrf.mxu0
        %v5298 = vadd.f32 %v5284, %v5297
        %5299 = vdwg.mxu0
        %5300 = vmatpush.bf16.msra.mxu0 %v5231
        %5301 = vmatpush.bf16.msra.mxu0 %v5230
        %5302 = vmatpush.bf16.msra.mxu0 %v5229
        %5303 = vmatpush.bf16.msra.mxu0 %v5228
        %5304 = vmatpush.bf16.msra.mxu0 %v5227
        %5305 = vmatpush.bf16.msra.mxu0 %v5226
        %5306 = vmatpush.bf16.msra.mxu0 %v5225
        %5307 = vmatpush.bf16.msra.mxu0 %v5224
        %5308 = vmatmul.bf16.gmra.mxu0 %v5010
        %v5309 = vpop.f32.mrf.mxu0
        %v5310 = vadd.f32 %v5296, %v5309
        %v5311 = vpop.f32.mrf.mxu0
        %v5312 = vadd.f32 %v5298, %v5311
        %5313 = vdwg.mxu0
        %5314 = vmatpush.bf16.msra.mxu0 %v5239
        %5315 = vmatpush.bf16.msra.mxu0 %v5238
        %5316 = vmatpush.bf16.msra.mxu0 %v5237
        %5317 = vmatpush.bf16.msra.mxu0 %v5236
        %5318 = vmatpush.bf16.msra.mxu0 %v5235
        %5319 = vmatpush.bf16.msra.mxu0 %v5234
        %5320 = vmatpush.bf16.msra.mxu0 %v5233
        %5321 = vmatpush.bf16.msra.mxu0 %v5232
        %5322 = vmatmul.bf16.gmra.mxu0 %v5011
        %v5323 = vpop.f32.mrf.mxu0
        %v5324 = vadd.f32 %v5310, %v5323
        %v5325 = vpop.f32.mrf.mxu0
        %v5326 = vadd.f32 %v5312, %v5325
        %5327 = vdwg.mxu0
        %v5328 = vxor.u32 %v5324, 2147483648
        %v5329 = vxor.u32 %v5326, 2147483648
        %v5330 = vmul.f32 %v5328, 1.442695
        %v5331 = vpow.pop %v5330
        %v5332 = vmul.f32 %v5329, 1.442695
        %v5333 = vpow.pop %v5332
        %v5334 = vadd.f32 %v5331, 1.0
        %v5335 = vadd.f32 %v5333, 1.0
        %v5336 = vrcp.pop %v5334
        %v5337 = vmul.f32 %v5334, %v5336
        %v5338 = vsub.f32 1.0, %v5337
        %v5339 = vmul.f32 %v5336, %v5338
        %v5340 = vadd.f32 %v5336, %v5339
        %vm5341 = vweird.f32 %v5334
        %vm5342 = vweird.f32 %v5336
        %vm5343 = vmor %vm5341, %vm5342
        %v5344 = vsel %vm5343, %v5336, %v5340
        %v5345 = vand.u32 2147483647, %v5334
        %vm5346 = vcmp.eq.f32.partialorder %v5345, 8.507059e+37
        %v5347 = vand.u32 %v5334, 2147483648
        %v5348 = vor.u32 1.1754944e-38, %v5347
        %v5349 = vsel %vm5346, %v5348, %v5344
        %v5350 = vmul.f32 1.0, %v5349
        %v5351 = vrcp.pop %v5335
        %v5352 = vmul.f32 %v5335, %v5351
        %v5353 = vsub.f32 1.0, %v5352
        %v5354 = vmul.f32 %v5351, %v5353
        %v5355 = vadd.f32 %v5351, %v5354
        %vm5356 = vweird.f32 %v5335
        %vm5357 = vweird.f32 %v5351
        %vm5358 = vmor %vm5356, %vm5357
        %v5359 = vsel %vm5358, %v5351, %v5355
        %v5360 = vand.u32 2147483647, %v5335
        %vm5361 = vcmp.eq.f32.partialorder %v5360, 8.507059e+37
        %v5362 = vand.u32 %v5335, 2147483648
        %v5363 = vor.u32 1.1754944e-38, %v5362
        %v5364 = vsel %vm5361, %v5363, %v5359
        %v5365 = vmul.f32 1.0, %v5364
        %vm5366 = vcmask 7168
        %5367 = vst.msk [vmem:[%s641] sm:$0xff] %vm5366, %v5350
        %5368 = vst.msk [vmem:[%s641 + $0x8] sm:$0xff] %vm5366, %v5365
        %p5369 = scmp.lt.s32.totalorder %s40, 1
        %s5370 = scalar_select %p5369, %s40, 1
        %s5371 = smul.addr %s5370, 2
        %s5372 = smul.addr %s5371, 8
        %s5373 = scalar_lea.vmem %s12, %s5372
        %s5374 = sand.u32 %s336, 1
        %s5375 = scalar_lea.sflag [#allocation5], %s5374
        %s5376 = sand.u32 %s336, 1
        %s5377 = smul.addr %s5376, 16
        %s5378 = scalar_lea.vmem [#allocation20], %s5377
        // Predicated region
        $region109: #{tpu_custom_call.1} parent=67 // pred_check
          %p5379 = pneg %p320
        $region110: #{tpu_custom_call.1} parent=67 // pred_check_branch
          %5381 = sbr.rel (%p5379) target = $region112
        $region111: #{tpu_custom_call.1} parent=67 // pred_region
          _
        $region112: #{tpu_custom_call.1} parent=67 // pred_fallthru
          _
        // Predicated region
        $region113: #{tpu_custom_call.1} parent=67 // pred_check
          %p5382 = pneg %p346
        $region114: #{tpu_custom_call.1} parent=67 // pred_check_branch
          %5384 = sbr.rel (%p5382) target = $region116
        $region115: #{tpu_custom_call.1} parent=67 // pred_region
          %5386 = vsyncadd %s5375, 0
          %s5387 = smul.addr %s40, 2
          %s5388 = smul.addr %s5387, 8
          %s5389 = scalar_lea.hbm %s13, %s5388
          %s5390 = sshll.u32 %s5378, 4
          %s5391 = int_to_ptr.vmem [resolvable:$true] %s5390
          %s5392 = sshll.u32 %s5389, 4
          %s5393 = int_to_ptr.hbm [resolvable:$true] %s5392
          %5398 = dma.vmem_to_hbm [thread:$0]  %s5391, 256, %s5393, %s5375, 128, 128, 8
        $region116: #{tpu_custom_call.1} parent=67 // pred_fallthru
          _
      $region68: #{tpu_custom_call.1} parent=5 // pred_fallthru
        _
      %p5399 = scmp.le.s32.totalorder 2, %s35
      // Predicated region
      $region117: #{tpu_custom_call.1} parent=5 // pred_check
        %p5400 = pneg %p5399
      $region118: #{tpu_custom_call.1} parent=5 // pred_check_branch
        %5402 = sbr.rel (%p5400) target = $region120
      $region119: #{tpu_custom_call.1} parent=5 // pred_region
        %s5403 = ssub.s32 %s35, 2
        // Predicated region
        $region121: #{tpu_custom_call.1} parent=119 // pred_check
          %p5404 = pneg %p326
        $region122: #{tpu_custom_call.1} parent=119 // pred_check_branch
          %5406 = sbr.rel (%p5404) target = $region124
        $region123: #{tpu_custom_call.1} parent=119 // pred_region
          %p5407 = scmp.lt.s32.totalorder %s41, 1
          %s5408 = scalar_select %p5407, %s41, 1
          %s5409 = smul.addr %s5408, 2
          %s5410 = smul.addr %s5409, 8
          %s5411 = scalar_lea.vmem %s12, %s5410
        $region124: #{tpu_custom_call.1} parent=119 // pred_fallthru
          _
        // Predicated region
        $region125: #{tpu_custom_call.1} parent=119 // pred_check
          %p5412 = pneg %p352
        $region126: #{tpu_custom_call.1} parent=119 // pred_check_branch
          %5414 = sbr.rel (%p5412) target = $region128
        $region127: #{tpu_custom_call.1} parent=119 // pred_region
          %s5415 = sand.u32 %s337, 1
          %s5416 = scalar_lea.sflag [#allocation5], %s5415
          %s5417 = sand.u32 %s337, 1
          %s5418 = smul.addr %s5417, 16
          %s5419 = scalar_lea.vmem [#allocation20], %s5418
          %5421 = dma.done %s5416, 256
        $region128: #{tpu_custom_call.1} parent=119 // pred_fallthru
          _
      $region120: #{tpu_custom_call.1} parent=5 // pred_fallthru
        _
    $region6: #{tpu_custom_call.1} parent=1 // loop_footer
      %s39 = sadd.s32 1, %s35
    $region7: #{tpu_custom_call.1} parent=1 // loop_footer_branch
      %34 = sbr.rel target = $region3
    $region8: #{tpu_custom_call.1} parent=1 // loop_exit
      _
    %5422 = vsyncpa [#allocation4], 1
    %s5423 = scalar_lea.sflag [#allocation4], 1
    %5424 = vsyncpa %s5423, 1
    %5425 = vsyncpa [#allocation7], 1
    %s5426 = scalar_lea.sflag [#allocation7], 1
    %5427 = vsyncpa %s5426, 1
    %5428 = vsyncpa [#allocation10], 1
    %5429 = vsyncpa [#allocation13], 1
    %5430 = vsyncpa [#allocation16], 1
    %5431 = vsyncpa [#allocation19], 1
    %5432 = vsyncpa [#allocation5], 1
    %s5433 = scalar_lea.sflag [#allocation5], 1
    %5434 = vsyncpa %s5433, 1

</llo_original>
